<compile_context>
chip_gen: v6e
topology: v6e:2x2x1
jax: 0.10.0
libtpu: 0.0.40
codegen_flags: <defaults>
</compile_context>

<pallas_src>
import math
import jax
import jax.numpy as jnp
from jax.experimental import pallas as pl
from jax.experimental.pallas import tpu as pltpu


def _round_up(a, b):
    return (a + b - 1) // b * b


# ----------------------------- kernel ---------------------------------------

def _make_kernel(*, model_dim, embed_dim, num_floats, exp_classes, man_classes,
                 n_total, tile_n):
    Dm, De, nf = model_dim, embed_dim, num_floats
    Ce, Cm = exp_classes, man_classes
    inv_n = 1.0 / float(n_total)

    def ce_rows(logits, onehot):
        # per-row cross entropy (T, C) -> (T, 1); only lane (class-axis) reductions
        mx = jnp.max(logits, axis=-1, keepdims=True)
        lse = mx + jnp.log(jnp.sum(jnp.exp(logits - mx), axis=-1, keepdims=True))
        tgt = jnp.sum(logits * onehot, axis=-1, keepdims=True)
        return lse - tgt

    def kernel(x_ref, lab_ref, sign_ref, ebase_ref, mbase_ref, emblk_ref, *rest):
        out_ref = rest[-2]
        feat_ref = rest[-1]            # (tile_n, Dm + (3*nf-1)*De) bf16 feature scratch
        float_refs = rest[:-2]         # (w_slab, b_slab) per float

        # row-validity mask for the (possibly padded) last tile
        row0 = pl.program_id(0) * tile_n
        rows = row0 + jax.lax.broadcasted_iota(jnp.int32, (tile_n, 1), 0)
        valid = (rows < n_total).astype(jnp.float32)

        # stage the x tile into the lane-dense feature scratch once per step
        feat_ref[:, :Dm] = x_ref[...]

        sign_tab = sign_ref[...]       # (2, De)   bf16
        e_tab = ebase_ref[...]         # (Ce, De)  bf16
        m_tab = mbase_ref[...]         # (Cm, De)  bf16
        em_blk = emblk_ref[...]        # (2De, Ce+Cm) bf16 block-diagonal

        row_loss = jnp.zeros((tile_n, 1), jnp.float32)

        for i in range(nf):
            w_ref = float_refs[2 * i]
            b_ref = float_refs[2 * i + 1]
            k_s = Dm + 3 * i * De      # feature width seen by the sign head
            k_e = k_s + De             # ... by exp proj/gate
            k_m = k_e + De             # ... by man proj/gate

            s_lab = lab_ref[:, i:i + 1]
            e_lab = lab_ref[:, nf + i:nf + i + 1]
            m_lab = lab_ref[:, 2 * nf + i:2 * nf + i + 1]

            oh_s = (jax.lax.broadcasted_iota(jnp.int32, (tile_n, 2), 1) == s_lab
                    ).astype(jnp.float32)
            oh_e = (jax.lax.broadcasted_iota(jnp.int32, (tile_n, Ce), 1) == e_lab
                    ).astype(jnp.float32)
            oh_m = (jax.lax.broadcasted_iota(jnp.int32, (tile_n, Cm), 1) == m_lab
                    ).astype(jnp.float32)

            # label embeddings = one-hot gathers from precomputed tables
            s_emb = jnp.dot(oh_s.astype(jnp.bfloat16), sign_tab,
                            preferred_element_type=jnp.float32)
            e_emb = jnp.dot(oh_e.astype(jnp.bfloat16), e_tab,
                            preferred_element_type=jnp.float32)
            feat_ref[:, k_s:k_e] = s_emb.astype(jnp.bfloat16)
            feat_ref[:, k_e:k_m] = e_emb.astype(jnp.bfloat16)
            if i + 1 < nf:             # m_emb of the last float is never consumed
                m_emb = jnp.dot(oh_m.astype(jnp.bfloat16), m_tab,
                                preferred_element_type=jnp.float32)
                feat_ref[:, k_m:k_m + De] = m_emb.astype(jnp.bfloat16)

            # ONE fused matmul for all heads of this float:
            #   output columns = [phi_e | phi_m | gamma_e | gamma_m | sign]
            feat = feat_ref[:, :k_m]
            z = jnp.dot(feat, w_ref[...], preferred_element_type=jnp.float32)
            z = z + b_ref[...]

            # TODO(synk): for De % 128 != 0 these lane slices are not vreg aligned.
            gated = z[:, :2 * De] * jax.nn.sigmoid(z[:, 2 * De:4 * De])
            logits_s = z[:, 4 * De:4 * De + 2]

            # fused class projection: [phi_e|phi_m] @ blkdiag(e_base.T, m_base.T)
            cls = jnp.dot(gated.astype(jnp.bfloat16), em_blk,
                          preferred_element_type=jnp.float32)
            logits_e = cls[:, :Ce]
            logits_m = cls[:, Ce:]

            row_loss = row_loss + ce_rows(logits_s, oh_s)
            row_loss = row_loss + ce_rows(logits_e, oh_e)
            row_loss = row_loss + ce_rows(logits_m, oh_m)

        # single sublane reduction per tile; lane-dense 128-wide output block
        tile_sum = jnp.sum(row_loss * valid) * inv_n
        out_ref[...] = jnp.broadcast_to(jnp.reshape(tile_sum, (1, 1)), (1, 128))

    return kernel


# ----------------------------- glue / wrapper --------------------------------

def sinusoid_features(ids, embed_dim):
    """Raw sin/cos features (pre sin_embed Linear); matches the torch code."""
    x = ids.astype(jnp.float32)[:, None]
    half = embed_dim // 2
    denom = max(half - 1, 1)   # guard half == 1 (torch would divide by zero)
    freqs = jnp.exp(jnp.arange(half, dtype=jnp.float32) *
                    -(math.log(10000.0) / denom))
    ang = x * freqs
    emb = jnp.concatenate([jnp.sin(ang), jnp.cos(ang)], axis=-1)
    if embed_dim % 2:
        emb = jnp.pad(emb, ((0, 0), (0, 1)))
    return emb


def init_params(key, model_dim, embed_dim, num_floats):
    def linear(k, out_dim, in_dim):
        kw, kb = jax.random.split(k)
        W = jax.random.normal(kw, (out_dim, in_dim), jnp.float32) * 0.02
        b = jax.random.normal(kb, (1, out_dim), jnp.float32) * 0.02
        return W, b

    keys = jax.random.split(key, 1 + 5 * num_floats)
    W_sin, b_sin = linear(keys[0], embed_dim, embed_dim)
    floats = []
    for i in range(num_floats):
        prior = 3 * embed_dim * i
        k = keys[1 + 5 * i: 1 + 5 * (i + 1)]
        W_s, b_s = linear(k[0], 2, model_dim + prior)
        W_e, b_e = linear(k[1], embed_dim, model_dim + prior + embed_dim)
        W_m, b_m = linear(k[2], embed_dim, model_dim + prior + 2 * embed_dim)
        W_ge, b_ge = linear(k[3], embed_dim, model_dim + prior + embed_dim)
        W_gm, b_gm = linear(k[4], embed_dim, model_dim + prior + 2 * embed_dim)
        floats.append(dict(W_s=W_s, b_s=b_s, W_e=W_e, b_e=b_e, W_ge=W_ge, b_ge=b_ge,
                           W_m=W_m, b_m=b_m, W_gm=W_gm, b_gm=b_gm))
    return dict(W_sin=W_sin, b_sin=b_sin, floats=floats)


def _flatten(x, s_t, e_t, m_t):
    if x.ndim == 3:
        B, S, D = x.shape
        return (x.reshape(B * S, D), s_t.reshape(B * S, -1),
                e_t.reshape(B * S, -1), m_t.reshape(B * S, -1))
    if x.ndim == 2:
        n = x.shape[0]
        return x, s_t.reshape(n, -1), e_t.reshape(n, -1), m_t.reshape(n, -1)
    raise ValueError("x must be 2-D or 3-D")


def bfloat_forward_pallas(params, x, s_t, e_t, m_t, *, embed_dim, num_floats,
                          exp_classes, man_classes, tile_n=None):
    assert num_floats >= 1
    x_flat, s_flat, e_flat, m_flat = _flatten(x, s_t, e_t, m_t)
    N, Dm = x_flat.shape
    De, nf = embed_dim, num_floats
    Ce, Cm = exp_classes, man_classes
    F_total = Dm + (3 * nf - 1) * De      # last float's m_emb is never consumed

    # --- token-axis tiling (bf16 x => 16-row granule; padded rows masked) ---
    if tile_n is None:
        tile_n = min(1024, _round_up(N, 16))
    tile_n = max(16, _round_up(tile_n, 16))
    n_pad = _round_up(N, tile_n)
    grid_n = n_pad // tile_n
    pad = n_pad - N

    x_bf = x_flat.astype(jnp.bfloat16)
    labels = jnp.concatenate([s_flat, e_flat, m_flat], axis=1).astype(jnp.int32)
    if pad:
        x_bf = jnp.pad(x_bf, ((0, pad), (0, 0)))
        labels = jnp.pad(labels, ((0, pad), (0, 0)))

    # --- precompute all sinusoidal-embedding tables in f32, ship as bf16 ---
    W_sin_T = params['W_sin'].T.astype(jnp.float32)
    b_sin = params['b_sin'].astype(jnp.float32)

    def embed_table(n_classes):
        return sinusoid_features(jnp.arange(n_classes), De) @ W_sin_T + b_sin

    sign_tab = embed_table(2)             # (2, De)
    e_base = embed_table(Ce)              # (Ce, De)
    m_base = embed_table(Cm)              # (Cm, De)
    em_blk = jnp.zeros((2 * De, Ce + Cm), jnp.float32)
    em_blk = em_blk.at[:De, :Ce].set(e_base.T)
    em_blk = em_blk.at[De:, Ce:].set(m_base.T)

    const_inputs = [sign_tab.astype(jnp.bfloat16), e_base.astype(jnp.bfloat16),
                    m_base.astype(jnp.bfloat16), em_blk.astype(jnp.bfloat16)]

    # --- per-float fused weight slab: columns [phi_e|phi_m|gamma_e|gamma_m|sign]
    for i in range(nf):
        p = params['floats'][i]
        k_m = Dm + 3 * i * De + 2 * De

        def pad_rows(w_t, k_m=k_m):
            return jnp.pad(w_t, ((0, k_m - w_t.shape[0]), (0, 0)))

        w_slab = jnp.concatenate(
            [pad_rows(p['W_e'].T), p['W_m'].T,
             pad_rows(p['W_ge'].T), p['W_gm'].T,
             pad_rows(p['W_s'].T)], axis=1).astype(jnp.bfloat16)
        b_slab = jnp.concatenate(
            [p['b_e'], p['b_m'], p['b_ge'], p['b_gm'], p['b_s']],
            axis=1).astype(jnp.float32)
        const_inputs += [w_slab, b_slab]

    kernel = _make_kernel(model_dim=Dm, embed_dim=De, num_floats=nf,
                          exp_classes=Ce, man_classes=Cm,
                          n_total=N, tile_n=tile_n)

    # --- VMEM budget: resident slabs + double-buffered token tiles + scratch ---
    const_bytes = sum(int(a.size) * a.dtype.itemsize for a in const_inputs)
    tile_bytes = tile_n * (Dm * 2 + 3 * nf * 4)
    scratch_bytes = tile_n * F_total * 2
    need = 2 * const_bytes + 2 * tile_bytes + scratch_bytes + (8 << 20)
    cap = 96 << 20
    try:
        cap = int(pltpu.get_tpu_info().vmem_capacity_bytes * 3 // 4)
    except Exception:
        pass
    vmem_limit = int(min(max(need, 32 << 20), max(cap, 16 << 20)))

    def run(use_buffered):
        def const_spec(shape):
            if use_buffered:
                return pl.BlockSpec(shape, lambda i: (0, 0),
                                    pipeline_mode=pl.Buffered(1))
            return pl.BlockSpec(shape, lambda i: (0, 0))

        in_specs = [pl.BlockSpec((tile_n, Dm), lambda i: (i, 0)),
                    pl.BlockSpec((tile_n, 3 * nf), lambda i: (i, 0))]
        in_specs += [const_spec(a.shape) for a in const_inputs]

        fn = pl.pallas_call(
            kernel,
            grid=(grid_n,),
            in_specs=in_specs,
            out_specs=pl.BlockSpec((1, 128), lambda i: (0, i)),
            out_shape=jax.ShapeDtypeStruct((1, 128 * grid_n), jnp.float32),
            scratch_shapes=[pltpu.VMEM((tile_n, F_total), jnp.bfloat16)],
            compiler_params=pltpu.CompilerParams(
                dimension_semantics=("parallel",),   # per-tile partials, no race
                vmem_limit_bytes=vmem_limit),
        )
        return fn(x_bf, labels, *const_inputs)

    if hasattr(pl, "Buffered"):
        try:
            out = run(True)
        except Exception:   # fall back if single-buffered pipeline_mode unsupported
            out = run(False)
    else:
        out = run(False)

    partials = out.reshape(grid_n, 128)[:, 0]   # lane 0 of each tile's block
    return jnp.sum(partials)


# ----------------------------- pure-JAX reference ----------------------------

def bfloat_forward_ref(params, x, s_t, e_t, m_t, *,
                       embed_dim, num_floats, exp_classes, man_classes):
    x_flat, s_flat, e_flat, m_flat = _flatten(x, s_t, e_t, m_t)

    def sin_embed(ids):
        raw = sinusoid_features(ids, embed_dim)
        return raw @ params['W_sin'].T + params['b_sin']

    def ce(logits, labels):
        logp = jax.nn.log_softmax(logits, axis=-1)
        return -jnp.mean(jnp.take_along_axis(logp, labels[:, None], axis=-1))

    e_base = sin_embed(jnp.arange(exp_classes))
    m_base = sin_embed(jnp.arange(man_classes))

    total = 0.0
    prev = []
    for i in range(num_floats):
        p = params['floats'][i]
        h_s = jnp.concatenate([x_flat] + prev, axis=-1) if prev else x_flat
        logits_s = h_s @ p['W_s'].T + p['b_s']
        total += ce(logits_s, s_flat[:, i])
        s_emb = sin_embed(s_flat[:, i])
        h_e = jnp.concatenate([x_flat] + prev + [s_emb], axis=-1)
        phi_e = (h_e @ p['W_e'].T + p['b_e']) * jax.nn.sigmoid(h_e @ p['W_ge'].T + p['b_ge'])
        total += ce(phi_e @ e_base.T, e_flat[:, i])
        e_emb = sin_embed(e_flat[:, i])
        h_m = jnp.concatenate([x_flat] + prev + [s_emb, e_emb], axis=-1)
        phi_m = (h_m @ p['W_m'].T + p['b_m']) * jax.nn.sigmoid(h_m @ p['W_gm'].T + p['b_gm'])
        total += ce(phi_m @ m_base.T, m_flat[:, i])
        m_emb = sin_embed(m_flat[:, i])
        prev.extend([s_emb, e_emb, m_emb])
    return total


# ----------------------------- main ------------------------------------------

if __name__ == "__main__":
    MODEL_DIM = 32
    EMBED_DIM = 32
    NUM_FLOATS = 2
    EXP_CLASSES = 32
    MAN_CLASSES = 16
    B, S = 2, 9      # N = 18 -> exercises row padding / masking

    key = jax.random.PRNGKey(0)
    k_par, k_x, k_s, k_e, k_m = jax.random.split(key, 5)

    params = init_params(k_par, MODEL_DIM, EMBED_DIM, NUM_FLOATS)

    x = jax.random.normal(k_x, (B, S, MODEL_DIM), jnp.float32)
    s_t = jax.random.randint(k_s, (B, S, NUM_FLOATS), 0, 2, jnp.int32)
    e_t = jax.random.randint(k_e, (B, S, NUM_FLOATS), 0, EXP_CLASSES, jnp.int32)
    m_t = jax.random.randint(k_m, (B, S, NUM_FLOATS), 0, MAN_CLASSES, jnp.int32)

    kwargs = dict(embed_dim=EMBED_DIM, num_floats=NUM_FLOATS,
                  exp_classes=EXP_CLASSES, man_classes=MAN_CLASSES)

    loss_ref = jax.block_until_ready(
        bfloat_forward_ref(params, x, s_t, e_t, m_t, **kwargs))

    # multi-tile path: grid of 2 token tiles, last tile mostly masked
    loss_tiled = jax.block_until_ready(
        bfloat_forward_pallas(params, x, s_t, e_t, m_t, tile_n=16, **kwargs))

    # default tile choice: single tile, padded rows masked
    loss_default = jax.block_until_ready(
        bfloat_forward_pallas(params, x, s_t, e_t, m_t, **kwargs))

    # bf16 MXU operands -> slightly looser parity vs the f32 reference
    for name, v in (("tiled", loss_tiled), ("default", loss_default)):
        assert jnp.isfinite(v), f"{name}: kernel produced non-finite loss"
        tol = 2e-2 * max(1.0, abs(float(loss_ref)))
        assert abs(float(v) - float(loss_ref)) < tol, \
            f"{name} mismatch: pallas={float(v)} ref={float(loss_ref)}"

    print("KERNEL_OK")
</pallas_src>

<mosaic_0001>
module attributes {stable_mosaic.version = 11 : i64} {
  func.func @kernel(%arg0: i32, %arg1: memref<16x32xbf16, #tpu.memory_space<vmem>>, %arg2: memref<16x6xi32, #tpu.memory_space<vmem>>, %arg3: memref<2x32xbf16, #tpu.memory_space<vmem>>, %arg4: memref<32x32xbf16, #tpu.memory_space<vmem>>, %arg5: memref<16x32xbf16, #tpu.memory_space<vmem>>, %arg6: memref<64x48xbf16, #tpu.memory_space<vmem>>, %arg7: memref<96x130xbf16, #tpu.memory_space<vmem>>, %arg8: memref<1x130xf32, #tpu.memory_space<vmem>>, %arg9: memref<192x130xbf16, #tpu.memory_space<vmem>>, %arg10: memref<1x130xf32, #tpu.memory_space<vmem>>, %arg11: memref<1x128xf32, #tpu.memory_space<vmem>>, %arg12: memref<16x192xbf16, #tpu.memory_space<vmem>>) attributes {dimension_semantics = [#tpu.dimension_semantics<parallel>], iteration_bounds = array<i64: 2>, scalar_prefetch = 0 : i64, scratch_operands = 1 : i64, tpu.core_type = #tpu.core_type<tc>, window_params = [{transform_indices = @transform_0, window_bounds = array<i64: 16, 32>}, {transform_indices = @transform_1, window_bounds = array<i64: 16, 6>}, {pipeline_mode = #tpu.pipeline_mode<synchronous>, transform_indices = @transform_2, window_bounds = array<i64: 2, 32>}, {pipeline_mode = #tpu.pipeline_mode<synchronous>, transform_indices = @transform_3, window_bounds = array<i64: 32, 32>}, {pipeline_mode = #tpu.pipeline_mode<synchronous>, transform_indices = @transform_4, window_bounds = array<i64: 16, 32>}, {pipeline_mode = #tpu.pipeline_mode<synchronous>, transform_indices = @transform_5, window_bounds = array<i64: 64, 48>}, {pipeline_mode = #tpu.pipeline_mode<synchronous>, transform_indices = @transform_6, window_bounds = array<i64: 96, 130>}, {pipeline_mode = #tpu.pipeline_mode<synchronous>, transform_indices = @transform_7, window_bounds = array<i64: 1, 130>}, {pipeline_mode = #tpu.pipeline_mode<synchronous>, transform_indices = @transform_8, window_bounds = array<i64: 192, 130>}, {pipeline_mode = #tpu.pipeline_mode<synchronous>, transform_indices = @transform_9, window_bounds = array<i64: 1, 130>}, {transform_indices = @transform_10, window_bounds = array<i64: 1, 128>}]} {
    %c16_i32 = arith.constant 16 : i32
    %0 = arith.muli %arg0, %c16_i32 : i32
    %1 = tpu.iota {dimensions = array<i32: 0>} : vector<16x1xi32>
    %2 = vector.broadcast %0 : i32 to vector<16x1xi32>
    %3 = arith.addi %2, %1 : vector<16x1xi32>
    %c18_i32 = arith.constant 18 : i32
    %4 = vector.broadcast %c18_i32 : i32 to vector<16x1xi32>
    %5 = arith.cmpi slt, %3, %4 : vector<16x1xi32>
    %6 = arith.extui %5 : vector<16x1xi1> to vector<16x1xi32>
    %7 = arith.sitofp %6 : vector<16x1xi32> to vector<16x1xf32>
    %c0 = arith.constant 0 : index
    %c0_0 = arith.constant 0 : index
    %8 = vector.load %arg1[%c0, %c0_0] : memref<16x32xbf16, #tpu.memory_space<vmem>>, vector<16x32xbf16>
    %c0_1 = arith.constant 0 : index
    %c0_2 = arith.constant 0 : index
    %9 = vector.load %arg12[%c0_1, %c0_2] : memref<16x192xbf16, #tpu.memory_space<vmem>>, vector<16x32xbf16>
    tpu.vector_store %arg12[%c0_1, %c0_2], %8 {strides = array<i32>} : memref<16x192xbf16, #tpu.memory_space<vmem>>, vector<16x32xbf16>,
    %c0_3 = arith.constant 0 : index
    %c0_4 = arith.constant 0 : index
    %10 = vector.load %arg3[%c0_3, %c0_4] : memref<2x32xbf16, #tpu.memory_space<vmem>>, vector<2x32xbf16>
    %c0_5 = arith.constant 0 : index
    %c0_6 = arith.constant 0 : index
    %11 = vector.load %arg4[%c0_5, %c0_6] : memref<32x32xbf16, #tpu.memory_space<vmem>>, vector<32x32xbf16>
    %c0_7 = arith.constant 0 : index
    %c0_8 = arith.constant 0 : index
    %12 = vector.load %arg5[%c0_7, %c0_8] : memref<16x32xbf16, #tpu.memory_space<vmem>>, vector<16x32xbf16>
    %c0_9 = arith.constant 0 : index
    %c0_10 = arith.constant 0 : index
    %13 = vector.load %arg6[%c0_9, %c0_10] : memref<64x48xbf16, #tpu.memory_space<vmem>>, vector<64x48xbf16>
    %cst = arith.constant 0.000000e+00 : f32
    %14 = vector.broadcast %cst : f32 to vector<16x1xf32>
    %c0_11 = arith.constant 0 : index
    %c0_12 = arith.constant 0 : index
    %15 = vector.load %arg2[%c0_11, %c0_12] : memref<16x6xi32, #tpu.memory_space<vmem>>, vector<16x1xi32>
    %c0_13 = arith.constant 0 : index
    %c2 = arith.constant 2 : index
    %16 = vector.load %arg2[%c0_13, %c2] : memref<16x6xi32, #tpu.memory_space<vmem>>, vector<16x1xi32>
    %c0_14 = arith.constant 0 : index
    %c4 = arith.constant 4 : index
    %17 = vector.load %arg2[%c0_14, %c4] : memref<16x6xi32, #tpu.memory_space<vmem>>, vector<16x1xi32>
    %18 = tpu.iota {dimensions = array<i32: 1>} : vector<16x2xi32>
    %19 = vector.broadcast %15 : vector<16x1xi32> to vector<16x2xi32>
    %20 = arith.cmpi eq, %18, %19 : vector<16x2xi32>
    %21 = arith.extui %20 : vector<16x2xi1> to vector<16x2xi32>
    %22 = arith.sitofp %21 : vector<16x2xi32> to vector<16x2xf32>
    %23 = tpu.iota {dimensions = array<i32: 1>} : vector<16x32xi32>
    %24 = vector.broadcast %16 : vector<16x1xi32> to vector<16x32xi32>
    %25 = arith.cmpi eq, %23, %24 : vector<16x32xi32>
    %26 = arith.extui %25 : vector<16x32xi1> to vector<16x32xi32>
    %27 = arith.sitofp %26 : vector<16x32xi32> to vector<16x32xf32>
    %28 = tpu.iota {dimensions = array<i32: 1>} : vector<16x16xi32>
    %29 = vector.broadcast %17 : vector<16x1xi32> to vector<16x16xi32>
    %30 = arith.cmpi eq, %28, %29 : vector<16x16xi32>
    %31 = arith.extui %30 : vector<16x16xi1> to vector<16x16xi32>
    %32 = arith.sitofp %31 : vector<16x16xi32> to vector<16x16xf32>
    %33 = arith.truncf %22 : vector<16x2xf32> to vector<16x2xbf16>
    %cst_15 = arith.constant dense<0.000000e+00> : vector<16x32xf32>
    %34 = tpu.matmul %33, %10, %cst_15 {dimension_numbers = #tpu.dot_dimension_numbers<[1], [0], [0], [1], [0, 0, 1, 1], [], []>} : vector<16x2xbf16>, vector<2x32xbf16>, vector<16x32xf32> -> vector<16x32xf32>
    %35 = arith.truncf %27 : vector<16x32xf32> to vector<16x32xbf16>
    %cst_16 = arith.constant dense<0.000000e+00> : vector<16x32xf32>
    %36 = tpu.matmul %35, %11, %cst_16 {dimension_numbers = #tpu.dot_dimension_numbers<[1], [0], [0], [1], [0, 0, 1, 1], [], []>} : vector<16x32xbf16>, vector<32x32xbf16>, vector<16x32xf32> -> vector<16x32xf32>
    %37 = arith.truncf %34 : vector<16x32xf32> to vector<16x32xbf16>
    %c0_17 = arith.constant 0 : index
    %c32 = arith.constant 32 : index
    %38 = vector.load %arg12[%c0_17, %c32] : memref<16x192xbf16, #tpu.memory_space<vmem>>, vector<16x32xbf16>
    tpu.vector_store %arg12[%c0_17, %c32], %37 {strides = array<i32>} : memref<16x192xbf16, #tpu.memory_space<vmem>>, vector<16x32xbf16>,
    %39 = arith.truncf %36 : vector<16x32xf32> to vector<16x32xbf16>
    %c0_18 = arith.constant 0 : index
    %c64 = arith.constant 64 : index
    %40 = vector.load %arg12[%c0_18, %c64] : memref<16x192xbf16, #tpu.memory_space<vmem>>, vector<16x32xbf16>
    tpu.vector_store %arg12[%c0_18, %c64], %39 {strides = array<i32>} : memref<16x192xbf16, #tpu.memory_space<vmem>>, vector<16x32xbf16>,
    %41 = arith.truncf %32 : vector<16x16xf32> to vector<16x16xbf16>
    %cst_19 = arith.constant dense<0.000000e+00> : vector<16x32xf32>
    %42 = tpu.matmul %41, %12, %cst_19 {dimension_numbers = #tpu.dot_dimension_numbers<[1], [0], [0], [1], [0, 0, 1, 1], [], []>} : vector<16x16xbf16>, vector<16x32xbf16>, vector<16x32xf32> -> vector<16x32xf32>
    %43 = arith.truncf %42 : vector<16x32xf32> to vector<16x32xbf16>
    %c0_20 = arith.constant 0 : index
    %c96 = arith.constant 96 : index
    %44 = vector.load %arg12[%c0_20, %c96] : memref<16x192xbf16, #tpu.memory_space<vmem>>, vector<16x32xbf16>
    tpu.vector_store %arg12[%c0_20, %c96], %43 {strides = array<i32>} : memref<16x192xbf16, #tpu.memory_space<vmem>>, vector<16x32xbf16>,
    %c0_21 = arith.constant 0 : index
    %c0_22 = arith.constant 0 : index
    %45 = vector.load %arg12[%c0_21, %c0_22] : memref<16x192xbf16, #tpu.memory_space<vmem>>, vector<16x96xbf16>
    %c0_23 = arith.constant 0 : index
    %c0_24 = arith.constant 0 : index
    %46 = vector.load %arg7[%c0_23, %c0_24] : memref<96x130xbf16, #tpu.memory_space<vmem>>, vector<96x130xbf16>
    %cst_25 = arith.constant dense<0.000000e+00> : vector<16x130xf32>
    %47 = tpu.matmul %45, %46, %cst_25 {dimension_numbers = #tpu.dot_dimension_numbers<[1], [0], [0], [1], [0, 0, 1, 1], [], []>} : vector<16x96xbf16>, vector<96x130xbf16>, vector<16x130xf32> -> vector<16x130xf32>
    %c0_26 = arith.constant 0 : index
    %c0_27 = arith.constant 0 : index
    %48 = vector.load %arg8[%c0_26, %c0_27] : memref<1x130xf32, #tpu.memory_space<vmem>>, vector<1x130xf32>
    %49 = vector.broadcast %48 : vector<1x130xf32> to vector<16x130xf32>
    %50 = arith.addf %47, %49 : vector<16x130xf32>
    %51 = vector.extract_strided_slice %50 {offsets = [0, 0], sizes = [16, 64], strides = [1, 1]} : vector<16x130xf32> to vector<16x64xf32>
    %52 = vector.extract_strided_slice %50 {offsets = [0, 64], sizes = [16, 64], strides = [1, 1]} : vector<16x130xf32> to vector<16x64xf32>
    %53 = arith.negf %52 : vector<16x64xf32>
    %54 = math.exp %53 : vector<16x64xf32>
    %cst_28 = arith.constant 1.000000e+00 : f32
    %55 = vector.broadcast %cst_28 : f32 to vector<16x64xf32>
    %56 = arith.addf %55, %54 : vector<16x64xf32>
    %57 = arith.divf %55, %56 : vector<16x64xf32>
    %58 = arith.mulf %51, %57 : vector<16x64xf32>
    %59 = vector.extract_strided_slice %50 {offsets = [0, 128], sizes = [16, 2], strides = [1, 1]} : vector<16x130xf32> to vector<16x2xf32>
    %60 = arith.truncf %58 : vector<16x64xf32> to vector<16x64xbf16>
    %cst_29 = arith.constant dense<0.000000e+00> : vector<16x48xf32>
    %61 = tpu.matmul %60, %13, %cst_29 {dimension_numbers = #tpu.dot_dimension_numbers<[1], [0], [0], [1], [0, 0, 1, 1], [], []>} : vector<16x64xbf16>, vector<64x48xbf16>, vector<16x48xf32> -> vector<16x48xf32>
    %62 = vector.extract_strided_slice %61 {offsets = [0, 0], sizes = [16, 32], strides = [1, 1]} : vector<16x48xf32> to vector<16x32xf32>
    %63 = vector.extract_strided_slice %61 {offsets = [0, 32], sizes = [16, 16], strides = [1, 1]} : vector<16x48xf32> to vector<16x16xf32>
    %cst_30 = arith.constant dense<0xFF800000> : vector<16xf32>
    %64 = vector.multi_reduction <maximumf>, %59, %cst_30 [1] : vector<16x2xf32> to vector<16xf32>
    %65 = vector.shape_cast %64 : vector<16xf32> to vector<16x1xf32>
    %66 = vector.broadcast %65 : vector<16x1xf32> to vector<16x2xf32>
    %67 = arith.subf %59, %66 : vector<16x2xf32>
    %68 = math.exp %67 : vector<16x2xf32>
    %cst_31 = arith.constant dense<0.000000e+00> : vector<16xf32>
    %69 = vector.multi_reduction <add>, %68, %cst_31 [1] : vector<16x2xf32> to vector<16xf32>
    %70 = vector.shape_cast %69 : vector<16xf32> to vector<16x1xf32>
    %71 = math.log %70 : vector<16x1xf32>
    %72 = arith.addf %65, %71 : vector<16x1xf32>
    %73 = arith.mulf %59, %22 : vector<16x2xf32>
    %cst_32 = arith.constant dense<0.000000e+00> : vector<16xf32>
    %74 = vector.multi_reduction <add>, %73, %cst_32 [1] : vector<16x2xf32> to vector<16xf32>
    %75 = vector.shape_cast %74 : vector<16xf32> to vector<16x1xf32>
    %76 = arith.subf %72, %75 : vector<16x1xf32>
    %77 = arith.addf %14, %76 : vector<16x1xf32>
    %cst_33 = arith.constant dense<0xFF800000> : vector<16xf32>
    %78 = vector.multi_reduction <maximumf>, %62, %cst_33 [1] : vector<16x32xf32> to vector<16xf32>
    %79 = vector.shape_cast %78 : vector<16xf32> to vector<16x1xf32>
    %80 = vector.broadcast %79 : vector<16x1xf32> to vector<16x32xf32>
    %81 = arith.subf %62, %80 : vector<16x32xf32>
    %82 = math.exp %81 : vector<16x32xf32>
    %cst_34 = arith.constant dense<0.000000e+00> : vector<16xf32>
    %83 = vector.multi_reduction <add>, %82, %cst_34 [1] : vector<16x32xf32> to vector<16xf32>
    %84 = vector.shape_cast %83 : vector<16xf32> to vector<16x1xf32>
    %85 = math.log %84 : vector<16x1xf32>
    %86 = arith.addf %79, %85 : vector<16x1xf32>
    %87 = arith.mulf %62, %27 : vector<16x32xf32>
    %cst_35 = arith.constant dense<0.000000e+00> : vector<16xf32>
    %88 = vector.multi_reduction <add>, %87, %cst_35 [1] : vector<16x32xf32> to vector<16xf32>
    %89 = vector.shape_cast %88 : vector<16xf32> to vector<16x1xf32>
    %90 = arith.subf %86, %89 : vector<16x1xf32>
    %91 = arith.addf %77, %90 : vector<16x1xf32>
    %cst_36 = arith.constant dense<0xFF800000> : vector<16xf32>
    %92 = vector.multi_reduction <maximumf>, %63, %cst_36 [1] : vector<16x16xf32> to vector<16xf32>
    %93 = vector.shape_cast %92 : vector<16xf32> to vector<16x1xf32>
    %94 = vector.broadcast %93 : vector<16x1xf32> to vector<16x16xf32>
    %95 = arith.subf %63, %94 : vector<16x16xf32>
    %96 = math.exp %95 : vector<16x16xf32>
    %cst_37 = arith.constant dense<0.000000e+00> : vector<16xf32>
    %97 = vector.multi_reduction <add>, %96, %cst_37 [1] : vector<16x16xf32> to vector<16xf32>
    %98 = vector.shape_cast %97 : vector<16xf32> to vector<16x1xf32>
    %99 = math.log %98 : vector<16x1xf32>
    %100 = arith.addf %93, %99 : vector<16x1xf32>
    %101 = arith.mulf %63, %32 : vector<16x16xf32>
    %cst_38 = arith.constant dense<0.000000e+00> : vector<16xf32>
    %102 = vector.multi_reduction <add>, %101, %cst_38 [1] : vector<16x16xf32> to vector<16xf32>
    %103 = vector.shape_cast %102 : vector<16xf32> to vector<16x1xf32>
    %104 = arith.subf %100, %103 : vector<16x1xf32>
    %105 = arith.addf %91, %104 : vector<16x1xf32>
    %c0_39 = arith.constant 0 : index
    %c1 = arith.constant 1 : index
    %106 = vector.load %arg2[%c0_39, %c1] : memref<16x6xi32, #tpu.memory_space<vmem>>, vector<16x1xi32>
    %c0_40 = arith.constant 0 : index
    %c3 = arith.constant 3 : index
    %107 = vector.load %arg2[%c0_40, %c3] : memref<16x6xi32, #tpu.memory_space<vmem>>, vector<16x1xi32>
    %c0_41 = arith.constant 0 : index
    %c5 = arith.constant 5 : index
    %108 = vector.load %arg2[%c0_41, %c5] : memref<16x6xi32, #tpu.memory_space<vmem>>, vector<16x1xi32>
    %109 = tpu.iota {dimensions = array<i32: 1>} : vector<16x2xi32>
    %110 = vector.broadcast %106 : vector<16x1xi32> to vector<16x2xi32>
    %111 = arith.cmpi eq, %109, %110 : vector<16x2xi32>
    %112 = arith.extui %111 : vector<16x2xi1> to vector<16x2xi32>
    %113 = arith.sitofp %112 : vector<16x2xi32> to vector<16x2xf32>
    %114 = tpu.iota {dimensions = array<i32: 1>} : vector<16x32xi32>
    %115 = vector.broadcast %107 : vector<16x1xi32> to vector<16x32xi32>
    %116 = arith.cmpi eq, %114, %115 : vector<16x32xi32>
    %117 = arith.extui %116 : vector<16x32xi1> to vector<16x32xi32>
    %118 = arith.sitofp %117 : vector<16x32xi32> to vector<16x32xf32>
    %119 = tpu.iota {dimensions = array<i32: 1>} : vector<16x16xi32>
    %120 = vector.broadcast %108 : vector<16x1xi32> to vector<16x16xi32>
    %121 = arith.cmpi eq, %119, %120 : vector<16x16xi32>
    %122 = arith.extui %121 : vector<16x16xi1> to vector<16x16xi32>
    %123 = arith.sitofp %122 : vector<16x16xi32> to vector<16x16xf32>
    %124 = arith.truncf %113 : vector<16x2xf32> to vector<16x2xbf16>
    %cst_42 = arith.constant dense<0.000000e+00> : vector<16x32xf32>
    %125 = tpu.matmul %124, %10, %cst_42 {dimension_numbers = #tpu.dot_dimension_numbers<[1], [0], [0], [1], [0, 0, 1, 1], [], []>} : vector<16x2xbf16>, vector<2x32xbf16>, vector<16x32xf32> -> vector<16x32xf32>
    %126 = arith.truncf %118 : vector<16x32xf32> to vector<16x32xbf16>
    %cst_43 = arith.constant dense<0.000000e+00> : vector<16x32xf32>
    %127 = tpu.matmul %126, %11, %cst_43 {dimension_numbers = #tpu.dot_dimension_numbers<[1], [0], [0], [1], [0, 0, 1, 1], [], []>} : vector<16x32xbf16>, vector<32x32xbf16>, vector<16x32xf32> -> vector<16x32xf32>
    %128 = arith.truncf %125 : vector<16x32xf32> to vector<16x32xbf16>
    %c0_44 = arith.constant 0 : index
    %c128 = arith.constant 128 : index
    %129 = vector.load %arg12[%c0_44, %c128] : memref<16x192xbf16, #tpu.memory_space<vmem>>, vector<16x32xbf16>
    tpu.vector_store %arg12[%c0_44, %c128], %128 {strides = array<i32>} : memref<16x192xbf16, #tpu.memory_space<vmem>>, vector<16x32xbf16>,
    %130 = arith.truncf %127 : vector<16x32xf32> to vector<16x32xbf16>
    %c0_45 = arith.constant 0 : index
    %c160 = arith.constant 160 : index
    %131 = vector.load %arg12[%c0_45, %c160] : memref<16x192xbf16, #tpu.memory_space<vmem>>, vector<16x32xbf16>
    tpu.vector_store %arg12[%c0_45, %c160], %130 {strides = array<i32>} : memref<16x192xbf16, #tpu.memory_space<vmem>>, vector<16x32xbf16>,
    %c0_46 = arith.constant 0 : index
    %c0_47 = arith.constant 0 : index
    %132 = vector.load %arg12[%c0_46, %c0_47] : memref<16x192xbf16, #tpu.memory_space<vmem>>, vector<16x192xbf16>
    %c0_48 = arith.constant 0 : index
    %c0_49 = arith.constant 0 : index
    %133 = vector.load %arg9[%c0_48, %c0_49] : memref<192x130xbf16, #tpu.memory_space<vmem>>, vector<192x130xbf16>
    %cst_50 = arith.constant dense<0.000000e+00> : vector<16x130xf32>
    %134 = tpu.matmul %132, %133, %cst_50 {dimension_numbers = #tpu.dot_dimension_numbers<[1], [0], [0], [1], [0, 0, 1, 1], [], []>} : vector<16x192xbf16>, vector<192x130xbf16>, vector<16x130xf32> -> vector<16x130xf32>
    %c0_51 = arith.constant 0 : index
    %c0_52 = arith.constant 0 : index
    %135 = vector.load %arg10[%c0_51, %c0_52] : memref<1x130xf32, #tpu.memory_space<vmem>>, vector<1x130xf32>
    %136 = vector.broadcast %135 : vector<1x130xf32> to vector<16x130xf32>
    %137 = arith.addf %134, %136 : vector<16x130xf32>
    %138 = vector.extract_strided_slice %137 {offsets = [0, 0], sizes = [16, 64], strides = [1, 1]} : vector<16x130xf32> to vector<16x64xf32>
    %139 = vector.extract_strided_slice %137 {offsets = [0, 64], sizes = [16, 64], strides = [1, 1]} : vector<16x130xf32> to vector<16x64xf32>
    %140 = arith.negf %139 : vector<16x64xf32>
    %141 = math.exp %140 : vector<16x64xf32>
    %cst_53 = arith.constant 1.000000e+00 : f32
    %142 = vector.broadcast %cst_53 : f32 to vector<16x64xf32>
    %143 = arith.addf %142, %141 : vector<16x64xf32>
    %144 = arith.divf %142, %143 : vector<16x64xf32>
    %145 = arith.mulf %138, %144 : vector<16x64xf32>
    %146 = vector.extract_strided_slice %137 {offsets = [0, 128], sizes = [16, 2], strides = [1, 1]} : vector<16x130xf32> to vector<16x2xf32>
    %147 = arith.truncf %145 : vector<16x64xf32> to vector<16x64xbf16>
    %cst_54 = arith.constant dense<0.000000e+00> : vector<16x48xf32>
    %148 = tpu.matmul %147, %13, %cst_54 {dimension_numbers = #tpu.dot_dimension_numbers<[1], [0], [0], [1], [0, 0, 1, 1], [], []>} : vector<16x64xbf16>, vector<64x48xbf16>, vector<16x48xf32> -> vector<16x48xf32>
    %149 = vector.extract_strided_slice %148 {offsets = [0, 0], sizes = [16, 32], strides = [1, 1]} : vector<16x48xf32> to vector<16x32xf32>
    %150 = vector.extract_strided_slice %148 {offsets = [0, 32], sizes = [16, 16], strides = [1, 1]} : vector<16x48xf32> to vector<16x16xf32>
    %cst_55 = arith.constant dense<0xFF800000> : vector<16xf32>
    %151 = vector.multi_reduction <maximumf>, %146, %cst_55 [1] : vector<16x2xf32> to vector<16xf32>
    %152 = vector.shape_cast %151 : vector<16xf32> to vector<16x1xf32>
    %153 = vector.broadcast %152 : vector<16x1xf32> to vector<16x2xf32>
    %154 = arith.subf %146, %153 : vector<16x2xf32>
    %155 = math.exp %154 : vector<16x2xf32>
    %cst_56 = arith.constant dense<0.000000e+00> : vector<16xf32>
    %156 = vector.multi_reduction <add>, %155, %cst_56 [1] : vector<16x2xf32> to vector<16xf32>
    %157 = vector.shape_cast %156 : vector<16xf32> to vector<16x1xf32>
    %158 = math.log %157 : vector<16x1xf32>
    %159 = arith.addf %152, %158 : vector<16x1xf32>
    %160 = arith.mulf %146, %113 : vector<16x2xf32>
    %cst_57 = arith.constant dense<0.000000e+00> : vector<16xf32>
    %161 = vector.multi_reduction <add>, %160, %cst_57 [1] : vector<16x2xf32> to vector<16xf32>
    %162 = vector.shape_cast %161 : vector<16xf32> to vector<16x1xf32>
    %163 = arith.subf %159, %162 : vector<16x1xf32>
    %164 = arith.addf %105, %163 : vector<16x1xf32>
    %cst_58 = arith.constant dense<0xFF800000> : vector<16xf32>
    %165 = vector.multi_reduction <maximumf>, %149, %cst_58 [1] : vector<16x32xf32> to vector<16xf32>
    %166 = vector.shape_cast %165 : vector<16xf32> to vector<16x1xf32>
    %167 = vector.broadcast %166 : vector<16x1xf32> to vector<16x32xf32>
    %168 = arith.subf %149, %167 : vector<16x32xf32>
    %169 = math.exp %168 : vector<16x32xf32>
    %cst_59 = arith.constant dense<0.000000e+00> : vector<16xf32>
    %170 = vector.multi_reduction <add>, %169, %cst_59 [1] : vector<16x32xf32> to vector<16xf32>
    %171 = vector.shape_cast %170 : vector<16xf32> to vector<16x1xf32>
    %172 = math.log %171 : vector<16x1xf32>
    %173 = arith.addf %166, %172 : vector<16x1xf32>
    %174 = arith.mulf %149, %118 : vector<16x32xf32>
    %cst_60 = arith.constant dense<0.000000e+00> : vector<16xf32>
    %175 = vector.multi_reduction <add>, %174, %cst_60 [1] : vector<16x32xf32> to vector<16xf32>
    %176 = vector.shape_cast %175 : vector<16xf32> to vector<16x1xf32>
    %177 = arith.subf %173, %176 : vector<16x1xf32>
    %178 = arith.addf %164, %177 : vector<16x1xf32>
    %cst_61 = arith.constant dense<0xFF800000> : vector<16xf32>
    %179 = vector.multi_reduction <maximumf>, %150, %cst_61 [1] : vector<16x16xf32> to vector<16xf32>
    %180 = vector.shape_cast %179 : vector<16xf32> to vector<16x1xf32>
    %181 = vector.broadcast %180 : vector<16x1xf32> to vector<16x16xf32>
    %182 = arith.subf %150, %181 : vector<16x16xf32>
    %183 = math.exp %182 : vector<16x16xf32>
    %cst_62 = arith.constant dense<0.000000e+00> : vector<16xf32>
    %184 = vector.multi_reduction <add>, %183, %cst_62 [1] : vector<16x16xf32> to vector<16xf32>
    %185 = vector.shape_cast %184 : vector<16xf32> to vector<16x1xf32>
    %186 = math.log %185 : vector<16x1xf32>
    %187 = arith.addf %180, %186 : vector<16x1xf32>
    %188 = arith.mulf %150, %123 : vector<16x16xf32>
    %cst_63 = arith.constant dense<0.000000e+00> : vector<16xf32>
    %189 = vector.multi_reduction <add>, %188, %cst_63 [1] : vector<16x16xf32> to vector<16xf32>
    %190 = vector.shape_cast %189 : vector<16xf32> to vector<16x1xf32>
    %191 = arith.subf %187, %190 : vector<16x1xf32>
    %192 = arith.addf %178, %191 : vector<16x1xf32>
    %193 = arith.mulf %192, %7 : vector<16x1xf32>
    %194 = vector.shape_cast %193 : vector<16x1xf32> to vector<1x16x1xf32>
    %cst_64 = arith.constant dense<0.000000e+00> : vector<1xf32>
    %195 = vector.multi_reduction <add>, %194, %cst_64 [1, 2] : vector<1x16x1xf32> to vector<1xf32>
    %196 = vector.shape_cast %195 : vector<1xf32> to vector<1x1x1xf32>
    %197 = vector.extract %196[0, 0, 0] : f32 from vector<1x1x1xf32>
    %cst_65 = arith.constant 0.055555556 : f32
    %198 = arith.mulf %197, %cst_65 : f32
    %199 = vector.broadcast %198 : f32 to vector<1x1xf32>
    %200 = vector.shape_cast %199 : vector<1x1xf32> to vector<1x1xf32>
    %201 = vector.broadcast %200 : vector<1x1xf32> to vector<1x128xf32>
    %c0_66 = arith.constant 0 : index
    %c0_67 = arith.constant 0 : index
    %202 = vector.load %arg11[%c0_66, %c0_67] : memref<1x128xf32, #tpu.memory_space<vmem>>, vector<1x128xf32>
    tpu.vector_store %arg11[%c0_66, %c0_67], %201 {strides = array<i32>} : memref<1x128xf32, #tpu.memory_space<vmem>>, vector<1x128xf32>,
    return
  }
  func.func @transform_0(%arg0: i32) -> (i32, i32) {
    %c0_i32 = arith.constant 0 : i32
    %c0_i32_0 = arith.constant 0 : i32
    return %arg0, %c0_i32 : i32, i32
  }
  func.func @transform_1(%arg0: i32) -> (i32, i32) {
    %c0_i32 = arith.constant 0 : i32
    %c0_i32_0 = arith.constant 0 : i32
    return %arg0, %c0_i32 : i32, i32
  }
  func.func @transform_2(%arg0: i32) -> (i32, i32) {
    %c0_i32 = arith.constant 0 : i32
    %c0_i32_0 = arith.constant 0 : i32
    %c0_i32_1 = arith.constant 0 : i32
    return %c0_i32, %c0_i32_0 : i32, i32
  }
  func.func @transform_3(%arg0: i32) -> (i32, i32) {
    %c0_i32 = arith.constant 0 : i32
    %c0_i32_0 = arith.constant 0 : i32
    %c0_i32_1 = arith.constant 0 : i32
    return %c0_i32, %c0_i32_0 : i32, i32
  }
  func.func @transform_4(%arg0: i32) -> (i32, i32) {
    %c0_i32 = arith.constant 0 : i32
    %c0_i32_0 = arith.constant 0 : i32
    %c0_i32_1 = arith.constant 0 : i32
    return %c0_i32, %c0_i32_0 : i32, i32
  }
  func.func @transform_5(%arg0: i32) -> (i32, i32) {
    %c0_i32 = arith.constant 0 : i32
    %c0_i32_0 = arith.constant 0 : i32
    %c0_i32_1 = arith.constant 0 : i32
    return %c0_i32, %c0_i32_0 : i32, i32
  }
  func.func @transform_6(%arg0: i32) -> (i32, i32) {
    %c0_i32 = arith.constant 0 : i32
    %c0_i32_0 = arith.constant 0 : i32
    %c0_i32_1 = arith.constant 0 : i32
    return %c0_i32, %c0_i32_0 : i32, i32
  }
  func.func @transform_7(%arg0: i32) -> (i32, i32) {
    %c0_i32 = arith.constant 0 : i32
    %c0_i32_0 = arith.constant 0 : i32
    %c0_i32_1 = arith.constant 0 : i32
    return %c0_i32, %c0_i32_0 : i32, i32
  }
  func.func @transform_8(%arg0: i32) -> (i32, i32) {
    %c0_i32 = arith.constant 0 : i32
    %c0_i32_0 = arith.constant 0 : i32
    %c0_i32_1 = arith.constant 0 : i32
    return %c0_i32, %c0_i32_0 : i32, i32
  }
  func.func @transform_9(%arg0: i32) -> (i32, i32) {
    %c0_i32 = arith.constant 0 : i32
    %c0_i32_0 = arith.constant 0 : i32
    %c0_i32_1 = arith.constant 0 : i32
    return %c0_i32, %c0_i32_0 : i32, i32
  }
  func.func @transform_10(%arg0: i32) -> (i32, i32) {
    %c0_i32 = arith.constant 0 : i32
    %c0_i32_0 = arith.constant 0 : i32
    return %c0_i32, %arg0 : i32, i32
  }
}

module attributes {stable_mosaic.version = 11 : i64} {
  func.func @kernel(%arg0: i32, %arg1: memref<16x32xbf16, #tpu.memory_space<vmem>>, %arg2: memref<16x6xi32, #tpu.memory_space<vmem>>, %arg3: memref<2x32xbf16, #tpu.memory_space<vmem>>, %arg4: memref<32x32xbf16, #tpu.memory_space<vmem>>, %arg5: memref<16x32xbf16, #tpu.memory_space<vmem>>, %arg6: memref<64x48xbf16, #tpu.memory_space<vmem>>, %arg7: memref<96x130xbf16, #tpu.memory_space<vmem>>, %arg8: memref<1x130xf32, #tpu.memory_space<vmem>>, %arg9: memref<192x130xbf16, #tpu.memory_space<vmem>>, %arg10: memref<1x130xf32, #tpu.memory_space<vmem>>, %arg11: memref<1x128xf32, #tpu.memory_space<vmem>>, %arg12: memref<16x192xbf16, #tpu.memory_space<vmem>>) attributes {dimension_semantics = [#tpu.dimension_semantics<parallel>], iteration_bounds = array<i64: 2>, scalar_prefetch = 0 : i64, scratch_operands = 1 : i64, tpu.core_type = #tpu.core_type<tc>, window_params = [{transform_indices = @transform_0, window_bounds = array<i64: 16, 32>}, {transform_indices = @transform_1, window_bounds = array<i64: 16, 6>}, {pipeline_mode = #tpu.pipeline_mode<synchronous>, transform_indices = @transform_2, window_bounds = array<i64: 2, 32>}, {pipeline_mode = #tpu.pipeline_mode<synchronous>, transform_indices = @transform_3, window_bounds = array<i64: 32, 32>}, {pipeline_mode = #tpu.pipeline_mode<synchronous>, transform_indices = @transform_4, window_bounds = array<i64: 16, 32>}, {pipeline_mode = #tpu.pipeline_mode<synchronous>, transform_indices = @transform_5, window_bounds = array<i64: 64, 48>}, {pipeline_mode = #tpu.pipeline_mode<synchronous>, transform_indices = @transform_6, window_bounds = array<i64: 96, 130>}, {pipeline_mode = #tpu.pipeline_mode<synchronous>, transform_indices = @transform_7, window_bounds = array<i64: 1, 130>}, {pipeline_mode = #tpu.pipeline_mode<synchronous>, transform_indices = @transform_8, window_bounds = array<i64: 192, 130>}, {pipeline_mode = #tpu.pipeline_mode<synchronous>, transform_indices = @transform_9, window_bounds = array<i64: 1, 130>}, {transform_indices = @transform_10, window_bounds = array<i64: 1, 128>}]} {
    %c16_i32 = arith.constant 16 : i32
    %0 = arith.muli %arg0, %c16_i32 : i32
    %1 = tpu.iota {dimensions = array<i32: 0>} : vector<16x1xi32>
    %2 = vector.broadcast %0 : i32 to vector<16x1xi32>
    %3 = arith.addi %2, %1 : vector<16x1xi32>
    %c18_i32 = arith.constant 18 : i32
    %4 = vector.broadcast %c18_i32 : i32 to vector<16x1xi32>
    %5 = arith.cmpi slt, %3, %4 : vector<16x1xi32>
    %6 = arith.extui %5 : vector<16x1xi1> to vector<16x1xi32>
    %7 = arith.sitofp %6 : vector<16x1xi32> to vector<16x1xf32>
    %c0 = arith.constant 0 : index
    %c0_0 = arith.constant 0 : index
    %8 = vector.load %arg1[%c0, %c0_0] : memref<16x32xbf16, #tpu.memory_space<vmem>>, vector<16x32xbf16>
    %c0_1 = arith.constant 0 : index
    %c0_2 = arith.constant 0 : index
    %9 = vector.load %arg12[%c0_1, %c0_2] : memref<16x192xbf16, #tpu.memory_space<vmem>>, vector<16x32xbf16>
    tpu.vector_store %arg12[%c0_1, %c0_2], %8 {strides = array<i32>} : memref<16x192xbf16, #tpu.memory_space<vmem>>, vector<16x32xbf16>,
    %c0_3 = arith.constant 0 : index
    %c0_4 = arith.constant 0 : index
    %10 = vector.load %arg3[%c0_3, %c0_4] : memref<2x32xbf16, #tpu.memory_space<vmem>>, vector<2x32xbf16>
    %c0_5 = arith.constant 0 : index
    %c0_6 = arith.constant 0 : index
    %11 = vector.load %arg4[%c0_5, %c0_6] : memref<32x32xbf16, #tpu.memory_space<vmem>>, vector<32x32xbf16>
    %c0_7 = arith.constant 0 : index
    %c0_8 = arith.constant 0 : index
    %12 = vector.load %arg5[%c0_7, %c0_8] : memref<16x32xbf16, #tpu.memory_space<vmem>>, vector<16x32xbf16>
    %c0_9 = arith.constant 0 : index
    %c0_10 = arith.constant 0 : index
    %13 = vector.load %arg6[%c0_9, %c0_10] : memref<64x48xbf16, #tpu.memory_space<vmem>>, vector<64x48xbf16>
    %cst = arith.constant 0.000000e+00 : f32
    %14 = vector.broadcast %cst : f32 to vector<16x1xf32>
    %c0_11 = arith.constant 0 : index
    %c0_12 = arith.constant 0 : index
    %15 = vector.load %arg2[%c0_11, %c0_12] : memref<16x6xi32, #tpu.memory_space<vmem>>, vector<16x1xi32>
    %c0_13 = arith.constant 0 : index
    %c2 = arith.constant 2 : index
    %16 = vector.load %arg2[%c0_13, %c2] : memref<16x6xi32, #tpu.memory_space<vmem>>, vector<16x1xi32>
    %c0_14 = arith.constant 0 : index
    %c4 = arith.constant 4 : index
    %17 = vector.load %arg2[%c0_14, %c4] : memref<16x6xi32, #tpu.memory_space<vmem>>, vector<16x1xi32>
    %18 = tpu.iota {dimensions = array<i32: 1>} : vector<16x2xi32>
    %19 = vector.broadcast %15 : vector<16x1xi32> to vector<16x2xi32>
    %20 = arith.cmpi eq, %18, %19 : vector<16x2xi32>
    %21 = arith.extui %20 : vector<16x2xi1> to vector<16x2xi32>
    %22 = arith.sitofp %21 : vector<16x2xi32> to vector<16x2xf32>
    %23 = tpu.iota {dimensions = array<i32: 1>} : vector<16x32xi32>
    %24 = vector.broadcast %16 : vector<16x1xi32> to vector<16x32xi32>
    %25 = arith.cmpi eq, %23, %24 : vector<16x32xi32>
    %26 = arith.extui %25 : vector<16x32xi1> to vector<16x32xi32>
    %27 = arith.sitofp %26 : vector<16x32xi32> to vector<16x32xf32>
    %28 = tpu.iota {dimensions = array<i32: 1>} : vector<16x16xi32>
    %29 = vector.broadcast %17 : vector<16x1xi32> to vector<16x16xi32>
    %30 = arith.cmpi eq, %28, %29 : vector<16x16xi32>
    %31 = arith.extui %30 : vector<16x16xi1> to vector<16x16xi32>
    %32 = arith.sitofp %31 : vector<16x16xi32> to vector<16x16xf32>
    %33 = arith.truncf %22 : vector<16x2xf32> to vector<16x2xbf16>
    %cst_15 = arith.constant dense<0.000000e+00> : vector<16x32xf32>
    %34 = tpu.matmul %33, %10, %cst_15 {dimension_numbers = #tpu.dot_dimension_numbers<[1], [0], [0], [1], [0, 0, 1, 1], [], []>} : vector<16x2xbf16>, vector<2x32xbf16>, vector<16x32xf32> -> vector<16x32xf32>
    %35 = arith.truncf %27 : vector<16x32xf32> to vector<16x32xbf16>
    %cst_16 = arith.constant dense<0.000000e+00> : vector<16x32xf32>
    %36 = tpu.matmul %35, %11, %cst_16 {dimension_numbers = #tpu.dot_dimension_numbers<[1], [0], [0], [1], [0, 0, 1, 1], [], []>} : vector<16x32xbf16>, vector<32x32xbf16>, vector<16x32xf32> -> vector<16x32xf32>
    %37 = arith.truncf %34 : vector<16x32xf32> to vector<16x32xbf16>
    %c0_17 = arith.constant 0 : index
    %c32 = arith.constant 32 : index
    %38 = vector.load %arg12[%c0_17, %c32] : memref<16x192xbf16, #tpu.memory_space<vmem>>, vector<16x32xbf16>
    tpu.vector_store %arg12[%c0_17, %c32], %37 {strides = array<i32>} : memref<16x192xbf16, #tpu.memory_space<vmem>>, vector<16x32xbf16>,
    %39 = arith.truncf %36 : vector<16x32xf32> to vector<16x32xbf16>
    %c0_18 = arith.constant 0 : index
    %c64 = arith.constant 64 : index
    %40 = vector.load %arg12[%c0_18, %c64] : memref<16x192xbf16, #tpu.memory_space<vmem>>, vector<16x32xbf16>
    tpu.vector_store %arg12[%c0_18, %c64], %39 {strides = array<i32>} : memref<16x192xbf16, #tpu.memory_space<vmem>>, vector<16x32xbf16>,
    %41 = arith.truncf %32 : vector<16x16xf32> to vector<16x16xbf16>
    %cst_19 = arith.constant dense<0.000000e+00> : vector<16x32xf32>
    %42 = tpu.matmul %41, %12, %cst_19 {dimension_numbers = #tpu.dot_dimension_numbers<[1], [0], [0], [1], [0, 0, 1, 1], [], []>} : vector<16x16xbf16>, vector<16x32xbf16>, vector<16x32xf32> -> vector<16x32xf32>
    %43 = arith.truncf %42 : vector<16x32xf32> to vector<16x32xbf16>
    %c0_20 = arith.constant 0 : index
    %c96 = arith.constant 96 : index
    %44 = vector.load %arg12[%c0_20, %c96] : memref<16x192xbf16, #tpu.memory_space<vmem>>, vector<16x32xbf16>
    tpu.vector_store %arg12[%c0_20, %c96], %43 {strides = array<i32>} : memref<16x192xbf16, #tpu.memory_space<vmem>>, vector<16x32xbf16>,
    %c0_21 = arith.constant 0 : index
    %c0_22 = arith.constant 0 : index
    %45 = vector.load %arg12[%c0_21, %c0_22] : memref<16x192xbf16, #tpu.memory_space<vmem>>, vector<16x96xbf16>
    %c0_23 = arith.constant 0 : index
    %c0_24 = arith.constant 0 : index
    %46 = vector.load %arg7[%c0_23, %c0_24] : memref<96x130xbf16, #tpu.memory_space<vmem>>, vector<96x130xbf16>
    %cst_25 = arith.constant dense<0.000000e+00> : vector<16x130xf32>
    %47 = tpu.matmul %45, %46, %cst_25 {dimension_numbers = #tpu.dot_dimension_numbers<[1], [0], [0], [1], [0, 0, 1, 1], [], []>} : vector<16x96xbf16>, vector<96x130xbf16>, vector<16x130xf32> -> vector<16x130xf32>
    %c0_26 = arith.constant 0 : index
    %c0_27 = arith.constant 0 : index
    %48 = vector.load %arg8[%c0_26, %c0_27] : memref<1x130xf32, #tpu.memory_space<vmem>>, vector<1x130xf32>
    %49 = vector.broadcast %48 : vector<1x130xf32> to vector<16x130xf32>
    %50 = arith.addf %47, %49 : vector<16x130xf32>
    %51 = vector.extract_strided_slice %50 {offsets = [0, 0], sizes = [16, 64], strides = [1, 1]} : vector<16x130xf32> to vector<16x64xf32>
    %52 = vector.extract_strided_slice %50 {offsets = [0, 64], sizes = [16, 64], strides = [1, 1]} : vector<16x130xf32> to vector<16x64xf32>
    %53 = arith.negf %52 : vector<16x64xf32>
    %54 = math.exp %53 : vector<16x64xf32>
    %cst_28 = arith.constant 1.000000e+00 : f32
    %55 = vector.broadcast %cst_28 : f32 to vector<16x64xf32>
    %56 = arith.addf %55, %54 : vector<16x64xf32>
    %57 = arith.divf %55, %56 : vector<16x64xf32>
    %58 = arith.mulf %51, %57 : vector<16x64xf32>
    %59 = vector.extract_strided_slice %50 {offsets = [0, 128], sizes = [16, 2], strides = [1, 1]} : vector<16x130xf32> to vector<16x2xf32>
    %60 = arith.truncf %58 : vector<16x64xf32> to vector<16x64xbf16>
    %cst_29 = arith.constant dense<0.000000e+00> : vector<16x48xf32>
    %61 = tpu.matmul %60, %13, %cst_29 {dimension_numbers = #tpu.dot_dimension_numbers<[1], [0], [0], [1], [0, 0, 1, 1], [], []>} : vector<16x64xbf16>, vector<64x48xbf16>, vector<16x48xf32> -> vector<16x48xf32>
    %62 = vector.extract_strided_slice %61 {offsets = [0, 0], sizes = [16, 32], strides = [1, 1]} : vector<16x48xf32> to vector<16x32xf32>
    %63 = vector.extract_strided_slice %61 {offsets = [0, 32], sizes = [16, 16], strides = [1, 1]} : vector<16x48xf32> to vector<16x16xf32>
    %cst_30 = arith.constant dense<0xFF800000> : vector<16xf32>
    %64 = vector.multi_reduction <maximumf>, %59, %cst_30 [1] : vector<16x2xf32> to vector<16xf32>
    %65 = vector.shape_cast %64 : vector<16xf32> to vector<16x1xf32>
    %66 = vector.broadcast %65 : vector<16x1xf32> to vector<16x2xf32>
    %67 = arith.subf %59, %66 : vector<16x2xf32>
    %68 = math.exp %67 : vector<16x2xf32>
    %cst_31 = arith.constant dense<0.000000e+00> : vector<16xf32>
    %69 = vector.multi_reduction <add>, %68, %cst_31 [1] : vector<16x2xf32> to vector<16xf32>
    %70 = vector.shape_cast %69 : vector<16xf32> to vector<16x1xf32>
    %71 = math.log %70 : vector<16x1xf32>
    %72 = arith.addf %65, %71 : vector<16x1xf32>
    %73 = arith.mulf %59, %22 : vector<16x2xf32>
    %cst_32 = arith.constant dense<0.000000e+00> : vector<16xf32>
    %74 = vector.multi_reduction <add>, %73, %cst_32 [1] : vector<16x2xf32> to vector<16xf32>
    %75 = vector.shape_cast %74 : vector<16xf32> to vector<16x1xf32>
    %76 = arith.subf %72, %75 : vector<16x1xf32>
    %77 = arith.addf %14, %76 : vector<16x1xf32>
    %cst_33 = arith.constant dense<0xFF800000> : vector<16xf32>
    %78 = vector.multi_reduction <maximumf>, %62, %cst_33 [1] : vector<16x32xf32> to vector<16xf32>
    %79 = vector.shape_cast %78 : vector<16xf32> to vector<16x1xf32>
    %80 = vector.broadcast %79 : vector<16x1xf32> to vector<16x32xf32>
    %81 = arith.subf %62, %80 : vector<16x32xf32>
    %82 = math.exp %81 : vector<16x32xf32>
    %cst_34 = arith.constant dense<0.000000e+00> : vector<16xf32>
    %83 = vector.multi_reduction <add>, %82, %cst_34 [1] : vector<16x32xf32> to vector<16xf32>
    %84 = vector.shape_cast %83 : vector<16xf32> to vector<16x1xf32>
    %85 = math.log %84 : vector<16x1xf32>
    %86 = arith.addf %79, %85 : vector<16x1xf32>
    %87 = arith.mulf %62, %27 : vector<16x32xf32>
    %cst_35 = arith.constant dense<0.000000e+00> : vector<16xf32>
    %88 = vector.multi_reduction <add>, %87, %cst_35 [1] : vector<16x32xf32> to vector<16xf32>
    %89 = vector.shape_cast %88 : vector<16xf32> to vector<16x1xf32>
    %90 = arith.subf %86, %89 : vector<16x1xf32>
    %91 = arith.addf %77, %90 : vector<16x1xf32>
    %cst_36 = arith.constant dense<0xFF800000> : vector<16xf32>
    %92 = vector.multi_reduction <maximumf>, %63, %cst_36 [1] : vector<16x16xf32> to vector<16xf32>
    %93 = vector.shape_cast %92 : vector<16xf32> to vector<16x1xf32>
    %94 = vector.broadcast %93 : vector<16x1xf32> to vector<16x16xf32>
    %95 = arith.subf %63, %94 : vector<16x16xf32>
    %96 = math.exp %95 : vector<16x16xf32>
    %cst_37 = arith.constant dense<0.000000e+00> : vector<16xf32>
    %97 = vector.multi_reduction <add>, %96, %cst_37 [1] : vector<16x16xf32> to vector<16xf32>
    %98 = vector.shape_cast %97 : vector<16xf32> to vector<16x1xf32>
    %99 = math.log %98 : vector<16x1xf32>
    %100 = arith.addf %93, %99 : vector<16x1xf32>
    %101 = arith.mulf %63, %32 : vector<16x16xf32>
    %cst_38 = arith.constant dense<0.000000e+00> : vector<16xf32>
    %102 = vector.multi_reduction <add>, %101, %cst_38 [1] : vector<16x16xf32> to vector<16xf32>
    %103 = vector.shape_cast %102 : vector<16xf32> to vector<16x1xf32>
    %104 = arith.subf %100, %103 : vector<16x1xf32>
    %105 = arith.addf %91, %104 : vector<16x1xf32>
    %c0_39 = arith.constant 0 : index
    %c1 = arith.constant 1 : index
    %106 = vector.load %arg2[%c0_39, %c1] : memref<16x6xi32, #tpu.memory_space<vmem>>, vector<16x1xi32>
    %c0_40 = arith.constant 0 : index
    %c3 = arith.constant 3 : index
    %107 = vector.load %arg2[%c0_40, %c3] : memref<16x6xi32, #tpu.memory_space<vmem>>, vector<16x1xi32>
    %c0_41 = arith.constant 0 : index
    %c5 = arith.constant 5 : index
    %108 = vector.load %arg2[%c0_41, %c5] : memref<16x6xi32, #tpu.memory_space<vmem>>, vector<16x1xi32>
    %109 = tpu.iota {dimensions = array<i32: 1>} : vector<16x2xi32>
    %110 = vector.broadcast %106 : vector<16x1xi32> to vector<16x2xi32>
    %111 = arith.cmpi eq, %109, %110 : vector<16x2xi32>
    %112 = arith.extui %111 : vector<16x2xi1> to vector<16x2xi32>
    %113 = arith.sitofp %112 : vector<16x2xi32> to vector<16x2xf32>
    %114 = tpu.iota {dimensions = array<i32: 1>} : vector<16x32xi32>
    %115 = vector.broadcast %107 : vector<16x1xi32> to vector<16x32xi32>
    %116 = arith.cmpi eq, %114, %115 : vector<16x32xi32>
    %117 = arith.extui %116 : vector<16x32xi1> to vector<16x32xi32>
    %118 = arith.sitofp %117 : vector<16x32xi32> to vector<16x32xf32>
    %119 = tpu.iota {dimensions = array<i32: 1>} : vector<16x16xi32>
    %120 = vector.broadcast %108 : vector<16x1xi32> to vector<16x16xi32>
    %121 = arith.cmpi eq, %119, %120 : vector<16x16xi32>
    %122 = arith.extui %121 : vector<16x16xi1> to vector<16x16xi32>
    %123 = arith.sitofp %122 : vector<16x16xi32> to vector<16x16xf32>
    %124 = arith.truncf %113 : vector<16x2xf32> to vector<16x2xbf16>
    %cst_42 = arith.constant dense<0.000000e+00> : vector<16x32xf32>
    %125 = tpu.matmul %124, %10, %cst_42 {dimension_numbers = #tpu.dot_dimension_numbers<[1], [0], [0], [1], [0, 0, 1, 1], [], []>} : vector<16x2xbf16>, vector<2x32xbf16>, vector<16x32xf32> -> vector<16x32xf32>
    %126 = arith.truncf %118 : vector<16x32xf32> to vector<16x32xbf16>
    %cst_43 = arith.constant dense<0.000000e+00> : vector<16x32xf32>
    %127 = tpu.matmul %126, %11, %cst_43 {dimension_numbers = #tpu.dot_dimension_numbers<[1], [0], [0], [1], [0, 0, 1, 1], [], []>} : vector<16x32xbf16>, vector<32x32xbf16>, vector<16x32xf32> -> vector<16x32xf32>
    %128 = arith.truncf %125 : vector<16x32xf32> to vector<16x32xbf16>
    %c0_44 = arith.constant 0 : index
    %c128 = arith.constant 128 : index
    %129 = vector.load %arg12[%c0_44, %c128] : memref<16x192xbf16, #tpu.memory_space<vmem>>, vector<16x32xbf16>
    tpu.vector_store %arg12[%c0_44, %c128], %128 {strides = array<i32>} : memref<16x192xbf16, #tpu.memory_space<vmem>>, vector<16x32xbf16>,
    %130 = arith.truncf %127 : vector<16x32xf32> to vector<16x32xbf16>
    %c0_45 = arith.constant 0 : index
    %c160 = arith.constant 160 : index
    %131 = vector.load %arg12[%c0_45, %c160] : memref<16x192xbf16, #tpu.memory_space<vmem>>, vector<16x32xbf16>
    tpu.vector_store %arg12[%c0_45, %c160], %130 {strides = array<i32>} : memref<16x192xbf16, #tpu.memory_space<vmem>>, vector<16x32xbf16>,
    %c0_46 = arith.constant 0 : index
    %c0_47 = arith.constant 0 : index
    %132 = vector.load %arg12[%c0_46, %c0_47] : memref<16x192xbf16, #tpu.memory_space<vmem>>, vector<16x192xbf16>
    %c0_48 = arith.constant 0 : index
    %c0_49 = arith.constant 0 : index
    %133 = vector.load %arg9[%c0_48, %c0_49] : memref<192x130xbf16, #tpu.memory_space<vmem>>, vector<192x130xbf16>
    %cst_50 = arith.constant dense<0.000000e+00> : vector<16x130xf32>
    %134 = tpu.matmul %132, %133, %cst_50 {dimension_numbers = #tpu.dot_dimension_numbers<[1], [0], [0], [1], [0, 0, 1, 1], [], []>} : vector<16x192xbf16>, vector<192x130xbf16>, vector<16x130xf32> -> vector<16x130xf32>
    %c0_51 = arith.constant 0 : index
    %c0_52 = arith.constant 0 : index
    %135 = vector.load %arg10[%c0_51, %c0_52] : memref<1x130xf32, #tpu.memory_space<vmem>>, vector<1x130xf32>
    %136 = vector.broadcast %135 : vector<1x130xf32> to vector<16x130xf32>
    %137 = arith.addf %134, %136 : vector<16x130xf32>
    %138 = vector.extract_strided_slice %137 {offsets = [0, 0], sizes = [16, 64], strides = [1, 1]} : vector<16x130xf32> to vector<16x64xf32>
    %139 = vector.extract_strided_slice %137 {offsets = [0, 64], sizes = [16, 64], strides = [1, 1]} : vector<16x130xf32> to vector<16x64xf32>
    %140 = arith.negf %139 : vector<16x64xf32>
    %141 = math.exp %140 : vector<16x64xf32>
    %cst_53 = arith.constant 1.000000e+00 : f32
    %142 = vector.broadcast %cst_53 : f32 to vector<16x64xf32>
    %143 = arith.addf %142, %141 : vector<16x64xf32>
    %144 = arith.divf %142, %143 : vector<16x64xf32>
    %145 = arith.mulf %138, %144 : vector<16x64xf32>
    %146 = vector.extract_strided_slice %137 {offsets = [0, 128], sizes = [16, 2], strides = [1, 1]} : vector<16x130xf32> to vector<16x2xf32>
    %147 = arith.truncf %145 : vector<16x64xf32> to vector<16x64xbf16>
    %cst_54 = arith.constant dense<0.000000e+00> : vector<16x48xf32>
    %148 = tpu.matmul %147, %13, %cst_54 {dimension_numbers = #tpu.dot_dimension_numbers<[1], [0], [0], [1], [0, 0, 1, 1], [], []>} : vector<16x64xbf16>, vector<64x48xbf16>, vector<16x48xf32> -> vector<16x48xf32>
    %149 = vector.extract_strided_slice %148 {offsets = [0, 0], sizes = [16, 32], strides = [1, 1]} : vector<16x48xf32> to vector<16x32xf32>
    %150 = vector.extract_strided_slice %148 {offsets = [0, 32], sizes = [16, 16], strides = [1, 1]} : vector<16x48xf32> to vector<16x16xf32>
    %cst_55 = arith.constant dense<0xFF800000> : vector<16xf32>
    %151 = vector.multi_reduction <maximumf>, %146, %cst_55 [1] : vector<16x2xf32> to vector<16xf32>
    %152 = vector.shape_cast %151 : vector<16xf32> to vector<16x1xf32>
    %153 = vector.broadcast %152 : vector<16x1xf32> to vector<16x2xf32>
    %154 = arith.subf %146, %153 : vector<16x2xf32>
    %155 = math.exp %154 : vector<16x2xf32>
    %cst_56 = arith.constant dense<0.000000e+00> : vector<16xf32>
    %156 = vector.multi_reduction <add>, %155, %cst_56 [1] : vector<16x2xf32> to vector<16xf32>
    %157 = vector.shape_cast %156 : vector<16xf32> to vector<16x1xf32>
    %158 = math.log %157 : vector<16x1xf32>
    %159 = arith.addf %152, %158 : vector<16x1xf32>
    %160 = arith.mulf %146, %113 : vector<16x2xf32>
    %cst_57 = arith.constant dense<0.000000e+00> : vector<16xf32>
    %161 = vector.multi_reduction <add>, %160, %cst_57 [1] : vector<16x2xf32> to vector<16xf32>
    %162 = vector.shape_cast %161 : vector<16xf32> to vector<16x1xf32>
    %163 = arith.subf %159, %162 : vector<16x1xf32>
    %164 = arith.addf %105, %163 : vector<16x1xf32>
    %cst_58 = arith.constant dense<0xFF800000> : vector<16xf32>
    %165 = vector.multi_reduction <maximumf>, %149, %cst_58 [1] : vector<16x32xf32> to vector<16xf32>
    %166 = vector.shape_cast %165 : vector<16xf32> to vector<16x1xf32>
    %167 = vector.broadcast %166 : vector<16x1xf32> to vector<16x32xf32>
    %168 = arith.subf %149, %167 : vector<16x32xf32>
    %169 = math.exp %168 : vector<16x32xf32>
    %cst_59 = arith.constant dense<0.000000e+00> : vector<16xf32>
    %170 = vector.multi_reduction <add>, %169, %cst_59 [1] : vector<16x32xf32> to vector<16xf32>
    %171 = vector.shape_cast %170 : vector<16xf32> to vector<16x1xf32>
    %172 = math.log %171 : vector<16x1xf32>
    %173 = arith.addf %166, %172 : vector<16x1xf32>
    %174 = arith.mulf %149, %118 : vector<16x32xf32>
    %cst_60 = arith.constant dense<0.000000e+00> : vector<16xf32>
    %175 = vector.multi_reduction <add>, %174, %cst_60 [1] : vector<16x32xf32> to vector<16xf32>
    %176 = vector.shape_cast %175 : vector<16xf32> to vector<16x1xf32>
    %177 = arith.subf %173, %176 : vector<16x1xf32>
    %178 = arith.addf %164, %177 : vector<16x1xf32>
    %cst_61 = arith.constant dense<0xFF800000> : vector<16xf32>
    %179 = vector.multi_reduction <maximumf>, %150, %cst_61 [1] : vector<16x16xf32> to vector<16xf32>
    %180 = vector.shape_cast %179 : vector<16xf32> to vector<16x1xf32>
    %181 = vector.broadcast %180 : vector<16x1xf32> to vector<16x16xf32>
    %182 = arith.subf %150, %181 : vector<16x16xf32>
    %183 = math.exp %182 : vector<16x16xf32>
    %cst_62 = arith.constant dense<0.000000e+00> : vector<16xf32>
    %184 = vector.multi_reduction <add>, %183, %cst_62 [1] : vector<16x16xf32> to vector<16xf32>
    %185 = vector.shape_cast %184 : vector<16xf32> to vector<16x1xf32>
    %186 = math.log %185 : vector<16x1xf32>
    %187 = arith.addf %180, %186 : vector<16x1xf32>
    %188 = arith.mulf %150, %123 : vector<16x16xf32>
    %cst_63 = arith.constant dense<0.000000e+00> : vector<16xf32>
    %189 = vector.multi_reduction <add>, %188, %cst_63 [1] : vector<16x16xf32> to vector<16xf32>
    %190 = vector.shape_cast %189 : vector<16xf32> to vector<16x1xf32>
    %191 = arith.subf %187, %190 : vector<16x1xf32>
    %192 = arith.addf %178, %191 : vector<16x1xf32>
    %193 = arith.mulf %192, %7 : vector<16x1xf32>
    %194 = vector.shape_cast %193 : vector<16x1xf32> to vector<1x16x1xf32>
    %cst_64 = arith.constant dense<0.000000e+00> : vector<1xf32>
    %195 = vector.multi_reduction <add>, %194, %cst_64 [1, 2] : vector<1x16x1xf32> to vector<1xf32>
    %196 = vector.shape_cast %195 : vector<1xf32> to vector<1x1x1xf32>
    %197 = vector.extract %196[0, 0, 0] : f32 from vector<1x1x1xf32>
    %cst_65 = arith.constant 0.055555556 : f32
    %198 = arith.mulf %197, %cst_65 : f32
    %199 = vector.broadcast %198 : f32 to vector<1x1xf32>
    %200 = vector.shape_cast %199 : vector<1x1xf32> to vector<1x1xf32>
    %201 = vector.broadcast %200 : vector<1x1xf32> to vector<1x128xf32>
    %c0_66 = arith.constant 0 : index
    %c0_67 = arith.constant 0 : index
    %202 = vector.load %arg11[%c0_66, %c0_67] : memref<1x128xf32, #tpu.memory_space<vmem>>, vector<1x128xf32>
    tpu.vector_store %arg11[%c0_66, %c0_67], %201 {strides = array<i32>} : memref<1x128xf32, #tpu.memory_space<vmem>>, vector<1x128xf32>,
    return
  }
  func.func @transform_0(%arg0: i32) -> (i32, i32) {
    %c0_i32 = arith.constant 0 : i32
    %c0_i32_0 = arith.constant 0 : i32
    return %arg0, %c0_i32 : i32, i32
  }
  func.func @transform_1(%arg0: i32) -> (i32, i32) {
    %c0_i32 = arith.constant 0 : i32
    %c0_i32_0 = arith.constant 0 : i32
    return %arg0, %c0_i32 : i32, i32
  }
  func.func @transform_2(%arg0: i32) -> (i32, i32) {
    %c0_i32 = arith.constant 0 : i32
    %c0_i32_0 = arith.constant 0 : i32
    %c0_i32_1 = arith.constant 0 : i32
    return %c0_i32, %c0_i32_0 : i32, i32
  }
  func.func @transform_3(%arg0: i32) -> (i32, i32) {
    %c0_i32 = arith.constant 0 : i32
    %c0_i32_0 = arith.constant 0 : i32
    %c0_i32_1 = arith.constant 0 : i32
    return %c0_i32, %c0_i32_0 : i32, i32
  }
  func.func @transform_4(%arg0: i32) -> (i32, i32) {
    %c0_i32 = arith.constant 0 : i32
    %c0_i32_0 = arith.constant 0 : i32
    %c0_i32_1 = arith.constant 0 : i32
    return %c0_i32, %c0_i32_0 : i32, i32
  }
  func.func @transform_5(%arg0: i32) -> (i32, i32) {
    %c0_i32 = arith.constant 0 : i32
    %c0_i32_0 = arith.constant 0 : i32
    %c0_i32_1 = arith.constant 0 : i32
    return %c0_i32, %c0_i32_0 : i32, i32
  }
  func.func @transform_6(%arg0: i32) -> (i32, i32) {
    %c0_i32 = arith.constant 0 : i32
    %c0_i32_0 = arith.constant 0 : i32
    %c0_i32_1 = arith.constant 0 : i32
    return %c0_i32, %c0_i32_0 : i32, i32
  }
  func.func @transform_7(%arg0: i32) -> (i32, i32) {
    %c0_i32 = arith.constant 0 : i32
    %c0_i32_0 = arith.constant 0 : i32
    %c0_i32_1 = arith.constant 0 : i32
    return %c0_i32, %c0_i32_0 : i32, i32
  }
  func.func @transform_8(%arg0: i32) -> (i32, i32) {
    %c0_i32 = arith.constant 0 : i32
    %c0_i32_0 = arith.constant 0 : i32
    %c0_i32_1 = arith.constant 0 : i32
    return %c0_i32, %c0_i32_0 : i32, i32
  }
  func.func @transform_9(%arg0: i32) -> (i32, i32) {
    %c0_i32 = arith.constant 0 : i32
    %c0_i32_0 = arith.constant 0 : i32
    %c0_i32_1 = arith.constant 0 : i32
    return %c0_i32, %c0_i32_0 : i32, i32
  }
  func.func @transform_10(%arg0: i32) -> (i32, i32) {
    %c0_i32 = arith.constant 0 : i32
    %c0_i32_0 = arith.constant 0 : i32
    return %c0_i32, %arg0 : i32, i32
  }
}

</mosaic_0001>

<llo_original>
// kernel: tpu_custom_call.1
$region0: #{tpu_custom_call.1}
  #allocation0 [shape = 'u32[]', space=smem, size = 0x4, offset = 0x4, fixed_abs, tag = 'smem constant byte address 0x4 - core index']
  #allocation1 [shape = 'u32[144,128]{1,0:T(1,128)}', space=vmem, size = 0x12000, scoped, tag = 'internal scratch']
  #allocation2 [shape = 'bf16[16,192]{1,0:T(8,128)(2,1)}', space=vmem, size = 0x2000, scoped, tag = 'scratch operand']
  %s0 = inlined_call_operand.vmem [shape: bf16[32,32], index: 0, kind: input, shape index: {}]
  %s1 = inlined_call_operand.vmem [shape: s32[32,6], index: 1, kind: input, shape index: {}]
  %s2 = inlined_call_operand.vmem [shape: bf16[2,32], index: 2, kind: input, shape index: {}]
  %s3 = inlined_call_operand.vmem [shape: bf16[32,32], index: 3, kind: input, shape index: {}]
  %s4 = inlined_call_operand.vmem [shape: bf16[16,32], index: 4, kind: input, shape index: {}]
  %s5 = inlined_call_operand.vmem [shape: bf16[64,48], index: 5, kind: input, shape index: {}]
  %s6 = inlined_call_operand.vmem [shape: bf16[96,130], index: 6, kind: input, shape index: {}]
  %s7 = inlined_call_operand.vmem [shape: f32[1,130], index: 7, kind: input, shape index: {}]
  %s8 = inlined_call_operand.vmem [shape: bf16[192,130], index: 8, kind: input, shape index: {}]
  %s9 = inlined_call_operand.vmem [shape: f32[1,130], index: 9, kind: input, shape index: {}]
  %s10 = inlined_call_operand.hbm [shape: f32[1,256], index: 10, kind: output, shape index: {}]
  %s11 = sld [smem:[#allocation0]]
  $region73: #{tpu_custom_call.1} parent=0
    _
  %s13 = ssub.s32 1, %s11
  %s14 = scalar_select 0, %s13, %s11
  $region1: #{tpu_custom_call.1} parent=0
    #allocation3 [shape = 'u8[1024]{0}', space=vmem, size = 0x400, scoped, tag = 'output window, operand 0']
    #allocation4 [shape = 's32[2]{0}', space=sflag, size = 0x8, scoped, tag = 'scoped memory for tpu_custom_call.1']
    %15 = vsyncpa [#allocation4], 0
    %s16 = scalar_lea.sflag [#allocation4], 1
    %17 = vsyncpa %s16, 0
    loop: start=0, step=1, limit=4
    $region2: #{tpu_custom_call.1} parent=1 // loop_pre_header
      _
    $region3: #{tpu_custom_call.1} parent=1 // loop_header
      %s19 = sphi 0, %s23
      %p20 = scmp.ge.s32.totalorder %s19, 4
      %s29 = sphi 0, %s31
      %s32 = sphi 0, %s29
      %s33 = sphi 0, %s32
      %s49 = sphi 0, %s33
      %s55 = sphi 0, %s57
      %s58 = sphi 0, %s55
      %s59 = sphi 0, %s58
      %s75 = sphi 0, %s59
      %s79 = sphi 0, %s79
      %s81 = sphi 0, %s79
      %s82 = sphi 0, %s81
      %s96 = sphi 0, %s82
      %s100 = sphi 0, %s100
      %s102 = sphi 0, %s100
      %s103 = sphi 0, %s102
      %s117 = sphi 0, %s103
      %s121 = sphi 0, %s121
      %s123 = sphi 0, %s121
      %s124 = sphi 0, %s123
      %s138 = sphi 0, %s124
      %s142 = sphi 0, %s142
      %s144 = sphi 0, %s142
      %s145 = sphi 0, %s144
      %s159 = sphi 0, %s145
      %s163 = sphi 0, %s163
      %s165 = sphi 0, %s163
      %s166 = sphi 0, %s165
      %s180 = sphi 0, %s166
      %s184 = sphi 0, %s184
      %s186 = sphi 0, %s184
      %s187 = sphi 0, %s186
      %s201 = sphi 0, %s187
      %s205 = sphi 0, %s205
      %s207 = sphi 0, %s205
      %s208 = sphi 0, %s207
      %s222 = sphi 0, %s208
      %s226 = sphi 0, %s226
      %s228 = sphi 0, %s226
      %s229 = sphi 0, %s228
      %s243 = sphi 0, %s229
      %s249 = sphi 0, %s251
      %s252 = sphi 0, %s249
      %s253 = sphi 0, %s252
      %s269 = sphi 0, %s253
    $region4: #{tpu_custom_call.1} parent=1 // loop_header_branch
      %22 = sbr.rel (%p20) target = $region8
    $region5: #{tpu_custom_call.1} parent=1 // loop_body
      %s24 = ssub.s32 %s19, 1
      %s25 = ssub.s32 %s19, 2
      %s26 = sadd.s32 %s19, 1
      %s27 = ssub.s32 %s19, %s26
      %p28 = scmp.eq.s32.totalorder %s27, 0
      %s30 = sadd.s32 %s29, 1
      %s31 = scalar_select %p28, %s29, %s30
      %p34 = pneg %p28
      %p35 = scmp.eq.s32.totalorder %s19, 1
      %p36 = por %p34, %p35
      %p37 = scmp.ne.s32.totalorder %s29, %s32
      %p38 = scmp.eq.s32.totalorder %s19, 0
      %p39 = por %p37, %p38
      %p40 = scmp.ne.s32.totalorder %s29, %s32
      %p41 = scmp.eq.s32.totalorder %s24, 1
      %p42 = por %p40, %p41
      %p43 = scmp.ne.s32.totalorder %s32, %s33
      %p44 = scmp.eq.s32.totalorder %s24, 0
      %p45 = por %p43, %p44
      %p46 = scmp.ne.s32.totalorder %s32, %s33
      %p47 = scmp.eq.s32.totalorder %s25, 1
      %p48 = por %p46, %p47
      %p50 = scmp.ne.s32.totalorder %s33, %s49
      %p51 = scmp.eq.s32.totalorder %s25, 0
      %p52 = por %p50, %p51
      %s53 = ssub.s32 %s19, %s26
      %p54 = scmp.eq.s32.totalorder %s53, 0
      %s56 = sadd.s32 %s55, 1
      %s57 = scalar_select %p54, %s55, %s56
      %p60 = pneg %p54
      %p61 = scmp.eq.s32.totalorder %s19, 1
      %p62 = por %p60, %p61
      %p63 = scmp.ne.s32.totalorder %s55, %s58
      %p64 = scmp.eq.s32.totalorder %s19, 0
      %p65 = por %p63, %p64
      %p66 = scmp.ne.s32.totalorder %s55, %s58
      %p67 = scmp.eq.s32.totalorder %s24, 1
      %p68 = por %p66, %p67
      %p69 = scmp.ne.s32.totalorder %s58, %s59
      %p70 = scmp.eq.s32.totalorder %s24, 0
      %p71 = por %p69, %p70
      %p72 = scmp.ne.s32.totalorder %s58, %s59
      %p73 = scmp.eq.s32.totalorder %s25, 1
      %p74 = por %p72, %p73
      %p76 = scmp.ne.s32.totalorder %s59, %s75
      %p77 = scmp.eq.s32.totalorder %s25, 0
      %p78 = por %p76, %p77
      %s80 = sadd.s32 %s79, 1
      %p83 = scmp.eq.s32.totalorder %s19, 1
      %p84 = scmp.ne.s32.totalorder %s79, %s81
      %p85 = scmp.eq.s32.totalorder %s19, 0
      %p86 = por %p84, %p85
      %p87 = scmp.ne.s32.totalorder %s79, %s81
      %p88 = scmp.eq.s32.totalorder %s24, 1
      %p89 = por %p87, %p88
      %p90 = scmp.ne.s32.totalorder %s81, %s82
      %p91 = scmp.eq.s32.totalorder %s24, 0
      %p92 = por %p90, %p91
      %p93 = scmp.ne.s32.totalorder %s81, %s82
      %p94 = scmp.eq.s32.totalorder %s25, 1
      %p95 = por %p93, %p94
      %p97 = scmp.ne.s32.totalorder %s82, %s96
      %p98 = scmp.eq.s32.totalorder %s25, 0
      %p99 = por %p97, %p98
      %s101 = sadd.s32 %s100, 1
      %p104 = scmp.eq.s32.totalorder %s19, 1
      %p105 = scmp.ne.s32.totalorder %s100, %s102
      %p106 = scmp.eq.s32.totalorder %s19, 0
      %p107 = por %p105, %p106
      %p108 = scmp.ne.s32.totalorder %s100, %s102
      %p109 = scmp.eq.s32.totalorder %s24, 1
      %p110 = por %p108, %p109
      %p111 = scmp.ne.s32.totalorder %s102, %s103
      %p112 = scmp.eq.s32.totalorder %s24, 0
      %p113 = por %p111, %p112
      %p114 = scmp.ne.s32.totalorder %s102, %s103
      %p115 = scmp.eq.s32.totalorder %s25, 1
      %p116 = por %p114, %p115
      %p118 = scmp.ne.s32.totalorder %s103, %s117
      %p119 = scmp.eq.s32.totalorder %s25, 0
      %p120 = por %p118, %p119
      %s122 = sadd.s32 %s121, 1
      %p125 = scmp.eq.s32.totalorder %s19, 1
      %p126 = scmp.ne.s32.totalorder %s121, %s123
      %p127 = scmp.eq.s32.totalorder %s19, 0
      %p128 = por %p126, %p127
      %p129 = scmp.ne.s32.totalorder %s121, %s123
      %p130 = scmp.eq.s32.totalorder %s24, 1
      %p131 = por %p129, %p130
      %p132 = scmp.ne.s32.totalorder %s123, %s124
      %p133 = scmp.eq.s32.totalorder %s24, 0
      %p134 = por %p132, %p133
      %p135 = scmp.ne.s32.totalorder %s123, %s124
      %p136 = scmp.eq.s32.totalorder %s25, 1
      %p137 = por %p135, %p136
      %p139 = scmp.ne.s32.totalorder %s124, %s138
      %p140 = scmp.eq.s32.totalorder %s25, 0
      %p141 = por %p139, %p140
      %s143 = sadd.s32 %s142, 1
      %p146 = scmp.eq.s32.totalorder %s19, 1
      %p147 = scmp.ne.s32.totalorder %s142, %s144
      %p148 = scmp.eq.s32.totalorder %s19, 0
      %p149 = por %p147, %p148
      %p150 = scmp.ne.s32.totalorder %s142, %s144
      %p151 = scmp.eq.s32.totalorder %s24, 1
      %p152 = por %p150, %p151
      %p153 = scmp.ne.s32.totalorder %s144, %s145
      %p154 = scmp.eq.s32.totalorder %s24, 0
      %p155 = por %p153, %p154
      %p156 = scmp.ne.s32.totalorder %s144, %s145
      %p157 = scmp.eq.s32.totalorder %s25, 1
      %p158 = por %p156, %p157
      %p160 = scmp.ne.s32.totalorder %s145, %s159
      %p161 = scmp.eq.s32.totalorder %s25, 0
      %p162 = por %p160, %p161
      %s164 = sadd.s32 %s163, 1
      %p167 = scmp.eq.s32.totalorder %s19, 1
      %p168 = scmp.ne.s32.totalorder %s163, %s165
      %p169 = scmp.eq.s32.totalorder %s19, 0
      %p170 = por %p168, %p169
      %p171 = scmp.ne.s32.totalorder %s163, %s165
      %p172 = scmp.eq.s32.totalorder %s24, 1
      %p173 = por %p171, %p172
      %p174 = scmp.ne.s32.totalorder %s165, %s166
      %p175 = scmp.eq.s32.totalorder %s24, 0
      %p176 = por %p174, %p175
      %p177 = scmp.ne.s32.totalorder %s165, %s166
      %p178 = scmp.eq.s32.totalorder %s25, 1
      %p179 = por %p177, %p178
      %p181 = scmp.ne.s32.totalorder %s166, %s180
      %p182 = scmp.eq.s32.totalorder %s25, 0
      %p183 = por %p181, %p182
      %s185 = sadd.s32 %s184, 1
      %p188 = scmp.eq.s32.totalorder %s19, 1
      %p189 = scmp.ne.s32.totalorder %s184, %s186
      %p190 = scmp.eq.s32.totalorder %s19, 0
      %p191 = por %p189, %p190
      %p192 = scmp.ne.s32.totalorder %s184, %s186
      %p193 = scmp.eq.s32.totalorder %s24, 1
      %p194 = por %p192, %p193
      %p195 = scmp.ne.s32.totalorder %s186, %s187
      %p196 = scmp.eq.s32.totalorder %s24, 0
      %p197 = por %p195, %p196
      %p198 = scmp.ne.s32.totalorder %s186, %s187
      %p199 = scmp.eq.s32.totalorder %s25, 1
      %p200 = por %p198, %p199
      %p202 = scmp.ne.s32.totalorder %s187, %s201
      %p203 = scmp.eq.s32.totalorder %s25, 0
      %p204 = por %p202, %p203
      %s206 = sadd.s32 %s205, 1
      %p209 = scmp.eq.s32.totalorder %s19, 1
      %p210 = scmp.ne.s32.totalorder %s205, %s207
      %p211 = scmp.eq.s32.totalorder %s19, 0
      %p212 = por %p210, %p211
      %p213 = scmp.ne.s32.totalorder %s205, %s207
      %p214 = scmp.eq.s32.totalorder %s24, 1
      %p215 = por %p213, %p214
      %p216 = scmp.ne.s32.totalorder %s207, %s208
      %p217 = scmp.eq.s32.totalorder %s24, 0
      %p218 = por %p216, %p217
      %p219 = scmp.ne.s32.totalorder %s207, %s208
      %p220 = scmp.eq.s32.totalorder %s25, 1
      %p221 = por %p219, %p220
      %p223 = scmp.ne.s32.totalorder %s208, %s222
      %p224 = scmp.eq.s32.totalorder %s25, 0
      %p225 = por %p223, %p224
      %s227 = sadd.s32 %s226, 1
      %p230 = scmp.eq.s32.totalorder %s19, 1
      %p231 = scmp.ne.s32.totalorder %s226, %s228
      %p232 = scmp.eq.s32.totalorder %s19, 0
      %p233 = por %p231, %p232
      %p234 = scmp.ne.s32.totalorder %s226, %s228
      %p235 = scmp.eq.s32.totalorder %s24, 1
      %p236 = por %p234, %p235
      %p237 = scmp.ne.s32.totalorder %s228, %s229
      %p238 = scmp.eq.s32.totalorder %s24, 0
      %p239 = por %p237, %p238
      %p240 = scmp.ne.s32.totalorder %s228, %s229
      %p241 = scmp.eq.s32.totalorder %s25, 1
      %p242 = por %p240, %p241
      %p244 = scmp.ne.s32.totalorder %s229, %s243
      %p245 = scmp.eq.s32.totalorder %s25, 0
      %p246 = por %p244, %p245
      %s247 = ssub.s32 %s19, %s26
      %p248 = scmp.eq.s32.totalorder %s247, 0
      %s250 = sadd.s32 %s249, 1
      %s251 = scalar_select %p248, %s249, %s250
      %p254 = pneg %p248
      %p255 = scmp.eq.s32.totalorder %s19, 1
      %p256 = por %p254, %p255
      %p257 = scmp.ne.s32.totalorder %s249, %s252
      %p258 = scmp.eq.s32.totalorder %s19, 0
      %p259 = por %p257, %p258
      %p260 = scmp.ne.s32.totalorder %s249, %s252
      %p261 = scmp.eq.s32.totalorder %s24, 1
      %p262 = por %p260, %p261
      %p263 = scmp.ne.s32.totalorder %s252, %s253
      %p264 = scmp.eq.s32.totalorder %s24, 0
      %p265 = por %p263, %p264
      %p266 = scmp.ne.s32.totalorder %s252, %s253
      %p267 = scmp.eq.s32.totalorder %s25, 1
      %p268 = por %p266, %p267
      %p270 = scmp.ne.s32.totalorder %s253, %s269
      %p271 = scmp.eq.s32.totalorder %s25, 0
      %p272 = por %p270, %p271
      %p273 = scmp.le.s32.totalorder 1, %s19
      %p274 = scmp.lt.s32.totalorder %s19, 3
      %p275 = pnand %p273, %p274
      %p276 = pneg %p275
      // Predicated region
      $region9: #{tpu_custom_call.1} parent=5 // pred_check
        _
      $region10: #{tpu_custom_call.1} parent=5 // pred_check_branch
        %278 = sbr.rel (%p275) target = $region12
      $region11: #{tpu_custom_call.1} parent=5 // pred_region
        %s279 = ssub.s32 %s19, 1
        // Predicated region
        $region13: #{tpu_custom_call.1} parent=11 // pred_check
          %p280 = pneg %p92
        $region14: #{tpu_custom_call.1} parent=11 // pred_check_branch
          %282 = sbr.rel (%p280) target = $region16
        $region15: #{tpu_custom_call.1} parent=11 // pred_region
          _
        $region16: #{tpu_custom_call.1} parent=11 // pred_fallthru
          _
        // Predicated region
        $region17: #{tpu_custom_call.1} parent=11 // pred_check
          %p283 = pneg %p113
        $region18: #{tpu_custom_call.1} parent=11 // pred_check_branch
          %285 = sbr.rel (%p283) target = $region20
        $region19: #{tpu_custom_call.1} parent=11 // pred_region
          _
        $region20: #{tpu_custom_call.1} parent=11 // pred_fallthru
          _
        // Predicated region
        $region21: #{tpu_custom_call.1} parent=11 // pred_check
          %p286 = pneg %p134
        $region22: #{tpu_custom_call.1} parent=11 // pred_check_branch
          %288 = sbr.rel (%p286) target = $region24
        $region23: #{tpu_custom_call.1} parent=11 // pred_region
          _
        $region24: #{tpu_custom_call.1} parent=11 // pred_fallthru
          _
        // Predicated region
        $region25: #{tpu_custom_call.1} parent=11 // pred_check
          %p289 = pneg %p155
        $region26: #{tpu_custom_call.1} parent=11 // pred_check_branch
          %291 = sbr.rel (%p289) target = $region28
        $region27: #{tpu_custom_call.1} parent=11 // pred_region
          _
        $region28: #{tpu_custom_call.1} parent=11 // pred_fallthru
          _
        // Predicated region
        $region29: #{tpu_custom_call.1} parent=11 // pred_check
          %p292 = pneg %p176
        $region30: #{tpu_custom_call.1} parent=11 // pred_check_branch
          %294 = sbr.rel (%p292) target = $region32
        $region31: #{tpu_custom_call.1} parent=11 // pred_region
          _
        $region32: #{tpu_custom_call.1} parent=11 // pred_fallthru
          _
        // Predicated region
        $region33: #{tpu_custom_call.1} parent=11 // pred_check
          %p295 = pneg %p197
        $region34: #{tpu_custom_call.1} parent=11 // pred_check_branch
          %297 = sbr.rel (%p295) target = $region36
        $region35: #{tpu_custom_call.1} parent=11 // pred_region
          _
        $region36: #{tpu_custom_call.1} parent=11 // pred_fallthru
          _
        // Predicated region
        $region37: #{tpu_custom_call.1} parent=11 // pred_check
          %p298 = pneg %p218
        $region38: #{tpu_custom_call.1} parent=11 // pred_check_branch
          %300 = sbr.rel (%p298) target = $region40
        $region39: #{tpu_custom_call.1} parent=11 // pred_region
          _
        $region40: #{tpu_custom_call.1} parent=11 // pred_fallthru
          _
        // Predicated region
        $region41: #{tpu_custom_call.1} parent=11 // pred_check
          %p301 = pneg %p239
        $region42: #{tpu_custom_call.1} parent=11 // pred_check_branch
          %303 = sbr.rel (%p301) target = $region44
        $region43: #{tpu_custom_call.1} parent=11 // pred_region
          _
        $region44: #{tpu_custom_call.1} parent=11 // pred_fallthru
          _
      $region12: #{tpu_custom_call.1} parent=5 // pred_fallthru
        _
      %p304 = scmp.lt.s32.totalorder %s19, 2
      // Predicated region
      $region45: #{tpu_custom_call.1} parent=5 // pred_check
        %p305 = pneg %p304
      $region46: #{tpu_custom_call.1} parent=5 // pred_check_branch
        %307 = sbr.rel (%p305) target = $region48
      $region47: #{tpu_custom_call.1} parent=5 // pred_region
        // Predicated region
        $region49: #{tpu_custom_call.1} parent=47 // pred_check
          %p308 = pneg %p39
        $region50: #{tpu_custom_call.1} parent=47 // pred_check_branch
          %310 = sbr.rel (%p308) target = $region52
        $region51: #{tpu_custom_call.1} parent=47 // pred_region
          %s311 = smul.u32 2, %s19
          %p312 = scmp.lt.s32.totalorder %s311, 3
          %s313 = scalar_select %p312, %s311, 3
          %s314 = smul.addr %s313, 4
          %s315 = scalar_lea.vmem %s0, %s314
          %s316 = smul.u32 2, %s19
        $region52: #{tpu_custom_call.1} parent=47 // pred_fallthru
          _
        // Predicated region
        $region53: #{tpu_custom_call.1} parent=47 // pred_check
          %p317 = pneg %p65
        $region54: #{tpu_custom_call.1} parent=47 // pred_check_branch
          %319 = sbr.rel (%p317) target = $region56
        $region55: #{tpu_custom_call.1} parent=47 // pred_region
          %s320 = smul.u32 2, %s19
          %p321 = scmp.lt.s32.totalorder %s320, 3
          %s322 = scalar_select %p321, %s320, 3
          %s323 = smul.addr %s322, 8
          %s324 = scalar_lea.vmem %s1, %s323
          %s325 = smul.u32 2, %s19
        $region56: #{tpu_custom_call.1} parent=47 // pred_fallthru
          _
      $region48: #{tpu_custom_call.1} parent=5 // pred_fallthru
        _
      %p326 = scmp.le.s32.totalorder 1, %s19
      %p327 = scmp.lt.s32.totalorder %s19, 3
      %p328 = pnand %p326, %p327
      %p329 = pneg %p328
      // Predicated region
      $region57: #{tpu_custom_call.1} parent=5 // pred_check
        _
      $region58: #{tpu_custom_call.1} parent=5 // pred_check_branch
        %331 = sbr.rel (%p328) target = $region60
      $region59: #{tpu_custom_call.1} parent=5 // pred_region
        %s332 = ssub.s32 %s19, 1
        %s333 = smul.u32 2, %s24
        %p334 = scmp.lt.s32.totalorder %s333, 3
        %s335 = scalar_select %p334, %s333, 3
        %s336 = smul.addr %s335, 4
        %s337 = scalar_lea.vmem %s0, %s336
        %p338 = pneg %p45
        %p339 = pneg %p42
        %s340 = smul.u32 2, %s24
        %p341 = scmp.lt.s32.totalorder %s340, 3
        %s342 = scalar_select %p341, %s340, 3
        %s343 = smul.addr %s342, 8
        %s344 = scalar_lea.vmem %s1, %s343
        %p345 = pneg %p71
        %p346 = pneg %p68
        %p347 = pneg %p92
        %p348 = pneg %p89
        %p349 = pneg %p113
        %p350 = pneg %p110
        %p351 = pneg %p134
        %p352 = pneg %p131
        %p353 = pneg %p155
        %p354 = pneg %p152
        %p355 = pneg %p176
        %p356 = pneg %p173
        %p357 = pneg %p197
        %p358 = pneg %p194
        %p359 = pneg %p218
        %p360 = pneg %p215
        %p361 = pneg %p239
        %p362 = pneg %p236
        %p363 = pneg %p265
        %p364 = pneg %p262
        %s365 = sand.u32 %s252, 1
        %s366 = scalar_lea.sflag [#allocation4], %s365
        %s367 = sand.u32 %s252, 1
        %s368 = scalar_lea.vmem [#allocation3], %s367
        %s369 = smul.u32 2, %s24
        %p370 = scmp.lt.s32.totalorder %s369, 3
        %s371 = scalar_select %p370, %s369, 3
        %s372 = smul.addr %s371, 4
        %s373 = scalar_lea.vmem %s0, %s372
        %s374 = smul.u32 2, %s24
        %s375 = smul.u32 2, %s24
        %p376 = scmp.lt.s32.totalorder %s375, 3
        %s377 = scalar_select %p376, %s375, 3
        %s378 = smul.addr %s377, 8
        %s379 = scalar_lea.vmem %s1, %s378
        %s380 = smul.u32 2, %s24
        %s382 = smul.u32 %s24, 16
        %v383 = vlaneseq
        %v384 = vshrl.u32 %v383, 7
        %v385 = vadd.s32 %v384, 8
        %v386 = vstv %s382
        %v387 = vadd.s32 %v386, %v384
        %v388 = vadd.s32 %v386, %v385
        %vm389 = vcmp.lt.s32.totalorder %v387, 18
        %vm390 = vcmp.lt.s32.totalorder %v388, 18
        %v391 = vsel %vm389, 1, 0
        %v392 = vsel %vm390, 1, 0
        %v393 = vcvt.s32.f32 %v391
        %v394 = vcvt.s32.f32 %v392
        %v395 = vld [vmem:[%s373] sm:$0xf]
        %v396 = vld [vmem:[%s373 + $0x4] sm:$0xf]
        %vm397 = vcmask 257024
        %398 = vst.msk [vmem:[#allocation2] sm:$0xf] %vm397, %v395
        %399 = vst.msk [vmem:[#allocation2 + $0x8] sm:$0xf] %vm397, %v396
        %v400 = vld [vmem:[%s2] sm:$0x1]
        %v401 = vld [vmem:[%s3] sm:$0xf]
        %v402 = vld [vmem:[%s3 + $0x4] sm:$0xf]
        %v403 = vld [vmem:[%s3 + $0x8] sm:$0xf]
        %v404 = vld [vmem:[%s3 + $0xc] sm:$0xf]
        %v405 = vld [vmem:[%s4] sm:$0xf]
        %v406 = vld [vmem:[%s4 + $0x4] sm:$0xf]
        %v407 = vld [vmem:[%s5] sm:$0xf]
        %v408 = vld [vmem:[%s5 + $0x4] sm:$0xf]
        %v409 = vld [vmem:[%s5 + $0x8] sm:$0xf]
        %v410 = vld [vmem:[%s5 + $0xc] sm:$0xf]
        %v411 = vld [vmem:[%s5 + $0x10] sm:$0xf]
        %v412 = vld [vmem:[%s5 + $0x14] sm:$0xf]
        %v413 = vld [vmem:[%s5 + $0x18] sm:$0xf]
        %v414 = vld [vmem:[%s5 + $0x1c] sm:$0xf]
        %v415 = vld [vmem:[%s379] sm:$0xff]
        %v416 = vld [vmem:[%s379 + $0x8] sm:$0xff]
        %v417 = vlaneseq
        %v418 = vand.u32 %v417, 127
        %419 = vset.pattern.permute.xlu0 0
        %420 = vperm.xlu0 %419, %v415
        %v421 = vpop.permute.xlu0 %420
        %422 = vset.pattern.permute.xlu0 0
        %423 = vperm.xlu0 %422, %v416
        %v424 = vpop.permute.xlu0 %423
        %vm425 = vcmp.eq.s32.totalorder %v418, %v421
        %vm426 = vcmp.eq.s32.totalorder %v418, %v424
        %v427 = vsel %vm425, 1, 0
        %v428 = vsel %vm426, 1, 0
        %v429 = vcvt.s32.f32 %v427
        %v430 = vcvt.s32.f32 %v428
        %431 = vset.pattern.permute.xlu0 2
        %432 = vperm.xlu0 %431, %v415
        %v433 = vpop.permute.xlu0 %432
        %434 = vset.pattern.permute.xlu0 2
        %435 = vperm.xlu0 %434, %v416
        %v436 = vpop.permute.xlu0 %435
        %vm437 = vcmp.eq.s32.totalorder %v418, %v433
        %vm438 = vcmp.eq.s32.totalorder %v418, %v436
        %v439 = vsel %vm437, 1, 0
        %v440 = vsel %vm438, 1, 0
        %v441 = vcvt.s32.f32 %v439
        %v442 = vcvt.s32.f32 %v440
        %443 = vset.pattern.permute.xlu0 4
        %444 = vperm.xlu0 %443, %v415
        %v445 = vpop.permute.xlu0 %444
        %446 = vset.pattern.permute.xlu0 4
        %447 = vperm.xlu0 %446, %v416
        %v448 = vpop.permute.xlu0 %447
        %vm449 = vcmp.eq.s32.totalorder %v418, %v445
        %vm450 = vcmp.eq.s32.totalorder %v418, %v448
        %v451 = vsel %vm449, 1, 0
        %v452 = vsel %vm450, 1, 0
        %v453 = vcvt.s32.f32 %v451
        %v454 = vcvt.s32.f32 %v452
        %v455 = vpack.c.bf16 %v430, %v429
        %vm456 = vcmask 15360
        %v458 = vsel %vm456, %v455, 0
        %vm460 = vcmask 1040384
        %v462 = vsel %vm460, %v400, 0
        %464 = vmatprep.subr.bf16.mxu0 0
        %465 = vmatpush1.bf16.msra.mxu0 0
        %466 = vmatprep.subr.bf16.mxu0 0
        %467 = vmatpush1.bf16.msra.mxu0 0
        %468 = vmatprep.subr.bf16.mxu0 0
        %469 = vmatpush1.bf16.msra.mxu0 0
        %470 = vmatprep.subr.bf16.mxu0 0
        %471 = vmatpush1.bf16.msra.mxu0 0
        %472 = vmatprep.subr.bf16.mxu0 0
        %473 = vmatpush1.bf16.msra.mxu0 0
        %474 = vmatprep.subr.bf16.mxu0 0
        %475 = vmatpush1.bf16.msra.mxu0 0
        %476 = vmatprep.subr.bf16.mxu0 0
        %477 = vmatpush1.bf16.msra.mxu0 0
        %478 = vmatprep.subr.bf16.mxu0 0
        %479 = vmatpush1.bf16.msra.mxu0 %v462
        %480 = vmatprep.subr.bf16.mxu0 0
        %481 = vmatpush2.bf16.msra.mxu0 0
        %482 = vmatprep.subr.bf16.mxu0 0
        %483 = vmatpush2.bf16.msra.mxu0 0
        %484 = vmatprep.subr.bf16.mxu0 0
        %485 = vmatpush2.bf16.msra.mxu0 0
        %486 = vmatprep.subr.bf16.mxu0 0
        %487 = vmatpush2.bf16.msra.mxu0 0
        %488 = vmatprep.subr.bf16.mxu0 0
        %489 = vmatpush2.bf16.msra.mxu0 0
        %490 = vmatprep.subr.bf16.mxu0 0
        %491 = vmatpush2.bf16.msra.mxu0 0
        %492 = vmatprep.subr.bf16.mxu0 0
        %493 = vmatpush2.bf16.msra.mxu0 0
        %494 = vmatprep.subr.bf16.mxu0 0
        %495 = vmatpush2.bf16.msra.mxu0 0
        %496 = vmatprep.mubr.bf16.mxu0 0
        %497 = vmatmul.mubr.bf16.gmra.mxu0 %v458
        %v498 = vpop.f32.mrf.mxu0
        %v499 = vadd.f32 0.0, %v498
        %v500 = vpop.f32.mrf.mxu0
        %v501 = vpop.f32.mrf.mxu0
        %v502 = vadd.f32 0.0, %v501
        %v503 = vpop.f32.mrf.mxu0
        %504 = vdwg.mxu0
        %v505 = vpack.c.bf16 %v442, %v441
        %v510 = vunpack.c.l.b16 %v401
        %v511 = vunpack.c.l.b16 %v402
        %v512 = vunpack.c.l.b16 %v403
        %v513 = vunpack.c.l.b16 %v404
        %v514 = vpack.c.b16 %v511, %v510
        %v515 = vpack.c.b16 %v513, %v512
        %vm518 = vcmask 261120
        %v520 = vsel %vm518, %v505, 0
        %522 = vmatprep.subr.bf16.mxu0 0
        %523 = vmatpush1.bf16.msra.mxu0 0
        %524 = vmatprep.subr.bf16.mxu0 0
        %525 = vmatpush1.bf16.msra.mxu0 0
        %526 = vmatprep.subr.bf16.mxu0 0
        %527 = vmatpush1.bf16.msra.mxu0 0
        %528 = vmatprep.subr.bf16.mxu0 0
        %529 = vmatpush1.bf16.msra.mxu0 0
        %530 = vmatprep.subr.bf16.mxu0 0
        %531 = vmatpush1.bf16.msra.mxu0 0
        %532 = vmatprep.subr.bf16.mxu0 0
        %533 = vmatpush1.bf16.msra.mxu0 0
        %534 = vmatprep.subr.bf16.mxu0 0
        %535 = vmatpush1.bf16.msra.mxu0 %v515
        %536 = vmatprep.subr.bf16.mxu0 0
        %537 = vmatpush1.bf16.msra.mxu0 %v514
        %538 = vmatprep.subr.bf16.mxu0 0
        %539 = vmatpush2.bf16.msra.mxu0 0
        %540 = vmatprep.subr.bf16.mxu0 0
        %541 = vmatpush2.bf16.msra.mxu0 0
        %542 = vmatprep.subr.bf16.mxu0 0
        %543 = vmatpush2.bf16.msra.mxu0 0
        %544 = vmatprep.subr.bf16.mxu0 0
        %545 = vmatpush2.bf16.msra.mxu0 0
        %546 = vmatprep.subr.bf16.mxu0 0
        %547 = vmatpush2.bf16.msra.mxu0 0
        %548 = vmatprep.subr.bf16.mxu0 0
        %549 = vmatpush2.bf16.msra.mxu0 0
        %550 = vmatprep.subr.bf16.mxu0 0
        %551 = vmatpush2.bf16.msra.mxu0 0
        %552 = vmatprep.subr.bf16.mxu0 0
        %553 = vmatpush2.bf16.msra.mxu0 0
        %554 = vmatprep.mubr.bf16.mxu0 0
        %555 = vmatmul.mubr.bf16.gmra.mxu0 %v520
        %v556 = vpop.f32.mrf.mxu0
        %v557 = vadd.f32 0.0, %v556
        %v558 = vpop.f32.mrf.mxu0
        %v559 = vpop.f32.mrf.mxu0
        %v560 = vadd.f32 0.0, %v559
        %v561 = vpop.f32.mrf.mxu0
        %562 = vdwg.mxu0
        %v563 = vpack.c.bf16 %v502, %v499
        %v565 = vunpack.c.l.b16 %v563
        %v566 = vunpack.c.h.b16 %v563
        %v567 = vpack.c.b16 %v565, %v565
        %v568 = vpack.c.b16 %v566, %v566
        %569 = vrot.lane.b32.xlu0 %v567, 32
        %v570 = vpop.permute.xlu0 %569
        %571 = vrot.lane.b32.xlu0 %v568, 32
        %v572 = vpop.permute.xlu0 %571
        %vm575 = vcmask 519424
        %576 = vst.msk [vmem:[#allocation2] sm:$0xf] %vm575, %v570
        %577 = vst.msk [vmem:[#allocation2 + $0x8] sm:$0xf] %vm575, %v572
        %v578 = vpack.c.bf16 %v560, %v557
        %v580 = vunpack.c.l.b16 %v578
        %v581 = vunpack.c.h.b16 %v578
        %v582 = vpack.c.b16 %v580, %v580
        %v583 = vpack.c.b16 %v581, %v581
        %584 = vrot.lane.b32.xlu0 %v582, 64
        %v585 = vpop.permute.xlu0 %584
        %586 = vrot.lane.b32.xlu0 %v583, 64
        %v587 = vpop.permute.xlu0 %586
        %vm590 = vcmask 781824
        %591 = vst.msk [vmem:[#allocation2] sm:$0xf] %vm590, %v585
        %592 = vst.msk [vmem:[#allocation2 + $0x8] sm:$0xf] %vm590, %v587
        %v593 = vpack.c.bf16 %v454, %v453
        %v596 = vunpack.c.l.b16 %v405
        %v597 = vunpack.c.l.b16 %v406
        %v598 = vpack.c.b16 %v597, %v596
        %vm600 = vcmask 130048
        %v602 = vsel %vm600, %v593, 0
        %604 = vmatprep.subr.bf16.mxu0 0
        %605 = vmatpush1.bf16.msra.mxu0 0
        %606 = vmatprep.subr.bf16.mxu0 0
        %607 = vmatpush1.bf16.msra.mxu0 0
        %608 = vmatprep.subr.bf16.mxu0 0
        %609 = vmatpush1.bf16.msra.mxu0 0
        %610 = vmatprep.subr.bf16.mxu0 0
        %611 = vmatpush1.bf16.msra.mxu0 0
        %612 = vmatprep.subr.bf16.mxu0 0
        %613 = vmatpush1.bf16.msra.mxu0 0
        %614 = vmatprep.subr.bf16.mxu0 0
        %615 = vmatpush1.bf16.msra.mxu0 0
        %616 = vmatprep.subr.bf16.mxu0 0
        %617 = vmatpush1.bf16.msra.mxu0 0
        %618 = vmatprep.subr.bf16.mxu0 0
        %619 = vmatpush1.bf16.msra.mxu0 %v598
        %620 = vmatprep.subr.bf16.mxu0 0
        %621 = vmatpush2.bf16.msra.mxu0 0
        %622 = vmatprep.subr.bf16.mxu0 0
        %623 = vmatpush2.bf16.msra.mxu0 0
        %624 = vmatprep.subr.bf16.mxu0 0
        %625 = vmatpush2.bf16.msra.mxu0 0
        %626 = vmatprep.subr.bf16.mxu0 0
        %627 = vmatpush2.bf16.msra.mxu0 0
        %628 = vmatprep.subr.bf16.mxu0 0
        %629 = vmatpush2.bf16.msra.mxu0 0
        %630 = vmatprep.subr.bf16.mxu0 0
        %631 = vmatpush2.bf16.msra.mxu0 0
        %632 = vmatprep.subr.bf16.mxu0 0
        %633 = vmatpush2.bf16.msra.mxu0 0
        %634 = vmatprep.subr.bf16.mxu0 0
        %635 = vmatpush2.bf16.msra.mxu0 0
        %636 = vmatprep.mubr.bf16.mxu0 0
        %637 = vmatmul.mubr.bf16.gmra.mxu0 %v602
        %v638 = vpop.f32.mrf.mxu0
        %v639 = vadd.f32 0.0, %v638
        %v640 = vpop.f32.mrf.mxu0
        %v641 = vpop.f32.mrf.mxu0
        %v642 = vadd.f32 0.0, %v641
        %v643 = vpop.f32.mrf.mxu0
        %644 = vdwg.mxu0
        %v645 = vpack.c.bf16 %v642, %v639
        %v647 = vunpack.c.l.b16 %v645
        %v648 = vunpack.c.h.b16 %v645
        %v649 = vpack.c.b16 %v647, %v647
        %v650 = vpack.c.b16 %v648, %v648
        %651 = vrot.lane.b32.xlu0 %v649, 96
        %v652 = vpop.permute.xlu0 %651
        %653 = vrot.lane.b32.xlu0 %v650, 96
        %v654 = vpop.permute.xlu0 %653
        %vm657 = vcmask 1044224
        %658 = vst.msk [vmem:[#allocation2] sm:$0xf] %vm657, %v652
        %659 = vst.msk [vmem:[#allocation2 + $0x8] sm:$0xf] %vm657, %v654
        %v660 = vld [vmem:[#allocation2] sm:$0xf]
        %v661 = vld [vmem:[#allocation2 + $0x8] sm:$0xf]
        %v662 = vld [vmem:[%s6] sm:$0xff]
        %v663 = vld [vmem:[%s6 + $0x8] sm:$0xff]
        %v664 = vld [vmem:[%s6 + $0x10] sm:$0xff]
        %v665 = vld [vmem:[%s6 + $0x18] sm:$0xff]
        %v666 = vld [vmem:[%s6 + $0x20] sm:$0xff]
        %v667 = vld [vmem:[%s6 + $0x28] sm:$0xff]
        %v668 = vld [vmem:[%s6 + $0x30] sm:$0xff]
        %v669 = vld [vmem:[%s6 + $0x38] sm:$0xff]
        %v670 = vld [vmem:[%s6 + $0x40] sm:$0xff]
        %v671 = vld [vmem:[%s6 + $0x48] sm:$0xff]
        %v672 = vld [vmem:[%s6 + $0x50] sm:$0xff]
        %v673 = vld [vmem:[%s6 + $0x58] sm:$0xff]
        %v674 = vld [vmem:[%s7] sm:$0x3]
        %v676 = vlaneseq
        %v677 = vshrl.u32 %v676, 7
        %v678 = vsub.s32 0, %v677
        %v679 = vrot.slane %v674, %v678
        %v680 = vlaneseq
        %v681 = vshrl.u32 %v680, 7
        %v682 = vsub.s32 1, %v681
        %v683 = vrot.slane %v674, %v682
        %v688 = vunpack.c.l.b16 %v660
        %v689 = vunpack.c.l.b16 %v661
        %v690 = vpack.c.b16 %v689, %v688
        %v703 = vunpack.c.l.b16 %v662
        %v704 = vunpack.c.h.b16 %v662
        %v705 = vunpack.c.l.b16 %v663
        %v706 = vunpack.c.h.b16 %v663
        %v707 = vunpack.c.l.b16 %v664
        %v708 = vunpack.c.h.b16 %v664
        %v709 = vunpack.c.l.b16 %v665
        %v710 = vunpack.c.h.b16 %v665
        %v711 = vunpack.c.l.b16 %v666
        %v712 = vunpack.c.h.b16 %v666
        %v713 = vunpack.c.l.b16 %v667
        %v714 = vunpack.c.h.b16 %v667
        %v715 = vunpack.c.l.b16 %v668
        %v716 = vunpack.c.h.b16 %v668
        %v717 = vunpack.c.l.b16 %v669
        %v718 = vunpack.c.h.b16 %v669
        %v719 = vunpack.c.l.b16 %v670
        %v720 = vunpack.c.h.b16 %v670
        %v721 = vunpack.c.l.b16 %v671
        %v722 = vunpack.c.h.b16 %v671
        %v723 = vunpack.c.l.b16 %v672
        %v724 = vunpack.c.h.b16 %v672
        %v725 = vunpack.c.l.b16 %v673
        %v726 = vunpack.c.h.b16 %v673
        %v727 = vpack.c.b16 %v705, %v703
        %v728 = vpack.c.b16 %v706, %v704
        %v729 = vpack.c.b16 %v709, %v707
        %v730 = vpack.c.b16 %v710, %v708
        %v731 = vpack.c.b16 %v713, %v711
        %v732 = vpack.c.b16 %v714, %v712
        %v733 = vpack.c.b16 %v717, %v715
        %v734 = vpack.c.b16 %v718, %v716
        %v735 = vpack.c.b16 %v721, %v719
        %v736 = vpack.c.b16 %v722, %v720
        %v737 = vpack.c.b16 %v725, %v723
        %v738 = vpack.c.b16 %v726, %v724
        %vm751 = vcmask 785408
        %v753 = vsel %vm751, %v690, 0
        %755 = vmatprep.subr.bf16.mxu0 0
        %756 = vmatpush1.bf16.msra.mxu0 0
        %757 = vmatprep.subr.bf16.mxu0 0
        %758 = vmatpush1.bf16.msra.mxu0 0
        %759 = vmatprep.subr.bf16.mxu0 %v738
        %760 = vmatpush1.bf16.msra.mxu0 %v737
        %761 = vmatprep.subr.bf16.mxu0 %v736
        %762 = vmatpush1.bf16.msra.mxu0 %v735
        %763 = vmatprep.subr.bf16.mxu0 %v734
        %764 = vmatpush1.bf16.msra.mxu0 %v733
        %765 = vmatprep.subr.bf16.mxu0 %v732
        %766 = vmatpush1.bf16.msra.mxu0 %v731
        %767 = vmatprep.subr.bf16.mxu0 %v730
        %768 = vmatpush1.bf16.msra.mxu0 %v729
        %769 = vmatprep.subr.bf16.mxu0 %v728
        %770 = vmatpush1.bf16.msra.mxu0 %v727
        %771 = vmatprep.subr.bf16.mxu0 0
        %772 = vmatpush2.bf16.msra.mxu0 0
        %773 = vmatprep.subr.bf16.mxu0 0
        %774 = vmatpush2.bf16.msra.mxu0 0
        %775 = vmatprep.subr.bf16.mxu0 0
        %776 = vmatpush2.bf16.msra.mxu0 0
        %777 = vmatprep.subr.bf16.mxu0 0
        %778 = vmatpush2.bf16.msra.mxu0 0
        %779 = vmatprep.subr.bf16.mxu0 0
        %780 = vmatpush2.bf16.msra.mxu0 0
        %781 = vmatprep.subr.bf16.mxu0 0
        %782 = vmatpush2.bf16.msra.mxu0 0
        %783 = vmatprep.subr.bf16.mxu0 0
        %784 = vmatpush2.bf16.msra.mxu0 0
        %785 = vmatprep.subr.bf16.mxu0 0
        %786 = vmatpush2.bf16.msra.mxu0 0
        %787 = vmatprep.mubr.bf16.mxu0 0
        %788 = vmatmul.mubr.bf16.gmra.mxu0 %v753
        %v789 = vpop.f32.mrf.mxu0
        %v790 = vadd.f32 %v679, %v789
        %v791 = vpop.f32.mrf.mxu0
        %v792 = vadd.f32 %v683, %v791
        %v793 = vpop.f32.mrf.mxu0
        %v794 = vadd.f32 %v679, %v793
        %v795 = vpop.f32.mrf.mxu0
        %v796 = vadd.f32 %v683, %v795
        %797 = vdwg.mxu0
        %v798 = vxor.u32 %v790, 2147483648
        %v799 = vxor.u32 %v794, 2147483648
        %v800 = vmul.f32 %v798, 1.442695
        %v801 = vpow.pop %v800
        %v802 = vmul.f32 %v799, 1.442695
        %v803 = vpow.pop %v802
        %v804 = vadd.f32 %v801, 1.0
        %v805 = vadd.f32 %v803, 1.0
        %v806 = vrcp.pop %v804
        %v807 = vmul.f32 1.0, %v806
        %v808 = vrcp.pop %v805
        %v809 = vmul.f32 1.0, %v808
        %812 = vrot.lane.b32.xlu0 %v807, 64
        %v813 = vpop.permute.xlu0 %812
        %814 = vrot.lane.b32.xlu0 %v809, 64
        %v815 = vpop.permute.xlu0 %814
        %v818 = vmul.f32 %v790, %v813
        %v819 = vmul.f32 %v794, %v815
        %v820 = vpack.c.bf16 %v819, %v818
        %v829 = vunpack.c.l.b16 %v407
        %v830 = vunpack.c.l.b16 %v408
        %v831 = vunpack.c.l.b16 %v409
        %v832 = vunpack.c.l.b16 %v410
        %v833 = vunpack.c.l.b16 %v411
        %v834 = vunpack.c.l.b16 %v412
        %v835 = vunpack.c.l.b16 %v413
        %v836 = vunpack.c.l.b16 %v414
        %v837 = vpack.c.b16 %v830, %v829
        %v838 = vpack.c.b16 %v832, %v831
        %v839 = vpack.c.b16 %v834, %v833
        %v840 = vpack.c.b16 %v836, %v835
        %vm845 = vcmask 523264
        %v847 = vsel %vm845, %v820, 0
        %849 = vmatprep.subr.bf16.mxu0 0
        %850 = vmatpush1.bf16.msra.mxu0 0
        %851 = vmatprep.subr.bf16.mxu0 0
        %852 = vmatpush1.bf16.msra.mxu0 0
        %853 = vmatprep.subr.bf16.mxu0 0
        %854 = vmatpush1.bf16.msra.mxu0 0
        %855 = vmatprep.subr.bf16.mxu0 0
        %856 = vmatpush1.bf16.msra.mxu0 0
        %857 = vmatprep.subr.bf16.mxu0 0
        %858 = vmatpush1.bf16.msra.mxu0 %v840
        %859 = vmatprep.subr.bf16.mxu0 0
        %860 = vmatpush1.bf16.msra.mxu0 %v839
        %861 = vmatprep.subr.bf16.mxu0 0
        %862 = vmatpush1.bf16.msra.mxu0 %v838
        %863 = vmatprep.subr.bf16.mxu0 0
        %864 = vmatpush1.bf16.msra.mxu0 %v837
        %865 = vmatprep.subr.bf16.mxu0 0
        %866 = vmatpush2.bf16.msra.mxu0 0
        %867 = vmatprep.subr.bf16.mxu0 0
        %868 = vmatpush2.bf16.msra.mxu0 0
        %869 = vmatprep.subr.bf16.mxu0 0
        %870 = vmatpush2.bf16.msra.mxu0 0
        %871 = vmatprep.subr.bf16.mxu0 0
        %872 = vmatpush2.bf16.msra.mxu0 0
        %873 = vmatprep.subr.bf16.mxu0 0
        %874 = vmatpush2.bf16.msra.mxu0 0
        %875 = vmatprep.subr.bf16.mxu0 0
        %876 = vmatpush2.bf16.msra.mxu0 0
        %877 = vmatprep.subr.bf16.mxu0 0
        %878 = vmatpush2.bf16.msra.mxu0 0
        %879 = vmatprep.subr.bf16.mxu0 0
        %880 = vmatpush2.bf16.msra.mxu0 0
        %881 = vmatprep.mubr.bf16.mxu0 0
        %882 = vmatmul.mubr.bf16.gmra.mxu0 %v847
        %v883 = vpop.f32.mrf.mxu0
        %v884 = vadd.f32 0.0, %v883
        %v885 = vpop.f32.mrf.mxu0
        %v886 = vpop.f32.mrf.mxu0
        %v887 = vadd.f32 0.0, %v886
        %v888 = vpop.f32.mrf.mxu0
        %889 = vdwg.mxu0
        %v890 = vsel %vm456, %v792, -inf
        %891 = vmax.xlane.f32.xlu0 %v890
        %v892 = vpop.xlane.xlu0 %891
        %v893 = vsel %vm456, %v796, -inf
        %894 = vmax.xlane.f32.xlu0 %v893
        %v895 = vpop.xlane.xlu0 %894
        %v896 = vsub.f32 %v792, %v892
        %v897 = vsub.f32 %v796, %v895
        %v898 = vmul.f32 %v896, 1.442695
        %v899 = vpow.pop %v898
        %v900 = vmul.f32 %v897, 1.442695
        %v901 = vpow.pop %v900
        %v902 = vsel %vm456, %v899, 0.0
        %903 = vadd.xlane.f32.xlu0 %v902
        %v904 = vpop.xlane.xlu0 %903
        %v905 = vsel %vm456, %v901, 0.0
        %906 = vadd.xlane.f32.xlu0 %v905
        %v907 = vpop.xlane.xlu0 %906
        %v908 = vlog2.pop %v904
        %v909 = vmul.f32 %v908, 0.6931472
        %v910 = vlog2.pop %v907
        %v911 = vmul.f32 %v910, 0.6931472
        %v912 = vadd.f32 %v892, %v909
        %v913 = vadd.f32 %v895, %v911
        %v914 = vmul.f32 %v792, %v429
        %v915 = vmul.f32 %v796, %v430
        %v916 = vsel %vm456, %v914, 0.0
        %917 = vadd.xlane.f32.xlu0 %v916
        %v918 = vpop.xlane.xlu0 %917
        %v919 = vsel %vm456, %v915, 0.0
        %920 = vadd.xlane.f32.xlu0 %v919
        %v921 = vpop.xlane.xlu0 %920
        %v922 = vsub.f32 %v912, %v918
        %v923 = vsub.f32 %v913, %v921
        %v924 = vadd.f32 %v922, 0.0
        %v925 = vadd.f32 %v923, 0.0
        %v926 = vsel %vm518, %v884, -inf
        %927 = vmax.xlane.f32.xlu0 %v926
        %v928 = vpop.xlane.xlu0 %927
        %v929 = vsel %vm518, %v887, -inf
        %930 = vmax.xlane.f32.xlu0 %v929
        %v931 = vpop.xlane.xlu0 %930
        %v932 = vsub.f32 %v884, %v928
        %v933 = vsub.f32 %v887, %v931
        %v934 = vmul.f32 %v932, 1.442695
        %v935 = vpow.pop %v934
        %v936 = vmul.f32 %v933, 1.442695
        %v937 = vpow.pop %v936
        %v938 = vsel %vm518, %v935, 0.0
        %939 = vadd.xlane.f32.xlu0 %v938
        %v940 = vpop.xlane.xlu0 %939
        %v941 = vsel %vm518, %v937, 0.0
        %942 = vadd.xlane.f32.xlu0 %v941
        %v943 = vpop.xlane.xlu0 %942
        %v944 = vlog2.pop %v940
        %v945 = vmul.f32 %v944, 0.6931472
        %v946 = vlog2.pop %v943
        %v947 = vmul.f32 %v946, 0.6931472
        %v948 = vadd.f32 %v928, %v945
        %v949 = vadd.f32 %v931, %v947
        %v950 = vmul.f32 %v884, %v441
        %v951 = vmul.f32 %v887, %v442
        %v952 = vsel %vm518, %v950, 0.0
        %953 = vadd.xlane.f32.xlu0 %v952
        %v954 = vpop.xlane.xlu0 %953
        %v955 = vsel %vm518, %v951, 0.0
        %956 = vadd.xlane.f32.xlu0 %v955
        %v957 = vpop.xlane.xlu0 %956
        %v958 = vsub.f32 %v948, %v954
        %v959 = vsub.f32 %v949, %v957
        %v960 = vadd.f32 %v924, %v958
        %v961 = vadd.f32 %v925, %v959
        %vm962 = vcmask 392448
        %v963 = vsel %vm962, %v884, -inf
        %964 = vmax.xlane.f32.xlu0 %v963
        %v965 = vpop.xlane.xlu0 %964
        %v966 = vsel %vm962, %v887, -inf
        %967 = vmax.xlane.f32.xlu0 %v966
        %v968 = vpop.xlane.xlu0 %967
        %v969 = vsub.f32 %v884, %v965
        %v970 = vsub.f32 %v887, %v968
        %v971 = vmul.f32 %v969, 1.442695
        %v972 = vpow.pop %v971
        %v973 = vmul.f32 %v970, 1.442695
        %v974 = vpow.pop %v973
        %977 = vrot.lane.b32.xlu0 %v972, 96
        %v978 = vpop.permute.xlu0 %977
        %979 = vrot.lane.b32.xlu0 %v974, 96
        %v980 = vpop.permute.xlu0 %979
        %v983 = vsel %vm600, %v978, 0.0
        %984 = vadd.xlane.f32.xlu0 %v983
        %v985 = vpop.xlane.xlu0 %984
        %v986 = vsel %vm600, %v980, 0.0
        %987 = vadd.xlane.f32.xlu0 %v986
        %v988 = vpop.xlane.xlu0 %987
        %v989 = vlog2.pop %v985
        %v990 = vmul.f32 %v989, 0.6931472
        %v991 = vlog2.pop %v988
        %v992 = vmul.f32 %v991, 0.6931472
        %v993 = vadd.f32 %v965, %v990
        %v994 = vadd.f32 %v968, %v992
        %997 = vrot.lane.b32.xlu0 %v453, 32
        %v998 = vpop.permute.xlu0 %997
        %999 = vrot.lane.b32.xlu0 %v454, 32
        %v1000 = vpop.permute.xlu0 %999
        %v1003 = vmul.f32 %v884, %v998
        %v1004 = vmul.f32 %v887, %v1000
        %1007 = vrot.lane.b32.xlu0 %v1003, 96
        %v1008 = vpop.permute.xlu0 %1007
        %1009 = vrot.lane.b32.xlu0 %v1004, 96
        %v1010 = vpop.permute.xlu0 %1009
        %v1013 = vsel %vm600, %v1008, 0.0
        %1014 = vadd.xlane.f32.xlu0 %v1013
        %v1015 = vpop.xlane.xlu0 %1014
        %v1016 = vsel %vm600, %v1010, 0.0
        %1017 = vadd.xlane.f32.xlu0 %v1016
        %v1018 = vpop.xlane.xlu0 %1017
        %v1019 = vsub.f32 %v993, %v1015
        %v1020 = vsub.f32 %v994, %v1018
        %v1021 = vadd.f32 %v960, %v1019
        %v1022 = vadd.f32 %v961, %v1020
        %v1023 = vld [vmem:[%s379] sm:$0xff]
        %v1024 = vld [vmem:[%s379 + $0x8] sm:$0xff]
        %1025 = vset.pattern.permute.xlu0 1
        %1026 = vperm.xlu0 %1025, %v1023
        %v1027 = vpop.permute.xlu0 %1026
        %1028 = vset.pattern.permute.xlu0 1
        %1029 = vperm.xlu0 %1028, %v1024
        %v1030 = vpop.permute.xlu0 %1029
        %vm1031 = vcmp.eq.s32.totalorder %v418, %v1027
        %vm1032 = vcmp.eq.s32.totalorder %v418, %v1030
        %v1033 = vsel %vm1031, 1, 0
        %v1034 = vsel %vm1032, 1, 0
        %v1035 = vcvt.s32.f32 %v1033
        %v1036 = vcvt.s32.f32 %v1034
        %1037 = vset.pattern.permute.xlu0 3
        %1038 = vperm.xlu0 %1037, %v1023
        %v1039 = vpop.permute.xlu0 %1038
        %1040 = vset.pattern.permute.xlu0 3
        %1041 = vperm.xlu0 %1040, %v1024
        %v1042 = vpop.permute.xlu0 %1041
        %vm1043 = vcmp.eq.s32.totalorder %v418, %v1039
        %vm1044 = vcmp.eq.s32.totalorder %v418, %v1042
        %v1045 = vsel %vm1043, 1, 0
        %v1046 = vsel %vm1044, 1, 0
        %v1047 = vcvt.s32.f32 %v1045
        %v1048 = vcvt.s32.f32 %v1046
        %1049 = vset.pattern.permute.xlu0 5
        %1050 = vperm.xlu0 %1049, %v1023
        %v1051 = vpop.permute.xlu0 %1050
        %1052 = vset.pattern.permute.xlu0 5
        %1053 = vperm.xlu0 %1052, %v1024
        %v1054 = vpop.permute.xlu0 %1053
        %vm1055 = vcmp.eq.s32.totalorder %v418, %v1051
        %vm1056 = vcmp.eq.s32.totalorder %v418, %v1054
        %v1057 = vsel %vm1055, 1, 0
        %v1058 = vsel %vm1056, 1, 0
        %v1059 = vcvt.s32.f32 %v1057
        %v1060 = vcvt.s32.f32 %v1058
        %v1061 = vpack.c.bf16 %v1036, %v1035
        %v1063 = vsel %vm456, %v1061, 0
        %1065 = vmatprep.subr.bf16.mxu0 0
        %1066 = vmatpush1.bf16.msra.mxu0 0
        %1067 = vmatprep.subr.bf16.mxu0 0
        %1068 = vmatpush1.bf16.msra.mxu0 0
        %1069 = vmatprep.subr.bf16.mxu0 0
        %1070 = vmatpush1.bf16.msra.mxu0 0
        %1071 = vmatprep.subr.bf16.mxu0 0
        %1072 = vmatpush1.bf16.msra.mxu0 0
        %1073 = vmatprep.subr.bf16.mxu0 0
        %1074 = vmatpush1.bf16.msra.mxu0 0
        %1075 = vmatprep.subr.bf16.mxu0 0
        %1076 = vmatpush1.bf16.msra.mxu0 0
        %1077 = vmatprep.subr.bf16.mxu0 0
        %1078 = vmatpush1.bf16.msra.mxu0 0
        %1079 = vmatprep.subr.bf16.mxu0 0
        %1080 = vmatpush1.bf16.msra.mxu0 %v462
        %1081 = vmatprep.subr.bf16.mxu0 0
        %1082 = vmatpush2.bf16.msra.mxu0 0
        %1083 = vmatprep.subr.bf16.mxu0 0
        %1084 = vmatpush2.bf16.msra.mxu0 0
        %1085 = vmatprep.subr.bf16.mxu0 0
        %1086 = vmatpush2.bf16.msra.mxu0 0
        %1087 = vmatprep.subr.bf16.mxu0 0
        %1088 = vmatpush2.bf16.msra.mxu0 0
        %1089 = vmatprep.subr.bf16.mxu0 0
        %1090 = vmatpush2.bf16.msra.mxu0 0
        %1091 = vmatprep.subr.bf16.mxu0 0
        %1092 = vmatpush2.bf16.msra.mxu0 0
        %1093 = vmatprep.subr.bf16.mxu0 0
        %1094 = vmatpush2.bf16.msra.mxu0 0
        %1095 = vmatprep.subr.bf16.mxu0 0
        %1096 = vmatpush2.bf16.msra.mxu0 0
        %1097 = vmatprep.mubr.bf16.mxu0 0
        %1098 = vmatmul.mubr.bf16.gmra.mxu0 %v1063
        %v1099 = vpop.f32.mrf.mxu0
        %v1100 = vadd.f32 0.0, %v1099
        %v1101 = vpop.f32.mrf.mxu0
        %v1102 = vpop.f32.mrf.mxu0
        %v1103 = vadd.f32 0.0, %v1102
        %v1104 = vpop.f32.mrf.mxu0
        %1105 = vdwg.mxu0
        %v1106 = vpack.c.bf16 %v1048, %v1047
        %v1108 = vsel %vm518, %v1106, 0
        %1110 = vmatprep.subr.bf16.mxu0 0
        %1111 = vmatpush1.bf16.msra.mxu0 0
        %1112 = vmatprep.subr.bf16.mxu0 0
        %1113 = vmatpush1.bf16.msra.mxu0 0
        %1114 = vmatprep.subr.bf16.mxu0 0
        %1115 = vmatpush1.bf16.msra.mxu0 0
        %1116 = vmatprep.subr.bf16.mxu0 0
        %1117 = vmatpush1.bf16.msra.mxu0 0
        %1118 = vmatprep.subr.bf16.mxu0 0
        %1119 = vmatpush1.bf16.msra.mxu0 0
        %1120 = vmatprep.subr.bf16.mxu0 0
        %1121 = vmatpush1.bf16.msra.mxu0 0
        %1122 = vmatprep.subr.bf16.mxu0 0
        %1123 = vmatpush1.bf16.msra.mxu0 %v515
        %1124 = vmatprep.subr.bf16.mxu0 0
        %1125 = vmatpush1.bf16.msra.mxu0 %v514
        %1126 = vmatprep.subr.bf16.mxu0 0
        %1127 = vmatpush2.bf16.msra.mxu0 0
        %1128 = vmatprep.subr.bf16.mxu0 0
        %1129 = vmatpush2.bf16.msra.mxu0 0
        %1130 = vmatprep.subr.bf16.mxu0 0
        %1131 = vmatpush2.bf16.msra.mxu0 0
        %1132 = vmatprep.subr.bf16.mxu0 0
        %1133 = vmatpush2.bf16.msra.mxu0 0
        %1134 = vmatprep.subr.bf16.mxu0 0
        %1135 = vmatpush2.bf16.msra.mxu0 0
        %1136 = vmatprep.subr.bf16.mxu0 0
        %1137 = vmatpush2.bf16.msra.mxu0 0
        %1138 = vmatprep.subr.bf16.mxu0 0
        %1139 = vmatpush2.bf16.msra.mxu0 0
        %1140 = vmatprep.subr.bf16.mxu0 0
        %1141 = vmatpush2.bf16.msra.mxu0 0
        %1142 = vmatprep.mubr.bf16.mxu0 0
        %1143 = vmatmul.mubr.bf16.gmra.mxu0 %v1108
        %v1144 = vpop.f32.mrf.mxu0
        %v1145 = vadd.f32 0.0, %v1144
        %v1146 = vpop.f32.mrf.mxu0
        %v1147 = vpop.f32.mrf.mxu0
        %v1148 = vadd.f32 0.0, %v1147
        %v1149 = vpop.f32.mrf.mxu0
        %1150 = vdwg.mxu0
        %v1151 = vpack.c.bf16 %v1103, %v1100
        %v1153 = vunpack.c.l.b16 %v1151
        %v1154 = vunpack.c.h.b16 %v1151
        %v1155 = vpack.c.b16 %v1153, %v1153
        %v1156 = vpack.c.b16 %v1154, %v1154
        %1159 = vst.msk [vmem:[#allocation2 + $0x4] sm:$0xf] %vm397, %v1155
        %1160 = vst.msk [vmem:[#allocation2 + $0xc] sm:$0xf] %vm397, %v1156
        %v1161 = vpack.c.bf16 %v1148, %v1145
        %v1163 = vunpack.c.l.b16 %v1161
        %v1164 = vunpack.c.h.b16 %v1161
        %v1165 = vpack.c.b16 %v1163, %v1163
        %v1166 = vpack.c.b16 %v1164, %v1164
        %1167 = vrot.lane.b32.xlu0 %v1165, 32
        %v1168 = vpop.permute.xlu0 %1167
        %1169 = vrot.lane.b32.xlu0 %v1166, 32
        %v1170 = vpop.permute.xlu0 %1169
        %1173 = vst.msk [vmem:[#allocation2 + $0x4] sm:$0xf] %vm575, %v1168
        %1174 = vst.msk [vmem:[#allocation2 + $0xc] sm:$0xf] %vm575, %v1170
        %v1175 = vld [vmem:[#allocation2] sm:$0xff]
        %v1176 = vld [vmem:[#allocation2 + $0x8] sm:$0xff]
        %v1177 = vld [vmem:[%s8] sm:$0xff]
        %v1178 = vld [vmem:[%s8 + $0x8] sm:$0xff]
        %v1179 = vld [vmem:[%s8 + $0x10] sm:$0xff]
        %v1180 = vld [vmem:[%s8 + $0x18] sm:$0xff]
        %v1181 = vld [vmem:[%s8 + $0x20] sm:$0xff]
        %v1182 = vld [vmem:[%s8 + $0x28] sm:$0xff]
        %v1183 = vld [vmem:[%s8 + $0x30] sm:$0xff]
        %v1184 = vld [vmem:[%s8 + $0x38] sm:$0xff]
        %v1185 = vld [vmem:[%s8 + $0x40] sm:$0xff]
        %v1186 = vld [vmem:[%s8 + $0x48] sm:$0xff]
        %v1187 = vld [vmem:[%s8 + $0x50] sm:$0xff]
        %v1188 = vld [vmem:[%s8 + $0x58] sm:$0xff]
        %v1189 = vld [vmem:[%s8 + $0x60] sm:$0xff]
        %v1190 = vld [vmem:[%s8 + $0x68] sm:$0xff]
        %v1191 = vld [vmem:[%s8 + $0x70] sm:$0xff]
        %v1192 = vld [vmem:[%s8 + $0x78] sm:$0xff]
        %v1193 = vld [vmem:[%s8 + $0x80] sm:$0xff]
        %v1194 = vld [vmem:[%s8 + $0x88] sm:$0xff]
        %v1195 = vld [vmem:[%s8 + $0x90] sm:$0xff]
        %v1196 = vld [vmem:[%s8 + $0x98] sm:$0xff]
        %v1197 = vld [vmem:[%s8 + $0xa0] sm:$0xff]
        %v1198 = vld [vmem:[%s8 + $0xa8] sm:$0xff]
        %v1199 = vld [vmem:[%s8 + $0xb0] sm:$0xff]
        %v1200 = vld [vmem:[%s8 + $0xb8] sm:$0xff]
        %v1201 = vld [vmem:[%s9] sm:$0x3]
        %v1203 = vlaneseq
        %v1204 = vshrl.u32 %v1203, 7
        %v1205 = vsub.s32 0, %v1204
        %v1206 = vrot.slane %v1201, %v1205
        %v1207 = vlaneseq
        %v1208 = vshrl.u32 %v1207, 7
        %v1209 = vsub.s32 1, %v1208
        %v1210 = vrot.slane %v1201, %v1209
        %v1215 = vunpack.c.l.b16 %v1175
        %v1216 = vunpack.c.h.b16 %v1175
        %v1217 = vunpack.c.l.b16 %v1176
        %v1218 = vunpack.c.h.b16 %v1176
        %v1219 = vpack.c.b16 %v1217, %v1215
        %v1220 = vpack.c.b16 %v1218, %v1216
        %v1246 = vunpack.c.l.b16 %v1177
        %v1247 = vunpack.c.h.b16 %v1177
        %v1248 = vunpack.c.l.b16 %v1178
        %v1249 = vunpack.c.h.b16 %v1178
        %v1250 = vunpack.c.l.b16 %v1179
        %v1251 = vunpack.c.h.b16 %v1179
        %v1252 = vunpack.c.l.b16 %v1180
        %v1253 = vunpack.c.h.b16 %v1180
        %v1254 = vunpack.c.l.b16 %v1181
        %v1255 = vunpack.c.h.b16 %v1181
        %v1256 = vunpack.c.l.b16 %v1182
        %v1257 = vunpack.c.h.b16 %v1182
        %v1258 = vunpack.c.l.b16 %v1183
        %v1259 = vunpack.c.h.b16 %v1183
        %v1260 = vunpack.c.l.b16 %v1184
        %v1261 = vunpack.c.h.b16 %v1184
        %v1262 = vunpack.c.l.b16 %v1185
        %v1263 = vunpack.c.h.b16 %v1185
        %v1264 = vunpack.c.l.b16 %v1186
        %v1265 = vunpack.c.h.b16 %v1186
        %v1266 = vunpack.c.l.b16 %v1187
        %v1267 = vunpack.c.h.b16 %v1187
        %v1268 = vunpack.c.l.b16 %v1188
        %v1269 = vunpack.c.h.b16 %v1188
        %v1270 = vunpack.c.l.b16 %v1189
        %v1271 = vunpack.c.h.b16 %v1189
        %v1272 = vunpack.c.l.b16 %v1190
        %v1273 = vunpack.c.h.b16 %v1190
        %v1274 = vunpack.c.l.b16 %v1191
        %v1275 = vunpack.c.h.b16 %v1191
        %v1276 = vunpack.c.l.b16 %v1192
        %v1277 = vunpack.c.h.b16 %v1192
        %v1278 = vunpack.c.l.b16 %v1193
        %v1279 = vunpack.c.h.b16 %v1193
        %v1280 = vunpack.c.l.b16 %v1194
        %v1281 = vunpack.c.h.b16 %v1194
        %v1282 = vunpack.c.l.b16 %v1195
        %v1283 = vunpack.c.h.b16 %v1195
        %v1284 = vunpack.c.l.b16 %v1196
        %v1285 = vunpack.c.h.b16 %v1196
        %v1286 = vunpack.c.l.b16 %v1197
        %v1287 = vunpack.c.h.b16 %v1197
        %v1288 = vunpack.c.l.b16 %v1198
        %v1289 = vunpack.c.h.b16 %v1198
        %v1290 = vunpack.c.l.b16 %v1199
        %v1291 = vunpack.c.h.b16 %v1199
        %v1292 = vunpack.c.l.b16 %v1200
        %v1293 = vunpack.c.h.b16 %v1200
        %v1294 = vpack.c.b16 %v1248, %v1246
        %v1295 = vpack.c.b16 %v1249, %v1247
        %v1296 = vpack.c.b16 %v1252, %v1250
        %v1297 = vpack.c.b16 %v1253, %v1251
        %v1298 = vpack.c.b16 %v1256, %v1254
        %v1299 = vpack.c.b16 %v1257, %v1255
        %v1300 = vpack.c.b16 %v1260, %v1258
        %v1301 = vpack.c.b16 %v1261, %v1259
        %v1302 = vpack.c.b16 %v1264, %v1262
        %v1303 = vpack.c.b16 %v1265, %v1263
        %v1304 = vpack.c.b16 %v1268, %v1266
        %v1305 = vpack.c.b16 %v1269, %v1267
        %v1306 = vpack.c.b16 %v1272, %v1270
        %v1307 = vpack.c.b16 %v1273, %v1271
        %v1308 = vpack.c.b16 %v1276, %v1274
        %v1309 = vpack.c.b16 %v1277, %v1275
        %v1310 = vpack.c.b16 %v1280, %v1278
        %v1311 = vpack.c.b16 %v1281, %v1279
        %v1312 = vpack.c.b16 %v1284, %v1282
        %v1313 = vpack.c.b16 %v1285, %v1283
        %v1314 = vpack.c.b16 %v1288, %v1286
        %v1315 = vpack.c.b16 %v1289, %v1287
        %v1316 = vpack.c.b16 %v1292, %v1290
        %v1317 = vpack.c.b16 %v1293, %v1291
        %v1343 = vsel %vm845, %v1220, 0
        %1345 = vmatprep.subr.bf16.mxu0 %v1309
        %1346 = vmatpush1.bf16.msra.mxu0 %v1308
        %1347 = vmatprep.subr.bf16.mxu0 %v1307
        %1348 = vmatpush1.bf16.msra.mxu0 %v1306
        %1349 = vmatprep.subr.bf16.mxu0 %v1305
        %1350 = vmatpush1.bf16.msra.mxu0 %v1304
        %1351 = vmatprep.subr.bf16.mxu0 %v1303
        %1352 = vmatpush1.bf16.msra.mxu0 %v1302
        %1353 = vmatprep.subr.bf16.mxu0 %v1301
        %1354 = vmatpush1.bf16.msra.mxu0 %v1300
        %1355 = vmatprep.subr.bf16.mxu0 %v1299
        %1356 = vmatpush1.bf16.msra.mxu0 %v1298
        %1357 = vmatprep.subr.bf16.mxu0 %v1297
        %1358 = vmatpush1.bf16.msra.mxu0 %v1296
        %1359 = vmatprep.subr.bf16.mxu0 %v1295
        %1360 = vmatpush1.bf16.msra.mxu0 %v1294
        %1361 = vmatprep.subr.bf16.mxu0 0
        %1362 = vmatpush2.bf16.msra.mxu0 0
        %1363 = vmatprep.subr.bf16.mxu0 0
        %1364 = vmatpush2.bf16.msra.mxu0 0
        %1365 = vmatprep.subr.bf16.mxu0 0
        %1366 = vmatpush2.bf16.msra.mxu0 0
        %1367 = vmatprep.subr.bf16.mxu0 0
        %1368 = vmatpush2.bf16.msra.mxu0 0
        %1369 = vmatprep.subr.bf16.mxu0 %v1317
        %1370 = vmatpush2.bf16.msra.mxu0 %v1316
        %1371 = vmatprep.subr.bf16.mxu0 %v1315
        %1372 = vmatpush2.bf16.msra.mxu0 %v1314
        %1373 = vmatprep.subr.bf16.mxu0 %v1313
        %1374 = vmatpush2.bf16.msra.mxu0 %v1312
        %1375 = vmatprep.subr.bf16.mxu0 %v1311
        %1376 = vmatpush2.bf16.msra.mxu0 %v1310
        %1377 = vmatprep.mubr.bf16.mxu0 %v1343
        %1378 = vmatmul.mubr.bf16.gmra.mxu0 %v1219
        %v1379 = vpop.f32.mrf.mxu0
        %v1380 = vadd.f32 %v1206, %v1379
        %v1381 = vpop.f32.mrf.mxu0
        %v1382 = vadd.f32 %v1210, %v1381
        %v1383 = vpop.f32.mrf.mxu0
        %v1384 = vadd.f32 %v1206, %v1383
        %v1385 = vpop.f32.mrf.mxu0
        %v1386 = vadd.f32 %v1210, %v1385
        %1387 = vdwg.mxu0
        %v1388 = vxor.u32 %v1380, 2147483648
        %v1389 = vxor.u32 %v1384, 2147483648
        %v1390 = vmul.f32 %v1388, 1.442695
        %v1391 = vpow.pop %v1390
        %v1392 = vmul.f32 %v1389, 1.442695
        %v1393 = vpow.pop %v1392
        %v1394 = vadd.f32 %v1391, 1.0
        %v1395 = vadd.f32 %v1393, 1.0
        %v1396 = vrcp.pop %v1394
        %v1397 = vmul.f32 1.0, %v1396
        %v1398 = vrcp.pop %v1395
        %v1399 = vmul.f32 1.0, %v1398
        %1402 = vrot.lane.b32.xlu0 %v1397, 64
        %v1403 = vpop.permute.xlu0 %1402
        %1404 = vrot.lane.b32.xlu0 %v1399, 64
        %v1405 = vpop.permute.xlu0 %1404
        %v1408 = vmul.f32 %v1380, %v1403
        %v1409 = vmul.f32 %v1384, %v1405
        %v1410 = vpack.c.bf16 %v1409, %v1408
        %v1412 = vsel %vm845, %v1410, 0
        %1414 = vmatprep.subr.bf16.mxu0 0
        %1415 = vmatpush1.bf16.msra.mxu0 0
        %1416 = vmatprep.subr.bf16.mxu0 0
        %1417 = vmatpush1.bf16.msra.mxu0 0
        %1418 = vmatprep.subr.bf16.mxu0 0
        %1419 = vmatpush1.bf16.msra.mxu0 0
        %1420 = vmatprep.subr.bf16.mxu0 0
        %1421 = vmatpush1.bf16.msra.mxu0 0
        %1422 = vmatprep.subr.bf16.mxu0 0
        %1423 = vmatpush1.bf16.msra.mxu0 %v840
        %1424 = vmatprep.subr.bf16.mxu0 0
        %1425 = vmatpush1.bf16.msra.mxu0 %v839
        %1426 = vmatprep.subr.bf16.mxu0 0
        %1427 = vmatpush1.bf16.msra.mxu0 %v838
        %1428 = vmatprep.subr.bf16.mxu0 0
        %1429 = vmatpush1.bf16.msra.mxu0 %v837
        %1430 = vmatprep.subr.bf16.mxu0 0
        %1431 = vmatpush2.bf16.msra.mxu0 0
        %1432 = vmatprep.subr.bf16.mxu0 0
        %1433 = vmatpush2.bf16.msra.mxu0 0
        %1434 = vmatprep.subr.bf16.mxu0 0
        %1435 = vmatpush2.bf16.msra.mxu0 0
        %1436 = vmatprep.subr.bf16.mxu0 0
        %1437 = vmatpush2.bf16.msra.mxu0 0
        %1438 = vmatprep.subr.bf16.mxu0 0
        %1439 = vmatpush2.bf16.msra.mxu0 0
        %1440 = vmatprep.subr.bf16.mxu0 0
        %1441 = vmatpush2.bf16.msra.mxu0 0
        %1442 = vmatprep.subr.bf16.mxu0 0
        %1443 = vmatpush2.bf16.msra.mxu0 0
        %1444 = vmatprep.subr.bf16.mxu0 0
        %1445 = vmatpush2.bf16.msra.mxu0 0
        %1446 = vmatprep.mubr.bf16.mxu0 0
        %1447 = vmatmul.mubr.bf16.gmra.mxu0 %v1412
        %v1448 = vpop.f32.mrf.mxu0
        %v1449 = vadd.f32 0.0, %v1448
        %v1450 = vpop.f32.mrf.mxu0
        %v1451 = vpop.f32.mrf.mxu0
        %v1452 = vadd.f32 0.0, %v1451
        %v1453 = vpop.f32.mrf.mxu0
        %1454 = vdwg.mxu0
        %v1455 = vsel %vm456, %v1382, -inf
        %1456 = vmax.xlane.f32.xlu0 %v1455
        %v1457 = vpop.xlane.xlu0 %1456
        %v1458 = vsel %vm456, %v1386, -inf
        %1459 = vmax.xlane.f32.xlu0 %v1458
        %v1460 = vpop.xlane.xlu0 %1459
        %v1461 = vsub.f32 %v1382, %v1457
        %v1462 = vsub.f32 %v1386, %v1460
        %v1463 = vmul.f32 %v1461, 1.442695
        %v1464 = vpow.pop %v1463
        %v1465 = vmul.f32 %v1462, 1.442695
        %v1466 = vpow.pop %v1465
        %v1467 = vsel %vm456, %v1464, 0.0
        %1468 = vadd.xlane.f32.xlu0 %v1467
        %v1469 = vpop.xlane.xlu0 %1468
        %v1470 = vsel %vm456, %v1466, 0.0
        %1471 = vadd.xlane.f32.xlu0 %v1470
        %v1472 = vpop.xlane.xlu0 %1471
        %v1473 = vlog2.pop %v1469
        %v1474 = vmul.f32 %v1473, 0.6931472
        %v1475 = vlog2.pop %v1472
        %v1476 = vmul.f32 %v1475, 0.6931472
        %v1477 = vadd.f32 %v1457, %v1474
        %v1478 = vadd.f32 %v1460, %v1476
        %v1479 = vmul.f32 %v1382, %v1035
        %v1480 = vmul.f32 %v1386, %v1036
        %v1481 = vsel %vm456, %v1479, 0.0
        %1482 = vadd.xlane.f32.xlu0 %v1481
        %v1483 = vpop.xlane.xlu0 %1482
        %v1484 = vsel %vm456, %v1480, 0.0
        %1485 = vadd.xlane.f32.xlu0 %v1484
        %v1486 = vpop.xlane.xlu0 %1485
        %v1487 = vsub.f32 %v1477, %v1483
        %v1488 = vsub.f32 %v1478, %v1486
        %v1489 = vadd.f32 %v1021, %v1487
        %v1490 = vadd.f32 %v1022, %v1488
        %v1491 = vsel %vm518, %v1449, -inf
        %1492 = vmax.xlane.f32.xlu0 %v1491
        %v1493 = vpop.xlane.xlu0 %1492
        %v1494 = vsel %vm518, %v1452, -inf
        %1495 = vmax.xlane.f32.xlu0 %v1494
        %v1496 = vpop.xlane.xlu0 %1495
        %v1497 = vsub.f32 %v1449, %v1493
        %v1498 = vsub.f32 %v1452, %v1496
        %v1499 = vmul.f32 %v1497, 1.442695
        %v1500 = vpow.pop %v1499
        %v1501 = vmul.f32 %v1498, 1.442695
        %v1502 = vpow.pop %v1501
        %v1503 = vsel %vm518, %v1500, 0.0
        %1504 = vadd.xlane.f32.xlu0 %v1503
        %v1505 = vpop.xlane.xlu0 %1504
        %v1506 = vsel %vm518, %v1502, 0.0
        %1507 = vadd.xlane.f32.xlu0 %v1506
        %v1508 = vpop.xlane.xlu0 %1507
        %v1509 = vlog2.pop %v1505
        %v1510 = vmul.f32 %v1509, 0.6931472
        %v1511 = vlog2.pop %v1508
        %v1512 = vmul.f32 %v1511, 0.6931472
        %v1513 = vadd.f32 %v1493, %v1510
        %v1514 = vadd.f32 %v1496, %v1512
        %v1515 = vmul.f32 %v1449, %v1047
        %v1516 = vmul.f32 %v1452, %v1048
        %v1517 = vsel %vm518, %v1515, 0.0
        %1518 = vadd.xlane.f32.xlu0 %v1517
        %v1519 = vpop.xlane.xlu0 %1518
        %v1520 = vsel %vm518, %v1516, 0.0
        %1521 = vadd.xlane.f32.xlu0 %v1520
        %v1522 = vpop.xlane.xlu0 %1521
        %v1523 = vsub.f32 %v1513, %v1519
        %v1524 = vsub.f32 %v1514, %v1522
        %v1525 = vadd.f32 %v1489, %v1523
        %v1526 = vadd.f32 %v1490, %v1524
        %v1527 = vsel %vm962, %v1449, -inf
        %1528 = vmax.xlane.f32.xlu0 %v1527
        %v1529 = vpop.xlane.xlu0 %1528
        %v1530 = vsel %vm962, %v1452, -inf
        %1531 = vmax.xlane.f32.xlu0 %v1530
        %v1532 = vpop.xlane.xlu0 %1531
        %v1533 = vsub.f32 %v1449, %v1529
        %v1534 = vsub.f32 %v1452, %v1532
        %v1535 = vmul.f32 %v1533, 1.442695
        %v1536 = vpow.pop %v1535
        %v1537 = vmul.f32 %v1534, 1.442695
        %v1538 = vpow.pop %v1537
        %1541 = vrot.lane.b32.xlu0 %v1536, 96
        %v1542 = vpop.permute.xlu0 %1541
        %1543 = vrot.lane.b32.xlu0 %v1538, 96
        %v1544 = vpop.permute.xlu0 %1543
        %v1547 = vsel %vm600, %v1542, 0.0
        %1548 = vadd.xlane.f32.xlu0 %v1547
        %v1549 = vpop.xlane.xlu0 %1548
        %v1550 = vsel %vm600, %v1544, 0.0
        %1551 = vadd.xlane.f32.xlu0 %v1550
        %v1552 = vpop.xlane.xlu0 %1551
        %v1553 = vlog2.pop %v1549
        %v1554 = vmul.f32 %v1553, 0.6931472
        %v1555 = vlog2.pop %v1552
        %v1556 = vmul.f32 %v1555, 0.6931472
        %v1557 = vadd.f32 %v1529, %v1554
        %v1558 = vadd.f32 %v1532, %v1556
        %1561 = vrot.lane.b32.xlu0 %v1059, 32
        %v1562 = vpop.permute.xlu0 %1561
        %1563 = vrot.lane.b32.xlu0 %v1060, 32
        %v1564 = vpop.permute.xlu0 %1563
        %v1567 = vmul.f32 %v1449, %v1562
        %v1568 = vmul.f32 %v1452, %v1564
        %1571 = vrot.lane.b32.xlu0 %v1567, 96
        %v1572 = vpop.permute.xlu0 %1571
        %1573 = vrot.lane.b32.xlu0 %v1568, 96
        %v1574 = vpop.permute.xlu0 %1573
        %v1577 = vsel %vm600, %v1572, 0.0
        %1578 = vadd.xlane.f32.xlu0 %v1577
        %v1579 = vpop.xlane.xlu0 %1578
        %v1580 = vsel %vm600, %v1574, 0.0
        %1581 = vadd.xlane.f32.xlu0 %v1580
        %v1582 = vpop.xlane.xlu0 %1581
        %v1583 = vsub.f32 %v1557, %v1579
        %v1584 = vsub.f32 %v1558, %v1582
        %v1585 = vadd.f32 %v1525, %v1583
        %v1586 = vadd.f32 %v1526, %v1584
        %v1587 = vmul.f32 %v1585, %v393
        %v1588 = vmul.f32 %v1586, %v394
        %vm1589 = vcmask 7168
        %v1590 = vsel %vm1589, %v1587, 0.0
        %v1591 = vsel %vm1589, %v1588, 0.0
        %v1592 = vadd.f32 %v1590, %v1591
        %1593 = vadd.xlane.f32.xlu0 %v1592
        %v1594 = vpop.xlane.xlu0 %1593
        %v1595 = vrot.slane %v1594, 4
        %v1596 = vadd.f32 %v1594, %v1595
        %v1597 = vrot.slane %v1596, 2
        %v1598 = vadd.f32 %v1596, %v1597
        %v1599 = vrot.slane %v1598, 1
        %v1600 = vadd.f32 %v1598, %v1599
        %s1601 = vtos %v1600
        %s1602 = smul.f32 %s1601, 0.055555556
        %v1603 = vstv %s1602
        %1604 = vst [vmem:[%s368] sm:$0x1] %v1603
        %s1605 = sand.u32 %s252, 1
        %s1606 = scalar_lea.sflag [#allocation4], %s1605
        %s1607 = sand.u32 %s252, 1
        %s1608 = scalar_lea.vmem [#allocation3], %s1607
        // Predicated region
        $region61: #{tpu_custom_call.1} parent=59 // pred_check
          %p1609 = pneg %p262
        $region62: #{tpu_custom_call.1} parent=59 // pred_check_branch
          %1611 = sbr.rel (%p1609) target = $region64
        $region63: #{tpu_custom_call.1} parent=59 // pred_region
          %s1613 = ssub.s32 16, 16
          %1614 = vsyncadd %s1606, %s1613
          %s1615 = smul.addr %s24, 16
          %s1616 = scalar_lea.hbm %s10, %s1615
          %s1618 = sshll.u32 %s1608, 4
          %s1619 = int_to_ptr.vmem [resolvable:$true] %s1618
          %1621 = dma.vmem_to_hbm [thread:$0]  %s1619, 16, %s1616, %s1606
        $region64: #{tpu_custom_call.1} parent=59 // pred_fallthru
          _
      $region60: #{tpu_custom_call.1} parent=5 // pred_fallthru
        _
      %p1622 = scmp.le.s32.totalorder 2, %s19
      // Predicated region
      $region65: #{tpu_custom_call.1} parent=5 // pred_check
        %p1623 = pneg %p1622
      $region66: #{tpu_custom_call.1} parent=5 // pred_check_branch
        %1625 = sbr.rel (%p1623) target = $region68
      $region67: #{tpu_custom_call.1} parent=5 // pred_region
        %s1626 = ssub.s32 %s19, 2
        // Predicated region
        $region69: #{tpu_custom_call.1} parent=67 // pred_check
          %p1627 = pneg %p268
        $region70: #{tpu_custom_call.1} parent=67 // pred_check_branch
          %1629 = sbr.rel (%p1627) target = $region72
        $region71: #{tpu_custom_call.1} parent=67 // pred_region
          %s1630 = sand.u32 %s253, 1
          %s1631 = scalar_lea.sflag [#allocation4], %s1630
          %s1632 = sand.u32 %s253, 1
          %s1633 = scalar_lea.vmem [#allocation3], %s1632
          %1634 = dma.done %s1631, 16
        $region72: #{tpu_custom_call.1} parent=67 // pred_fallthru
          _
      $region68: #{tpu_custom_call.1} parent=5 // pred_fallthru
        _
    $region6: #{tpu_custom_call.1} parent=1 // loop_footer
      %s23 = sadd.s32 1, %s19
    $region7: #{tpu_custom_call.1} parent=1 // loop_footer_branch
      %18 = sbr.rel target = $region3
    $region8: #{tpu_custom_call.1} parent=1 // loop_exit
      _
    %1635 = vsyncpa [#allocation4], 1
    %s1636 = scalar_lea.sflag [#allocation4], 1
    %1637 = vsyncpa %s1636, 1

// kernel: tpu_custom_call.1
$region0: #{tpu_custom_call.1}
  #allocation0 [shape = 'u32[]', space=smem, size = 0x4, offset = 0x4, fixed_abs, tag = 'smem constant byte address 0x4 - core index']
  #allocation1 [shape = 'u32[144,128]{1,0:T(1,128)}', space=vmem, size = 0x12000, scoped, tag = 'internal scratch']
  #allocation2 [shape = 'bf16[16,192]{1,0:T(8,128)(2,1)}', space=vmem, size = 0x2000, scoped, tag = 'scratch operand']
  %s0 = inlined_call_operand.vmem [shape: bf16[32,32], index: 0, kind: input, shape index: {}]
  %s1 = inlined_call_operand.vmem [shape: s32[32,6], index: 1, kind: input, shape index: {}]
  %s2 = inlined_call_operand.vmem [shape: bf16[2,32], index: 2, kind: input, shape index: {}]
  %s3 = inlined_call_operand.vmem [shape: bf16[32,32], index: 3, kind: input, shape index: {}]
  %s4 = inlined_call_operand.vmem [shape: bf16[16,32], index: 4, kind: input, shape index: {}]
  %s5 = inlined_call_operand.vmem [shape: bf16[64,48], index: 5, kind: input, shape index: {}]
  %s6 = inlined_call_operand.vmem [shape: bf16[96,130], index: 6, kind: input, shape index: {}]
  %s7 = inlined_call_operand.vmem [shape: f32[1,130], index: 7, kind: input, shape index: {}]
  %s8 = inlined_call_operand.vmem [shape: bf16[192,130], index: 8, kind: input, shape index: {}]
  %s9 = inlined_call_operand.vmem [shape: f32[1,130], index: 9, kind: input, shape index: {}]
  %s10 = inlined_call_operand.hbm [shape: f32[1,256], index: 10, kind: output, shape index: {}]
  %s11 = sld [smem:[#allocation0]]
  $region73: #{tpu_custom_call.1} parent=0
    _
  %s13 = ssub.s32 1, %s11
  %s14 = scalar_select 0, %s13, %s11
  $region1: #{tpu_custom_call.1} parent=0
    #allocation3 [shape = 'u8[1024]{0}', space=vmem, size = 0x400, scoped, tag = 'output window, operand 0']
    #allocation4 [shape = 's32[2]{0}', space=sflag, size = 0x8, scoped, tag = 'scoped memory for tpu_custom_call.1']
    %15 = vsyncpa [#allocation4], 0
    %s16 = scalar_lea.sflag [#allocation4], 1
    %17 = vsyncpa %s16, 0
    loop: start=0, step=1, limit=4
    $region2: #{tpu_custom_call.1} parent=1 // loop_pre_header
      _
    $region3: #{tpu_custom_call.1} parent=1 // loop_header
      %s19 = sphi 0, %s23
      %p20 = scmp.ge.s32.totalorder %s19, 4
      %s29 = sphi 0, %s31
      %s32 = sphi 0, %s29
      %s33 = sphi 0, %s32
      %s49 = sphi 0, %s33
      %s55 = sphi 0, %s57
      %s58 = sphi 0, %s55
      %s59 = sphi 0, %s58
      %s75 = sphi 0, %s59
      %s79 = sphi 0, %s79
      %s81 = sphi 0, %s79
      %s82 = sphi 0, %s81
      %s96 = sphi 0, %s82
      %s100 = sphi 0, %s100
      %s102 = sphi 0, %s100
      %s103 = sphi 0, %s102
      %s117 = sphi 0, %s103
      %s121 = sphi 0, %s121
      %s123 = sphi 0, %s121
      %s124 = sphi 0, %s123
      %s138 = sphi 0, %s124
      %s142 = sphi 0, %s142
      %s144 = sphi 0, %s142
      %s145 = sphi 0, %s144
      %s159 = sphi 0, %s145
      %s163 = sphi 0, %s163
      %s165 = sphi 0, %s163
      %s166 = sphi 0, %s165
      %s180 = sphi 0, %s166
      %s184 = sphi 0, %s184
      %s186 = sphi 0, %s184
      %s187 = sphi 0, %s186
      %s201 = sphi 0, %s187
      %s205 = sphi 0, %s205
      %s207 = sphi 0, %s205
      %s208 = sphi 0, %s207
      %s222 = sphi 0, %s208
      %s226 = sphi 0, %s226
      %s228 = sphi 0, %s226
      %s229 = sphi 0, %s228
      %s243 = sphi 0, %s229
      %s249 = sphi 0, %s251
      %s252 = sphi 0, %s249
      %s253 = sphi 0, %s252
      %s269 = sphi 0, %s253
    $region4: #{tpu_custom_call.1} parent=1 // loop_header_branch
      %22 = sbr.rel (%p20) target = $region8
    $region5: #{tpu_custom_call.1} parent=1 // loop_body
      %s24 = ssub.s32 %s19, 1
      %s25 = ssub.s32 %s19, 2
      %s26 = sadd.s32 %s19, 1
      %s27 = ssub.s32 %s19, %s26
      %p28 = scmp.eq.s32.totalorder %s27, 0
      %s30 = sadd.s32 %s29, 1
      %s31 = scalar_select %p28, %s29, %s30
      %p34 = pneg %p28
      %p35 = scmp.eq.s32.totalorder %s19, 1
      %p36 = por %p34, %p35
      %p37 = scmp.ne.s32.totalorder %s29, %s32
      %p38 = scmp.eq.s32.totalorder %s19, 0
      %p39 = por %p37, %p38
      %p40 = scmp.ne.s32.totalorder %s29, %s32
      %p41 = scmp.eq.s32.totalorder %s24, 1
      %p42 = por %p40, %p41
      %p43 = scmp.ne.s32.totalorder %s32, %s33
      %p44 = scmp.eq.s32.totalorder %s24, 0
      %p45 = por %p43, %p44
      %p46 = scmp.ne.s32.totalorder %s32, %s33
      %p47 = scmp.eq.s32.totalorder %s25, 1
      %p48 = por %p46, %p47
      %p50 = scmp.ne.s32.totalorder %s33, %s49
      %p51 = scmp.eq.s32.totalorder %s25, 0
      %p52 = por %p50, %p51
      %s53 = ssub.s32 %s19, %s26
      %p54 = scmp.eq.s32.totalorder %s53, 0
      %s56 = sadd.s32 %s55, 1
      %s57 = scalar_select %p54, %s55, %s56
      %p60 = pneg %p54
      %p61 = scmp.eq.s32.totalorder %s19, 1
      %p62 = por %p60, %p61
      %p63 = scmp.ne.s32.totalorder %s55, %s58
      %p64 = scmp.eq.s32.totalorder %s19, 0
      %p65 = por %p63, %p64
      %p66 = scmp.ne.s32.totalorder %s55, %s58
      %p67 = scmp.eq.s32.totalorder %s24, 1
      %p68 = por %p66, %p67
      %p69 = scmp.ne.s32.totalorder %s58, %s59
      %p70 = scmp.eq.s32.totalorder %s24, 0
      %p71 = por %p69, %p70
      %p72 = scmp.ne.s32.totalorder %s58, %s59
      %p73 = scmp.eq.s32.totalorder %s25, 1
      %p74 = por %p72, %p73
      %p76 = scmp.ne.s32.totalorder %s59, %s75
      %p77 = scmp.eq.s32.totalorder %s25, 0
      %p78 = por %p76, %p77
      %s80 = sadd.s32 %s79, 1
      %p83 = scmp.eq.s32.totalorder %s19, 1
      %p84 = scmp.ne.s32.totalorder %s79, %s81
      %p85 = scmp.eq.s32.totalorder %s19, 0
      %p86 = por %p84, %p85
      %p87 = scmp.ne.s32.totalorder %s79, %s81
      %p88 = scmp.eq.s32.totalorder %s24, 1
      %p89 = por %p87, %p88
      %p90 = scmp.ne.s32.totalorder %s81, %s82
      %p91 = scmp.eq.s32.totalorder %s24, 0
      %p92 = por %p90, %p91
      %p93 = scmp.ne.s32.totalorder %s81, %s82
      %p94 = scmp.eq.s32.totalorder %s25, 1
      %p95 = por %p93, %p94
      %p97 = scmp.ne.s32.totalorder %s82, %s96
      %p98 = scmp.eq.s32.totalorder %s25, 0
      %p99 = por %p97, %p98
      %s101 = sadd.s32 %s100, 1
      %p104 = scmp.eq.s32.totalorder %s19, 1
      %p105 = scmp.ne.s32.totalorder %s100, %s102
      %p106 = scmp.eq.s32.totalorder %s19, 0
      %p107 = por %p105, %p106
      %p108 = scmp.ne.s32.totalorder %s100, %s102
      %p109 = scmp.eq.s32.totalorder %s24, 1
      %p110 = por %p108, %p109
      %p111 = scmp.ne.s32.totalorder %s102, %s103
      %p112 = scmp.eq.s32.totalorder %s24, 0
      %p113 = por %p111, %p112
      %p114 = scmp.ne.s32.totalorder %s102, %s103
      %p115 = scmp.eq.s32.totalorder %s25, 1
      %p116 = por %p114, %p115
      %p118 = scmp.ne.s32.totalorder %s103, %s117
      %p119 = scmp.eq.s32.totalorder %s25, 0
      %p120 = por %p118, %p119
      %s122 = sadd.s32 %s121, 1
      %p125 = scmp.eq.s32.totalorder %s19, 1
      %p126 = scmp.ne.s32.totalorder %s121, %s123
      %p127 = scmp.eq.s32.totalorder %s19, 0
      %p128 = por %p126, %p127
      %p129 = scmp.ne.s32.totalorder %s121, %s123
      %p130 = scmp.eq.s32.totalorder %s24, 1
      %p131 = por %p129, %p130
      %p132 = scmp.ne.s32.totalorder %s123, %s124
      %p133 = scmp.eq.s32.totalorder %s24, 0
      %p134 = por %p132, %p133
      %p135 = scmp.ne.s32.totalorder %s123, %s124
      %p136 = scmp.eq.s32.totalorder %s25, 1
      %p137 = por %p135, %p136
      %p139 = scmp.ne.s32.totalorder %s124, %s138
      %p140 = scmp.eq.s32.totalorder %s25, 0
      %p141 = por %p139, %p140
      %s143 = sadd.s32 %s142, 1
      %p146 = scmp.eq.s32.totalorder %s19, 1
      %p147 = scmp.ne.s32.totalorder %s142, %s144
      %p148 = scmp.eq.s32.totalorder %s19, 0
      %p149 = por %p147, %p148
      %p150 = scmp.ne.s32.totalorder %s142, %s144
      %p151 = scmp.eq.s32.totalorder %s24, 1
      %p152 = por %p150, %p151
      %p153 = scmp.ne.s32.totalorder %s144, %s145
      %p154 = scmp.eq.s32.totalorder %s24, 0
      %p155 = por %p153, %p154
      %p156 = scmp.ne.s32.totalorder %s144, %s145
      %p157 = scmp.eq.s32.totalorder %s25, 1
      %p158 = por %p156, %p157
      %p160 = scmp.ne.s32.totalorder %s145, %s159
      %p161 = scmp.eq.s32.totalorder %s25, 0
      %p162 = por %p160, %p161
      %s164 = sadd.s32 %s163, 1
      %p167 = scmp.eq.s32.totalorder %s19, 1
      %p168 = scmp.ne.s32.totalorder %s163, %s165
      %p169 = scmp.eq.s32.totalorder %s19, 0
      %p170 = por %p168, %p169
      %p171 = scmp.ne.s32.totalorder %s163, %s165
      %p172 = scmp.eq.s32.totalorder %s24, 1
      %p173 = por %p171, %p172
      %p174 = scmp.ne.s32.totalorder %s165, %s166
      %p175 = scmp.eq.s32.totalorder %s24, 0
      %p176 = por %p174, %p175
      %p177 = scmp.ne.s32.totalorder %s165, %s166
      %p178 = scmp.eq.s32.totalorder %s25, 1
      %p179 = por %p177, %p178
      %p181 = scmp.ne.s32.totalorder %s166, %s180
      %p182 = scmp.eq.s32.totalorder %s25, 0
      %p183 = por %p181, %p182
      %s185 = sadd.s32 %s184, 1
      %p188 = scmp.eq.s32.totalorder %s19, 1
      %p189 = scmp.ne.s32.totalorder %s184, %s186
      %p190 = scmp.eq.s32.totalorder %s19, 0
      %p191 = por %p189, %p190
      %p192 = scmp.ne.s32.totalorder %s184, %s186
      %p193 = scmp.eq.s32.totalorder %s24, 1
      %p194 = por %p192, %p193
      %p195 = scmp.ne.s32.totalorder %s186, %s187
      %p196 = scmp.eq.s32.totalorder %s24, 0
      %p197 = por %p195, %p196
      %p198 = scmp.ne.s32.totalorder %s186, %s187
      %p199 = scmp.eq.s32.totalorder %s25, 1
      %p200 = por %p198, %p199
      %p202 = scmp.ne.s32.totalorder %s187, %s201
      %p203 = scmp.eq.s32.totalorder %s25, 0
      %p204 = por %p202, %p203
      %s206 = sadd.s32 %s205, 1
      %p209 = scmp.eq.s32.totalorder %s19, 1
      %p210 = scmp.ne.s32.totalorder %s205, %s207
      %p211 = scmp.eq.s32.totalorder %s19, 0
      %p212 = por %p210, %p211
      %p213 = scmp.ne.s32.totalorder %s205, %s207
      %p214 = scmp.eq.s32.totalorder %s24, 1
      %p215 = por %p213, %p214
      %p216 = scmp.ne.s32.totalorder %s207, %s208
      %p217 = scmp.eq.s32.totalorder %s24, 0
      %p218 = por %p216, %p217
      %p219 = scmp.ne.s32.totalorder %s207, %s208
      %p220 = scmp.eq.s32.totalorder %s25, 1
      %p221 = por %p219, %p220
      %p223 = scmp.ne.s32.totalorder %s208, %s222
      %p224 = scmp.eq.s32.totalorder %s25, 0
      %p225 = por %p223, %p224
      %s227 = sadd.s32 %s226, 1
      %p230 = scmp.eq.s32.totalorder %s19, 1
      %p231 = scmp.ne.s32.totalorder %s226, %s228
      %p232 = scmp.eq.s32.totalorder %s19, 0
      %p233 = por %p231, %p232
      %p234 = scmp.ne.s32.totalorder %s226, %s228
      %p235 = scmp.eq.s32.totalorder %s24, 1
      %p236 = por %p234, %p235
      %p237 = scmp.ne.s32.totalorder %s228, %s229
      %p238 = scmp.eq.s32.totalorder %s24, 0
      %p239 = por %p237, %p238
      %p240 = scmp.ne.s32.totalorder %s228, %s229
      %p241 = scmp.eq.s32.totalorder %s25, 1
      %p242 = por %p240, %p241
      %p244 = scmp.ne.s32.totalorder %s229, %s243
      %p245 = scmp.eq.s32.totalorder %s25, 0
      %p246 = por %p244, %p245
      %s247 = ssub.s32 %s19, %s26
      %p248 = scmp.eq.s32.totalorder %s247, 0
      %s250 = sadd.s32 %s249, 1
      %s251 = scalar_select %p248, %s249, %s250
      %p254 = pneg %p248
      %p255 = scmp.eq.s32.totalorder %s19, 1
      %p256 = por %p254, %p255
      %p257 = scmp.ne.s32.totalorder %s249, %s252
      %p258 = scmp.eq.s32.totalorder %s19, 0
      %p259 = por %p257, %p258
      %p260 = scmp.ne.s32.totalorder %s249, %s252
      %p261 = scmp.eq.s32.totalorder %s24, 1
      %p262 = por %p260, %p261
      %p263 = scmp.ne.s32.totalorder %s252, %s253
      %p264 = scmp.eq.s32.totalorder %s24, 0
      %p265 = por %p263, %p264
      %p266 = scmp.ne.s32.totalorder %s252, %s253
      %p267 = scmp.eq.s32.totalorder %s25, 1
      %p268 = por %p266, %p267
      %p270 = scmp.ne.s32.totalorder %s253, %s269
      %p271 = scmp.eq.s32.totalorder %s25, 0
      %p272 = por %p270, %p271
      %p273 = scmp.le.s32.totalorder 1, %s19
      %p274 = scmp.lt.s32.totalorder %s19, 3
      %p275 = pnand %p273, %p274
      %p276 = pneg %p275
      // Predicated region
      $region9: #{tpu_custom_call.1} parent=5 // pred_check
        _
      $region10: #{tpu_custom_call.1} parent=5 // pred_check_branch
        %278 = sbr.rel (%p275) target = $region12
      $region11: #{tpu_custom_call.1} parent=5 // pred_region
        %s279 = ssub.s32 %s19, 1
        // Predicated region
        $region13: #{tpu_custom_call.1} parent=11 // pred_check
          %p280 = pneg %p92
        $region14: #{tpu_custom_call.1} parent=11 // pred_check_branch
          %282 = sbr.rel (%p280) target = $region16
        $region15: #{tpu_custom_call.1} parent=11 // pred_region
          _
        $region16: #{tpu_custom_call.1} parent=11 // pred_fallthru
          _
        // Predicated region
        $region17: #{tpu_custom_call.1} parent=11 // pred_check
          %p283 = pneg %p113
        $region18: #{tpu_custom_call.1} parent=11 // pred_check_branch
          %285 = sbr.rel (%p283) target = $region20
        $region19: #{tpu_custom_call.1} parent=11 // pred_region
          _
        $region20: #{tpu_custom_call.1} parent=11 // pred_fallthru
          _
        // Predicated region
        $region21: #{tpu_custom_call.1} parent=11 // pred_check
          %p286 = pneg %p134
        $region22: #{tpu_custom_call.1} parent=11 // pred_check_branch
          %288 = sbr.rel (%p286) target = $region24
        $region23: #{tpu_custom_call.1} parent=11 // pred_region
          _
        $region24: #{tpu_custom_call.1} parent=11 // pred_fallthru
          _
        // Predicated region
        $region25: #{tpu_custom_call.1} parent=11 // pred_check
          %p289 = pneg %p155
        $region26: #{tpu_custom_call.1} parent=11 // pred_check_branch
          %291 = sbr.rel (%p289) target = $region28
        $region27: #{tpu_custom_call.1} parent=11 // pred_region
          _
        $region28: #{tpu_custom_call.1} parent=11 // pred_fallthru
          _
        // Predicated region
        $region29: #{tpu_custom_call.1} parent=11 // pred_check
          %p292 = pneg %p176
        $region30: #{tpu_custom_call.1} parent=11 // pred_check_branch
          %294 = sbr.rel (%p292) target = $region32
        $region31: #{tpu_custom_call.1} parent=11 // pred_region
          _
        $region32: #{tpu_custom_call.1} parent=11 // pred_fallthru
          _
        // Predicated region
        $region33: #{tpu_custom_call.1} parent=11 // pred_check
          %p295 = pneg %p197
        $region34: #{tpu_custom_call.1} parent=11 // pred_check_branch
          %297 = sbr.rel (%p295) target = $region36
        $region35: #{tpu_custom_call.1} parent=11 // pred_region
          _
        $region36: #{tpu_custom_call.1} parent=11 // pred_fallthru
          _
        // Predicated region
        $region37: #{tpu_custom_call.1} parent=11 // pred_check
          %p298 = pneg %p218
        $region38: #{tpu_custom_call.1} parent=11 // pred_check_branch
          %300 = sbr.rel (%p298) target = $region40
        $region39: #{tpu_custom_call.1} parent=11 // pred_region
          _
        $region40: #{tpu_custom_call.1} parent=11 // pred_fallthru
          _
        // Predicated region
        $region41: #{tpu_custom_call.1} parent=11 // pred_check
          %p301 = pneg %p239
        $region42: #{tpu_custom_call.1} parent=11 // pred_check_branch
          %303 = sbr.rel (%p301) target = $region44
        $region43: #{tpu_custom_call.1} parent=11 // pred_region
          _
        $region44: #{tpu_custom_call.1} parent=11 // pred_fallthru
          _
      $region12: #{tpu_custom_call.1} parent=5 // pred_fallthru
        _
      %p304 = scmp.lt.s32.totalorder %s19, 2
      // Predicated region
      $region45: #{tpu_custom_call.1} parent=5 // pred_check
        %p305 = pneg %p304
      $region46: #{tpu_custom_call.1} parent=5 // pred_check_branch
        %307 = sbr.rel (%p305) target = $region48
      $region47: #{tpu_custom_call.1} parent=5 // pred_region
        // Predicated region
        $region49: #{tpu_custom_call.1} parent=47 // pred_check
          %p308 = pneg %p39
        $region50: #{tpu_custom_call.1} parent=47 // pred_check_branch
          %310 = sbr.rel (%p308) target = $region52
        $region51: #{tpu_custom_call.1} parent=47 // pred_region
          %s311 = smul.u32 2, %s19
          %p312 = scmp.lt.s32.totalorder %s311, 3
          %s313 = scalar_select %p312, %s311, 3
          %s314 = smul.addr %s313, 4
          %s315 = scalar_lea.vmem %s0, %s314
          %s316 = smul.u32 2, %s19
        $region52: #{tpu_custom_call.1} parent=47 // pred_fallthru
          _
        // Predicated region
        $region53: #{tpu_custom_call.1} parent=47 // pred_check
          %p317 = pneg %p65
        $region54: #{tpu_custom_call.1} parent=47 // pred_check_branch
          %319 = sbr.rel (%p317) target = $region56
        $region55: #{tpu_custom_call.1} parent=47 // pred_region
          %s320 = smul.u32 2, %s19
          %p321 = scmp.lt.s32.totalorder %s320, 3
          %s322 = scalar_select %p321, %s320, 3
          %s323 = smul.addr %s322, 8
          %s324 = scalar_lea.vmem %s1, %s323
          %s325 = smul.u32 2, %s19
        $region56: #{tpu_custom_call.1} parent=47 // pred_fallthru
          _
      $region48: #{tpu_custom_call.1} parent=5 // pred_fallthru
        _
      %p326 = scmp.le.s32.totalorder 1, %s19
      %p327 = scmp.lt.s32.totalorder %s19, 3
      %p328 = pnand %p326, %p327
      %p329 = pneg %p328
      // Predicated region
      $region57: #{tpu_custom_call.1} parent=5 // pred_check
        _
      $region58: #{tpu_custom_call.1} parent=5 // pred_check_branch
        %331 = sbr.rel (%p328) target = $region60
      $region59: #{tpu_custom_call.1} parent=5 // pred_region
        %s332 = ssub.s32 %s19, 1
        %s333 = smul.u32 2, %s24
        %p334 = scmp.lt.s32.totalorder %s333, 3
        %s335 = scalar_select %p334, %s333, 3
        %s336 = smul.addr %s335, 4
        %s337 = scalar_lea.vmem %s0, %s336
        %p338 = pneg %p45
        %p339 = pneg %p42
        %s340 = smul.u32 2, %s24
        %p341 = scmp.lt.s32.totalorder %s340, 3
        %s342 = scalar_select %p341, %s340, 3
        %s343 = smul.addr %s342, 8
        %s344 = scalar_lea.vmem %s1, %s343
        %p345 = pneg %p71
        %p346 = pneg %p68
        %p347 = pneg %p92
        %p348 = pneg %p89
        %p349 = pneg %p113
        %p350 = pneg %p110
        %p351 = pneg %p134
        %p352 = pneg %p131
        %p353 = pneg %p155
        %p354 = pneg %p152
        %p355 = pneg %p176
        %p356 = pneg %p173
        %p357 = pneg %p197
        %p358 = pneg %p194
        %p359 = pneg %p218
        %p360 = pneg %p215
        %p361 = pneg %p239
        %p362 = pneg %p236
        %p363 = pneg %p265
        %p364 = pneg %p262
        %s365 = sand.u32 %s252, 1
        %s366 = scalar_lea.sflag [#allocation4], %s365
        %s367 = sand.u32 %s252, 1
        %s368 = scalar_lea.vmem [#allocation3], %s367
        %s369 = smul.u32 2, %s24
        %p370 = scmp.lt.s32.totalorder %s369, 3
        %s371 = scalar_select %p370, %s369, 3
        %s372 = smul.addr %s371, 4
        %s373 = scalar_lea.vmem %s0, %s372
        %s374 = smul.u32 2, %s24
        %s375 = smul.u32 2, %s24
        %p376 = scmp.lt.s32.totalorder %s375, 3
        %s377 = scalar_select %p376, %s375, 3
        %s378 = smul.addr %s377, 8
        %s379 = scalar_lea.vmem %s1, %s378
        %s380 = smul.u32 2, %s24
        %s382 = smul.u32 %s24, 16
        %v383 = vlaneseq
        %v384 = vshrl.u32 %v383, 7
        %v385 = vadd.s32 %v384, 8
        %v386 = vstv %s382
        %v387 = vadd.s32 %v386, %v384
        %v388 = vadd.s32 %v386, %v385
        %vm389 = vcmp.lt.s32.totalorder %v387, 18
        %vm390 = vcmp.lt.s32.totalorder %v388, 18
        %v391 = vsel %vm389, 1, 0
        %v392 = vsel %vm390, 1, 0
        %v393 = vcvt.s32.f32 %v391
        %v394 = vcvt.s32.f32 %v392
        %v395 = vld [vmem:[%s373] sm:$0xf]
        %v396 = vld [vmem:[%s373 + $0x4] sm:$0xf]
        %vm397 = vcmask 257024
        %398 = vst.msk [vmem:[#allocation2] sm:$0xf] %vm397, %v395
        %399 = vst.msk [vmem:[#allocation2 + $0x8] sm:$0xf] %vm397, %v396
        %v400 = vld [vmem:[%s2] sm:$0x1]
        %v401 = vld [vmem:[%s3] sm:$0xf]
        %v402 = vld [vmem:[%s3 + $0x4] sm:$0xf]
        %v403 = vld [vmem:[%s3 + $0x8] sm:$0xf]
        %v404 = vld [vmem:[%s3 + $0xc] sm:$0xf]
        %v405 = vld [vmem:[%s4] sm:$0xf]
        %v406 = vld [vmem:[%s4 + $0x4] sm:$0xf]
        %v407 = vld [vmem:[%s5] sm:$0xf]
        %v408 = vld [vmem:[%s5 + $0x4] sm:$0xf]
        %v409 = vld [vmem:[%s5 + $0x8] sm:$0xf]
        %v410 = vld [vmem:[%s5 + $0xc] sm:$0xf]
        %v411 = vld [vmem:[%s5 + $0x10] sm:$0xf]
        %v412 = vld [vmem:[%s5 + $0x14] sm:$0xf]
        %v413 = vld [vmem:[%s5 + $0x18] sm:$0xf]
        %v414 = vld [vmem:[%s5 + $0x1c] sm:$0xf]
        %v415 = vld [vmem:[%s379] sm:$0xff]
        %v416 = vld [vmem:[%s379 + $0x8] sm:$0xff]
        %v417 = vlaneseq
        %v418 = vand.u32 %v417, 127
        %419 = vset.pattern.permute.xlu0 0
        %420 = vperm.xlu0 %419, %v415
        %v421 = vpop.permute.xlu0 %420
        %422 = vset.pattern.permute.xlu0 0
        %423 = vperm.xlu0 %422, %v416
        %v424 = vpop.permute.xlu0 %423
        %vm425 = vcmp.eq.s32.totalorder %v418, %v421
        %vm426 = vcmp.eq.s32.totalorder %v418, %v424
        %v427 = vsel %vm425, 1, 0
        %v428 = vsel %vm426, 1, 0
        %v429 = vcvt.s32.f32 %v427
        %v430 = vcvt.s32.f32 %v428
        %431 = vset.pattern.permute.xlu0 2
        %432 = vperm.xlu0 %431, %v415
        %v433 = vpop.permute.xlu0 %432
        %434 = vset.pattern.permute.xlu0 2
        %435 = vperm.xlu0 %434, %v416
        %v436 = vpop.permute.xlu0 %435
        %vm437 = vcmp.eq.s32.totalorder %v418, %v433
        %vm438 = vcmp.eq.s32.totalorder %v418, %v436
        %v439 = vsel %vm437, 1, 0
        %v440 = vsel %vm438, 1, 0
        %v441 = vcvt.s32.f32 %v439
        %v442 = vcvt.s32.f32 %v440
        %443 = vset.pattern.permute.xlu0 4
        %444 = vperm.xlu0 %443, %v415
        %v445 = vpop.permute.xlu0 %444
        %446 = vset.pattern.permute.xlu0 4
        %447 = vperm.xlu0 %446, %v416
        %v448 = vpop.permute.xlu0 %447
        %vm449 = vcmp.eq.s32.totalorder %v418, %v445
        %vm450 = vcmp.eq.s32.totalorder %v418, %v448
        %v451 = vsel %vm449, 1, 0
        %v452 = vsel %vm450, 1, 0
        %v453 = vcvt.s32.f32 %v451
        %v454 = vcvt.s32.f32 %v452
        %v455 = vpack.c.bf16 %v430, %v429
        %vm456 = vcmask 15360
        %v458 = vsel %vm456, %v455, 0
        %vm460 = vcmask 1040384
        %v462 = vsel %vm460, %v400, 0
        %464 = vmatprep.subr.bf16.mxu0 0
        %465 = vmatpush1.bf16.msra.mxu0 0
        %466 = vmatprep.subr.bf16.mxu0 0
        %467 = vmatpush1.bf16.msra.mxu0 0
        %468 = vmatprep.subr.bf16.mxu0 0
        %469 = vmatpush1.bf16.msra.mxu0 0
        %470 = vmatprep.subr.bf16.mxu0 0
        %471 = vmatpush1.bf16.msra.mxu0 0
        %472 = vmatprep.subr.bf16.mxu0 0
        %473 = vmatpush1.bf16.msra.mxu0 0
        %474 = vmatprep.subr.bf16.mxu0 0
        %475 = vmatpush1.bf16.msra.mxu0 0
        %476 = vmatprep.subr.bf16.mxu0 0
        %477 = vmatpush1.bf16.msra.mxu0 0
        %478 = vmatprep.subr.bf16.mxu0 0
        %479 = vmatpush1.bf16.msra.mxu0 %v462
        %480 = vmatprep.subr.bf16.mxu0 0
        %481 = vmatpush2.bf16.msra.mxu0 0
        %482 = vmatprep.subr.bf16.mxu0 0
        %483 = vmatpush2.bf16.msra.mxu0 0
        %484 = vmatprep.subr.bf16.mxu0 0
        %485 = vmatpush2.bf16.msra.mxu0 0
        %486 = vmatprep.subr.bf16.mxu0 0
        %487 = vmatpush2.bf16.msra.mxu0 0
        %488 = vmatprep.subr.bf16.mxu0 0
        %489 = vmatpush2.bf16.msra.mxu0 0
        %490 = vmatprep.subr.bf16.mxu0 0
        %491 = vmatpush2.bf16.msra.mxu0 0
        %492 = vmatprep.subr.bf16.mxu0 0
        %493 = vmatpush2.bf16.msra.mxu0 0
        %494 = vmatprep.subr.bf16.mxu0 0
        %495 = vmatpush2.bf16.msra.mxu0 0
        %496 = vmatprep.mubr.bf16.mxu0 0
        %497 = vmatmul.mubr.bf16.gmra.mxu0 %v458
        %v498 = vpop.f32.mrf.mxu0
        %v499 = vadd.f32 0.0, %v498
        %v500 = vpop.f32.mrf.mxu0
        %v501 = vpop.f32.mrf.mxu0
        %v502 = vadd.f32 0.0, %v501
        %v503 = vpop.f32.mrf.mxu0
        %504 = vdwg.mxu0
        %v505 = vpack.c.bf16 %v442, %v441
        %v510 = vunpack.c.l.b16 %v401
        %v511 = vunpack.c.l.b16 %v402
        %v512 = vunpack.c.l.b16 %v403
        %v513 = vunpack.c.l.b16 %v404
        %v514 = vpack.c.b16 %v511, %v510
        %v515 = vpack.c.b16 %v513, %v512
        %vm518 = vcmask 261120
        %v520 = vsel %vm518, %v505, 0
        %522 = vmatprep.subr.bf16.mxu0 0
        %523 = vmatpush1.bf16.msra.mxu0 0
        %524 = vmatprep.subr.bf16.mxu0 0
        %525 = vmatpush1.bf16.msra.mxu0 0
        %526 = vmatprep.subr.bf16.mxu0 0
        %527 = vmatpush1.bf16.msra.mxu0 0
        %528 = vmatprep.subr.bf16.mxu0 0
        %529 = vmatpush1.bf16.msra.mxu0 0
        %530 = vmatprep.subr.bf16.mxu0 0
        %531 = vmatpush1.bf16.msra.mxu0 0
        %532 = vmatprep.subr.bf16.mxu0 0
        %533 = vmatpush1.bf16.msra.mxu0 0
        %534 = vmatprep.subr.bf16.mxu0 0
        %535 = vmatpush1.bf16.msra.mxu0 %v515
        %536 = vmatprep.subr.bf16.mxu0 0
        %537 = vmatpush1.bf16.msra.mxu0 %v514
        %538 = vmatprep.subr.bf16.mxu0 0
        %539 = vmatpush2.bf16.msra.mxu0 0
        %540 = vmatprep.subr.bf16.mxu0 0
        %541 = vmatpush2.bf16.msra.mxu0 0
        %542 = vmatprep.subr.bf16.mxu0 0
        %543 = vmatpush2.bf16.msra.mxu0 0
        %544 = vmatprep.subr.bf16.mxu0 0
        %545 = vmatpush2.bf16.msra.mxu0 0
        %546 = vmatprep.subr.bf16.mxu0 0
        %547 = vmatpush2.bf16.msra.mxu0 0
        %548 = vmatprep.subr.bf16.mxu0 0
        %549 = vmatpush2.bf16.msra.mxu0 0
        %550 = vmatprep.subr.bf16.mxu0 0
        %551 = vmatpush2.bf16.msra.mxu0 0
        %552 = vmatprep.subr.bf16.mxu0 0
        %553 = vmatpush2.bf16.msra.mxu0 0
        %554 = vmatprep.mubr.bf16.mxu0 0
        %555 = vmatmul.mubr.bf16.gmra.mxu0 %v520
        %v556 = vpop.f32.mrf.mxu0
        %v557 = vadd.f32 0.0, %v556
        %v558 = vpop.f32.mrf.mxu0
        %v559 = vpop.f32.mrf.mxu0
        %v560 = vadd.f32 0.0, %v559
        %v561 = vpop.f32.mrf.mxu0
        %562 = vdwg.mxu0
        %v563 = vpack.c.bf16 %v502, %v499
        %v565 = vunpack.c.l.b16 %v563
        %v566 = vunpack.c.h.b16 %v563
        %v567 = vpack.c.b16 %v565, %v565
        %v568 = vpack.c.b16 %v566, %v566
        %569 = vrot.lane.b32.xlu0 %v567, 32
        %v570 = vpop.permute.xlu0 %569
        %571 = vrot.lane.b32.xlu0 %v568, 32
        %v572 = vpop.permute.xlu0 %571
        %vm575 = vcmask 519424
        %576 = vst.msk [vmem:[#allocation2] sm:$0xf] %vm575, %v570
        %577 = vst.msk [vmem:[#allocation2 + $0x8] sm:$0xf] %vm575, %v572
        %v578 = vpack.c.bf16 %v560, %v557
        %v580 = vunpack.c.l.b16 %v578
        %v581 = vunpack.c.h.b16 %v578
        %v582 = vpack.c.b16 %v580, %v580
        %v583 = vpack.c.b16 %v581, %v581
        %584 = vrot.lane.b32.xlu0 %v582, 64
        %v585 = vpop.permute.xlu0 %584
        %586 = vrot.lane.b32.xlu0 %v583, 64
        %v587 = vpop.permute.xlu0 %586
        %vm590 = vcmask 781824
        %591 = vst.msk [vmem:[#allocation2] sm:$0xf] %vm590, %v585
        %592 = vst.msk [vmem:[#allocation2 + $0x8] sm:$0xf] %vm590, %v587
        %v593 = vpack.c.bf16 %v454, %v453
        %v596 = vunpack.c.l.b16 %v405
        %v597 = vunpack.c.l.b16 %v406
        %v598 = vpack.c.b16 %v597, %v596
        %vm600 = vcmask 130048
        %v602 = vsel %vm600, %v593, 0
        %604 = vmatprep.subr.bf16.mxu0 0
        %605 = vmatpush1.bf16.msra.mxu0 0
        %606 = vmatprep.subr.bf16.mxu0 0
        %607 = vmatpush1.bf16.msra.mxu0 0
        %608 = vmatprep.subr.bf16.mxu0 0
        %609 = vmatpush1.bf16.msra.mxu0 0
        %610 = vmatprep.subr.bf16.mxu0 0
        %611 = vmatpush1.bf16.msra.mxu0 0
        %612 = vmatprep.subr.bf16.mxu0 0
        %613 = vmatpush1.bf16.msra.mxu0 0
        %614 = vmatprep.subr.bf16.mxu0 0
        %615 = vmatpush1.bf16.msra.mxu0 0
        %616 = vmatprep.subr.bf16.mxu0 0
        %617 = vmatpush1.bf16.msra.mxu0 0
        %618 = vmatprep.subr.bf16.mxu0 0
        %619 = vmatpush1.bf16.msra.mxu0 %v598
        %620 = vmatprep.subr.bf16.mxu0 0
        %621 = vmatpush2.bf16.msra.mxu0 0
        %622 = vmatprep.subr.bf16.mxu0 0
        %623 = vmatpush2.bf16.msra.mxu0 0
        %624 = vmatprep.subr.bf16.mxu0 0
        %625 = vmatpush2.bf16.msra.mxu0 0
        %626 = vmatprep.subr.bf16.mxu0 0
        %627 = vmatpush2.bf16.msra.mxu0 0
        %628 = vmatprep.subr.bf16.mxu0 0
        %629 = vmatpush2.bf16.msra.mxu0 0
        %630 = vmatprep.subr.bf16.mxu0 0
        %631 = vmatpush2.bf16.msra.mxu0 0
        %632 = vmatprep.subr.bf16.mxu0 0
        %633 = vmatpush2.bf16.msra.mxu0 0
        %634 = vmatprep.subr.bf16.mxu0 0
        %635 = vmatpush2.bf16.msra.mxu0 0
        %636 = vmatprep.mubr.bf16.mxu0 0
        %637 = vmatmul.mubr.bf16.gmra.mxu0 %v602
        %v638 = vpop.f32.mrf.mxu0
        %v639 = vadd.f32 0.0, %v638
        %v640 = vpop.f32.mrf.mxu0
        %v641 = vpop.f32.mrf.mxu0
        %v642 = vadd.f32 0.0, %v641
        %v643 = vpop.f32.mrf.mxu0
        %644 = vdwg.mxu0
        %v645 = vpack.c.bf16 %v642, %v639
        %v647 = vunpack.c.l.b16 %v645
        %v648 = vunpack.c.h.b16 %v645
        %v649 = vpack.c.b16 %v647, %v647
        %v650 = vpack.c.b16 %v648, %v648
        %651 = vrot.lane.b32.xlu0 %v649, 96
        %v652 = vpop.permute.xlu0 %651
        %653 = vrot.lane.b32.xlu0 %v650, 96
        %v654 = vpop.permute.xlu0 %653
        %vm657 = vcmask 1044224
        %658 = vst.msk [vmem:[#allocation2] sm:$0xf] %vm657, %v652
        %659 = vst.msk [vmem:[#allocation2 + $0x8] sm:$0xf] %vm657, %v654
        %v660 = vld [vmem:[#allocation2] sm:$0xf]
        %v661 = vld [vmem:[#allocation2 + $0x8] sm:$0xf]
        %v662 = vld [vmem:[%s6] sm:$0xff]
        %v663 = vld [vmem:[%s6 + $0x8] sm:$0xff]
        %v664 = vld [vmem:[%s6 + $0x10] sm:$0xff]
        %v665 = vld [vmem:[%s6 + $0x18] sm:$0xff]
        %v666 = vld [vmem:[%s6 + $0x20] sm:$0xff]
        %v667 = vld [vmem:[%s6 + $0x28] sm:$0xff]
        %v668 = vld [vmem:[%s6 + $0x30] sm:$0xff]
        %v669 = vld [vmem:[%s6 + $0x38] sm:$0xff]
        %v670 = vld [vmem:[%s6 + $0x40] sm:$0xff]
        %v671 = vld [vmem:[%s6 + $0x48] sm:$0xff]
        %v672 = vld [vmem:[%s6 + $0x50] sm:$0xff]
        %v673 = vld [vmem:[%s6 + $0x58] sm:$0xff]
        %v674 = vld [vmem:[%s7] sm:$0x3]
        %v676 = vlaneseq
        %v677 = vshrl.u32 %v676, 7
        %v678 = vsub.s32 0, %v677
        %v679 = vrot.slane %v674, %v678
        %v680 = vlaneseq
        %v681 = vshrl.u32 %v680, 7
        %v682 = vsub.s32 1, %v681
        %v683 = vrot.slane %v674, %v682
        %v688 = vunpack.c.l.b16 %v660
        %v689 = vunpack.c.l.b16 %v661
        %v690 = vpack.c.b16 %v689, %v688
        %v703 = vunpack.c.l.b16 %v662
        %v704 = vunpack.c.h.b16 %v662
        %v705 = vunpack.c.l.b16 %v663
        %v706 = vunpack.c.h.b16 %v663
        %v707 = vunpack.c.l.b16 %v664
        %v708 = vunpack.c.h.b16 %v664
        %v709 = vunpack.c.l.b16 %v665
        %v710 = vunpack.c.h.b16 %v665
        %v711 = vunpack.c.l.b16 %v666
        %v712 = vunpack.c.h.b16 %v666
        %v713 = vunpack.c.l.b16 %v667
        %v714 = vunpack.c.h.b16 %v667
        %v715 = vunpack.c.l.b16 %v668
        %v716 = vunpack.c.h.b16 %v668
        %v717 = vunpack.c.l.b16 %v669
        %v718 = vunpack.c.h.b16 %v669
        %v719 = vunpack.c.l.b16 %v670
        %v720 = vunpack.c.h.b16 %v670
        %v721 = vunpack.c.l.b16 %v671
        %v722 = vunpack.c.h.b16 %v671
        %v723 = vunpack.c.l.b16 %v672
        %v724 = vunpack.c.h.b16 %v672
        %v725 = vunpack.c.l.b16 %v673
        %v726 = vunpack.c.h.b16 %v673
        %v727 = vpack.c.b16 %v705, %v703
        %v728 = vpack.c.b16 %v706, %v704
        %v729 = vpack.c.b16 %v709, %v707
        %v730 = vpack.c.b16 %v710, %v708
        %v731 = vpack.c.b16 %v713, %v711
        %v732 = vpack.c.b16 %v714, %v712
        %v733 = vpack.c.b16 %v717, %v715
        %v734 = vpack.c.b16 %v718, %v716
        %v735 = vpack.c.b16 %v721, %v719
        %v736 = vpack.c.b16 %v722, %v720
        %v737 = vpack.c.b16 %v725, %v723
        %v738 = vpack.c.b16 %v726, %v724
        %vm751 = vcmask 785408
        %v753 = vsel %vm751, %v690, 0
        %755 = vmatprep.subr.bf16.mxu0 0
        %756 = vmatpush1.bf16.msra.mxu0 0
        %757 = vmatprep.subr.bf16.mxu0 0
        %758 = vmatpush1.bf16.msra.mxu0 0
        %759 = vmatprep.subr.bf16.mxu0 %v738
        %760 = vmatpush1.bf16.msra.mxu0 %v737
        %761 = vmatprep.subr.bf16.mxu0 %v736
        %762 = vmatpush1.bf16.msra.mxu0 %v735
        %763 = vmatprep.subr.bf16.mxu0 %v734
        %764 = vmatpush1.bf16.msra.mxu0 %v733
        %765 = vmatprep.subr.bf16.mxu0 %v732
        %766 = vmatpush1.bf16.msra.mxu0 %v731
        %767 = vmatprep.subr.bf16.mxu0 %v730
        %768 = vmatpush1.bf16.msra.mxu0 %v729
        %769 = vmatprep.subr.bf16.mxu0 %v728
        %770 = vmatpush1.bf16.msra.mxu0 %v727
        %771 = vmatprep.subr.bf16.mxu0 0
        %772 = vmatpush2.bf16.msra.mxu0 0
        %773 = vmatprep.subr.bf16.mxu0 0
        %774 = vmatpush2.bf16.msra.mxu0 0
        %775 = vmatprep.subr.bf16.mxu0 0
        %776 = vmatpush2.bf16.msra.mxu0 0
        %777 = vmatprep.subr.bf16.mxu0 0
        %778 = vmatpush2.bf16.msra.mxu0 0
        %779 = vmatprep.subr.bf16.mxu0 0
        %780 = vmatpush2.bf16.msra.mxu0 0
        %781 = vmatprep.subr.bf16.mxu0 0
        %782 = vmatpush2.bf16.msra.mxu0 0
        %783 = vmatprep.subr.bf16.mxu0 0
        %784 = vmatpush2.bf16.msra.mxu0 0
        %785 = vmatprep.subr.bf16.mxu0 0
        %786 = vmatpush2.bf16.msra.mxu0 0
        %787 = vmatprep.mubr.bf16.mxu0 0
        %788 = vmatmul.mubr.bf16.gmra.mxu0 %v753
        %v789 = vpop.f32.mrf.mxu0
        %v790 = vadd.f32 %v679, %v789
        %v791 = vpop.f32.mrf.mxu0
        %v792 = vadd.f32 %v683, %v791
        %v793 = vpop.f32.mrf.mxu0
        %v794 = vadd.f32 %v679, %v793
        %v795 = vpop.f32.mrf.mxu0
        %v796 = vadd.f32 %v683, %v795
        %797 = vdwg.mxu0
        %v798 = vxor.u32 %v790, 2147483648
        %v799 = vxor.u32 %v794, 2147483648
        %v800 = vmul.f32 %v798, 1.442695
        %v801 = vpow.pop %v800
        %v802 = vmul.f32 %v799, 1.442695
        %v803 = vpow.pop %v802
        %v804 = vadd.f32 %v801, 1.0
        %v805 = vadd.f32 %v803, 1.0
        %v806 = vrcp.pop %v804
        %v807 = vmul.f32 1.0, %v806
        %v808 = vrcp.pop %v805
        %v809 = vmul.f32 1.0, %v808
        %812 = vrot.lane.b32.xlu0 %v807, 64
        %v813 = vpop.permute.xlu0 %812
        %814 = vrot.lane.b32.xlu0 %v809, 64
        %v815 = vpop.permute.xlu0 %814
        %v818 = vmul.f32 %v790, %v813
        %v819 = vmul.f32 %v794, %v815
        %v820 = vpack.c.bf16 %v819, %v818
        %v829 = vunpack.c.l.b16 %v407
        %v830 = vunpack.c.l.b16 %v408
        %v831 = vunpack.c.l.b16 %v409
        %v832 = vunpack.c.l.b16 %v410
        %v833 = vunpack.c.l.b16 %v411
        %v834 = vunpack.c.l.b16 %v412
        %v835 = vunpack.c.l.b16 %v413
        %v836 = vunpack.c.l.b16 %v414
        %v837 = vpack.c.b16 %v830, %v829
        %v838 = vpack.c.b16 %v832, %v831
        %v839 = vpack.c.b16 %v834, %v833
        %v840 = vpack.c.b16 %v836, %v835
        %vm845 = vcmask 523264
        %v847 = vsel %vm845, %v820, 0
        %849 = vmatprep.subr.bf16.mxu0 0
        %850 = vmatpush1.bf16.msra.mxu0 0
        %851 = vmatprep.subr.bf16.mxu0 0
        %852 = vmatpush1.bf16.msra.mxu0 0
        %853 = vmatprep.subr.bf16.mxu0 0
        %854 = vmatpush1.bf16.msra.mxu0 0
        %855 = vmatprep.subr.bf16.mxu0 0
        %856 = vmatpush1.bf16.msra.mxu0 0
        %857 = vmatprep.subr.bf16.mxu0 0
        %858 = vmatpush1.bf16.msra.mxu0 %v840
        %859 = vmatprep.subr.bf16.mxu0 0
        %860 = vmatpush1.bf16.msra.mxu0 %v839
        %861 = vmatprep.subr.bf16.mxu0 0
        %862 = vmatpush1.bf16.msra.mxu0 %v838
        %863 = vmatprep.subr.bf16.mxu0 0
        %864 = vmatpush1.bf16.msra.mxu0 %v837
        %865 = vmatprep.subr.bf16.mxu0 0
        %866 = vmatpush2.bf16.msra.mxu0 0
        %867 = vmatprep.subr.bf16.mxu0 0
        %868 = vmatpush2.bf16.msra.mxu0 0
        %869 = vmatprep.subr.bf16.mxu0 0
        %870 = vmatpush2.bf16.msra.mxu0 0
        %871 = vmatprep.subr.bf16.mxu0 0
        %872 = vmatpush2.bf16.msra.mxu0 0
        %873 = vmatprep.subr.bf16.mxu0 0
        %874 = vmatpush2.bf16.msra.mxu0 0
        %875 = vmatprep.subr.bf16.mxu0 0
        %876 = vmatpush2.bf16.msra.mxu0 0
        %877 = vmatprep.subr.bf16.mxu0 0
        %878 = vmatpush2.bf16.msra.mxu0 0
        %879 = vmatprep.subr.bf16.mxu0 0
        %880 = vmatpush2.bf16.msra.mxu0 0
        %881 = vmatprep.mubr.bf16.mxu0 0
        %882 = vmatmul.mubr.bf16.gmra.mxu0 %v847
        %v883 = vpop.f32.mrf.mxu0
        %v884 = vadd.f32 0.0, %v883
        %v885 = vpop.f32.mrf.mxu0
        %v886 = vpop.f32.mrf.mxu0
        %v887 = vadd.f32 0.0, %v886
        %v888 = vpop.f32.mrf.mxu0
        %889 = vdwg.mxu0
        %v890 = vsel %vm456, %v792, -inf
        %891 = vmax.xlane.f32.xlu0 %v890
        %v892 = vpop.xlane.xlu0 %891
        %v893 = vsel %vm456, %v796, -inf
        %894 = vmax.xlane.f32.xlu0 %v893
        %v895 = vpop.xlane.xlu0 %894
        %v896 = vsub.f32 %v792, %v892
        %v897 = vsub.f32 %v796, %v895
        %v898 = vmul.f32 %v896, 1.442695
        %v899 = vpow.pop %v898
        %v900 = vmul.f32 %v897, 1.442695
        %v901 = vpow.pop %v900
        %v902 = vsel %vm456, %v899, 0.0
        %903 = vadd.xlane.f32.xlu0 %v902
        %v904 = vpop.xlane.xlu0 %903
        %v905 = vsel %vm456, %v901, 0.0
        %906 = vadd.xlane.f32.xlu0 %v905
        %v907 = vpop.xlane.xlu0 %906
        %v908 = vlog2.pop %v904
        %v909 = vmul.f32 %v908, 0.6931472
        %v910 = vlog2.pop %v907
        %v911 = vmul.f32 %v910, 0.6931472
        %v912 = vadd.f32 %v892, %v909
        %v913 = vadd.f32 %v895, %v911
        %v914 = vmul.f32 %v792, %v429
        %v915 = vmul.f32 %v796, %v430
        %v916 = vsel %vm456, %v914, 0.0
        %917 = vadd.xlane.f32.xlu0 %v916
        %v918 = vpop.xlane.xlu0 %917
        %v919 = vsel %vm456, %v915, 0.0
        %920 = vadd.xlane.f32.xlu0 %v919
        %v921 = vpop.xlane.xlu0 %920
        %v922 = vsub.f32 %v912, %v918
        %v923 = vsub.f32 %v913, %v921
        %v924 = vadd.f32 %v922, 0.0
        %v925 = vadd.f32 %v923, 0.0
        %v926 = vsel %vm518, %v884, -inf
        %927 = vmax.xlane.f32.xlu0 %v926
        %v928 = vpop.xlane.xlu0 %927
        %v929 = vsel %vm518, %v887, -inf
        %930 = vmax.xlane.f32.xlu0 %v929
        %v931 = vpop.xlane.xlu0 %930
        %v932 = vsub.f32 %v884, %v928
        %v933 = vsub.f32 %v887, %v931
        %v934 = vmul.f32 %v932, 1.442695
        %v935 = vpow.pop %v934
        %v936 = vmul.f32 %v933, 1.442695
        %v937 = vpow.pop %v936
        %v938 = vsel %vm518, %v935, 0.0
        %939 = vadd.xlane.f32.xlu0 %v938
        %v940 = vpop.xlane.xlu0 %939
        %v941 = vsel %vm518, %v937, 0.0
        %942 = vadd.xlane.f32.xlu0 %v941
        %v943 = vpop.xlane.xlu0 %942
        %v944 = vlog2.pop %v940
        %v945 = vmul.f32 %v944, 0.6931472
        %v946 = vlog2.pop %v943
        %v947 = vmul.f32 %v946, 0.6931472
        %v948 = vadd.f32 %v928, %v945
        %v949 = vadd.f32 %v931, %v947
        %v950 = vmul.f32 %v884, %v441
        %v951 = vmul.f32 %v887, %v442
        %v952 = vsel %vm518, %v950, 0.0
        %953 = vadd.xlane.f32.xlu0 %v952
        %v954 = vpop.xlane.xlu0 %953
        %v955 = vsel %vm518, %v951, 0.0
        %956 = vadd.xlane.f32.xlu0 %v955
        %v957 = vpop.xlane.xlu0 %956
        %v958 = vsub.f32 %v948, %v954
        %v959 = vsub.f32 %v949, %v957
        %v960 = vadd.f32 %v924, %v958
        %v961 = vadd.f32 %v925, %v959
        %vm962 = vcmask 392448
        %v963 = vsel %vm962, %v884, -inf
        %964 = vmax.xlane.f32.xlu0 %v963
        %v965 = vpop.xlane.xlu0 %964
        %v966 = vsel %vm962, %v887, -inf
        %967 = vmax.xlane.f32.xlu0 %v966
        %v968 = vpop.xlane.xlu0 %967
        %v969 = vsub.f32 %v884, %v965
        %v970 = vsub.f32 %v887, %v968
        %v971 = vmul.f32 %v969, 1.442695
        %v972 = vpow.pop %v971
        %v973 = vmul.f32 %v970, 1.442695
        %v974 = vpow.pop %v973
        %977 = vrot.lane.b32.xlu0 %v972, 96
        %v978 = vpop.permute.xlu0 %977
        %979 = vrot.lane.b32.xlu0 %v974, 96
        %v980 = vpop.permute.xlu0 %979
        %v983 = vsel %vm600, %v978, 0.0
        %984 = vadd.xlane.f32.xlu0 %v983
        %v985 = vpop.xlane.xlu0 %984
        %v986 = vsel %vm600, %v980, 0.0
        %987 = vadd.xlane.f32.xlu0 %v986
        %v988 = vpop.xlane.xlu0 %987
        %v989 = vlog2.pop %v985
        %v990 = vmul.f32 %v989, 0.6931472
        %v991 = vlog2.pop %v988
        %v992 = vmul.f32 %v991, 0.6931472
        %v993 = vadd.f32 %v965, %v990
        %v994 = vadd.f32 %v968, %v992
        %997 = vrot.lane.b32.xlu0 %v453, 32
        %v998 = vpop.permute.xlu0 %997
        %999 = vrot.lane.b32.xlu0 %v454, 32
        %v1000 = vpop.permute.xlu0 %999
        %v1003 = vmul.f32 %v884, %v998
        %v1004 = vmul.f32 %v887, %v1000
        %1007 = vrot.lane.b32.xlu0 %v1003, 96
        %v1008 = vpop.permute.xlu0 %1007
        %1009 = vrot.lane.b32.xlu0 %v1004, 96
        %v1010 = vpop.permute.xlu0 %1009
        %v1013 = vsel %vm600, %v1008, 0.0
        %1014 = vadd.xlane.f32.xlu0 %v1013
        %v1015 = vpop.xlane.xlu0 %1014
        %v1016 = vsel %vm600, %v1010, 0.0
        %1017 = vadd.xlane.f32.xlu0 %v1016
        %v1018 = vpop.xlane.xlu0 %1017
        %v1019 = vsub.f32 %v993, %v1015
        %v1020 = vsub.f32 %v994, %v1018
        %v1021 = vadd.f32 %v960, %v1019
        %v1022 = vadd.f32 %v961, %v1020
        %v1023 = vld [vmem:[%s379] sm:$0xff]
        %v1024 = vld [vmem:[%s379 + $0x8] sm:$0xff]
        %1025 = vset.pattern.permute.xlu0 1
        %1026 = vperm.xlu0 %1025, %v1023
        %v1027 = vpop.permute.xlu0 %1026
        %1028 = vset.pattern.permute.xlu0 1
        %1029 = vperm.xlu0 %1028, %v1024
        %v1030 = vpop.permute.xlu0 %1029
        %vm1031 = vcmp.eq.s32.totalorder %v418, %v1027
        %vm1032 = vcmp.eq.s32.totalorder %v418, %v1030
        %v1033 = vsel %vm1031, 1, 0
        %v1034 = vsel %vm1032, 1, 0
        %v1035 = vcvt.s32.f32 %v1033
        %v1036 = vcvt.s32.f32 %v1034
        %1037 = vset.pattern.permute.xlu0 3
        %1038 = vperm.xlu0 %1037, %v1023
        %v1039 = vpop.permute.xlu0 %1038
        %1040 = vset.pattern.permute.xlu0 3
        %1041 = vperm.xlu0 %1040, %v1024
        %v1042 = vpop.permute.xlu0 %1041
        %vm1043 = vcmp.eq.s32.totalorder %v418, %v1039
        %vm1044 = vcmp.eq.s32.totalorder %v418, %v1042
        %v1045 = vsel %vm1043, 1, 0
        %v1046 = vsel %vm1044, 1, 0
        %v1047 = vcvt.s32.f32 %v1045
        %v1048 = vcvt.s32.f32 %v1046
        %1049 = vset.pattern.permute.xlu0 5
        %1050 = vperm.xlu0 %1049, %v1023
        %v1051 = vpop.permute.xlu0 %1050
        %1052 = vset.pattern.permute.xlu0 5
        %1053 = vperm.xlu0 %1052, %v1024
        %v1054 = vpop.permute.xlu0 %1053
        %vm1055 = vcmp.eq.s32.totalorder %v418, %v1051
        %vm1056 = vcmp.eq.s32.totalorder %v418, %v1054
        %v1057 = vsel %vm1055, 1, 0
        %v1058 = vsel %vm1056, 1, 0
        %v1059 = vcvt.s32.f32 %v1057
        %v1060 = vcvt.s32.f32 %v1058
        %v1061 = vpack.c.bf16 %v1036, %v1035
        %v1063 = vsel %vm456, %v1061, 0
        %1065 = vmatprep.subr.bf16.mxu0 0
        %1066 = vmatpush1.bf16.msra.mxu0 0
        %1067 = vmatprep.subr.bf16.mxu0 0
        %1068 = vmatpush1.bf16.msra.mxu0 0
        %1069 = vmatprep.subr.bf16.mxu0 0
        %1070 = vmatpush1.bf16.msra.mxu0 0
        %1071 = vmatprep.subr.bf16.mxu0 0
        %1072 = vmatpush1.bf16.msra.mxu0 0
        %1073 = vmatprep.subr.bf16.mxu0 0
        %1074 = vmatpush1.bf16.msra.mxu0 0
        %1075 = vmatprep.subr.bf16.mxu0 0
        %1076 = vmatpush1.bf16.msra.mxu0 0
        %1077 = vmatprep.subr.bf16.mxu0 0
        %1078 = vmatpush1.bf16.msra.mxu0 0
        %1079 = vmatprep.subr.bf16.mxu0 0
        %1080 = vmatpush1.bf16.msra.mxu0 %v462
        %1081 = vmatprep.subr.bf16.mxu0 0
        %1082 = vmatpush2.bf16.msra.mxu0 0
        %1083 = vmatprep.subr.bf16.mxu0 0
        %1084 = vmatpush2.bf16.msra.mxu0 0
        %1085 = vmatprep.subr.bf16.mxu0 0
        %1086 = vmatpush2.bf16.msra.mxu0 0
        %1087 = vmatprep.subr.bf16.mxu0 0
        %1088 = vmatpush2.bf16.msra.mxu0 0
        %1089 = vmatprep.subr.bf16.mxu0 0
        %1090 = vmatpush2.bf16.msra.mxu0 0
        %1091 = vmatprep.subr.bf16.mxu0 0
        %1092 = vmatpush2.bf16.msra.mxu0 0
        %1093 = vmatprep.subr.bf16.mxu0 0
        %1094 = vmatpush2.bf16.msra.mxu0 0
        %1095 = vmatprep.subr.bf16.mxu0 0
        %1096 = vmatpush2.bf16.msra.mxu0 0
        %1097 = vmatprep.mubr.bf16.mxu0 0
        %1098 = vmatmul.mubr.bf16.gmra.mxu0 %v1063
        %v1099 = vpop.f32.mrf.mxu0
        %v1100 = vadd.f32 0.0, %v1099
        %v1101 = vpop.f32.mrf.mxu0
        %v1102 = vpop.f32.mrf.mxu0
        %v1103 = vadd.f32 0.0, %v1102
        %v1104 = vpop.f32.mrf.mxu0
        %1105 = vdwg.mxu0
        %v1106 = vpack.c.bf16 %v1048, %v1047
        %v1108 = vsel %vm518, %v1106, 0
        %1110 = vmatprep.subr.bf16.mxu0 0
        %1111 = vmatpush1.bf16.msra.mxu0 0
        %1112 = vmatprep.subr.bf16.mxu0 0
        %1113 = vmatpush1.bf16.msra.mxu0 0
        %1114 = vmatprep.subr.bf16.mxu0 0
        %1115 = vmatpush1.bf16.msra.mxu0 0
        %1116 = vmatprep.subr.bf16.mxu0 0
        %1117 = vmatpush1.bf16.msra.mxu0 0
        %1118 = vmatprep.subr.bf16.mxu0 0
        %1119 = vmatpush1.bf16.msra.mxu0 0
        %1120 = vmatprep.subr.bf16.mxu0 0
        %1121 = vmatpush1.bf16.msra.mxu0 0
        %1122 = vmatprep.subr.bf16.mxu0 0
        %1123 = vmatpush1.bf16.msra.mxu0 %v515
        %1124 = vmatprep.subr.bf16.mxu0 0
        %1125 = vmatpush1.bf16.msra.mxu0 %v514
        %1126 = vmatprep.subr.bf16.mxu0 0
        %1127 = vmatpush2.bf16.msra.mxu0 0
        %1128 = vmatprep.subr.bf16.mxu0 0
        %1129 = vmatpush2.bf16.msra.mxu0 0
        %1130 = vmatprep.subr.bf16.mxu0 0
        %1131 = vmatpush2.bf16.msra.mxu0 0
        %1132 = vmatprep.subr.bf16.mxu0 0
        %1133 = vmatpush2.bf16.msra.mxu0 0
        %1134 = vmatprep.subr.bf16.mxu0 0
        %1135 = vmatpush2.bf16.msra.mxu0 0
        %1136 = vmatprep.subr.bf16.mxu0 0
        %1137 = vmatpush2.bf16.msra.mxu0 0
        %1138 = vmatprep.subr.bf16.mxu0 0
        %1139 = vmatpush2.bf16.msra.mxu0 0
        %1140 = vmatprep.subr.bf16.mxu0 0
        %1141 = vmatpush2.bf16.msra.mxu0 0
        %1142 = vmatprep.mubr.bf16.mxu0 0
        %1143 = vmatmul.mubr.bf16.gmra.mxu0 %v1108
        %v1144 = vpop.f32.mrf.mxu0
        %v1145 = vadd.f32 0.0, %v1144
        %v1146 = vpop.f32.mrf.mxu0
        %v1147 = vpop.f32.mrf.mxu0
        %v1148 = vadd.f32 0.0, %v1147
        %v1149 = vpop.f32.mrf.mxu0
        %1150 = vdwg.mxu0
        %v1151 = vpack.c.bf16 %v1103, %v1100
        %v1153 = vunpack.c.l.b16 %v1151
        %v1154 = vunpack.c.h.b16 %v1151
        %v1155 = vpack.c.b16 %v1153, %v1153
        %v1156 = vpack.c.b16 %v1154, %v1154
        %1159 = vst.msk [vmem:[#allocation2 + $0x4] sm:$0xf] %vm397, %v1155
        %1160 = vst.msk [vmem:[#allocation2 + $0xc] sm:$0xf] %vm397, %v1156
        %v1161 = vpack.c.bf16 %v1148, %v1145
        %v1163 = vunpack.c.l.b16 %v1161
        %v1164 = vunpack.c.h.b16 %v1161
        %v1165 = vpack.c.b16 %v1163, %v1163
        %v1166 = vpack.c.b16 %v1164, %v1164
        %1167 = vrot.lane.b32.xlu0 %v1165, 32
        %v1168 = vpop.permute.xlu0 %1167
        %1169 = vrot.lane.b32.xlu0 %v1166, 32
        %v1170 = vpop.permute.xlu0 %1169
        %1173 = vst.msk [vmem:[#allocation2 + $0x4] sm:$0xf] %vm575, %v1168
        %1174 = vst.msk [vmem:[#allocation2 + $0xc] sm:$0xf] %vm575, %v1170
        %v1175 = vld [vmem:[#allocation2] sm:$0xff]
        %v1176 = vld [vmem:[#allocation2 + $0x8] sm:$0xff]
        %v1177 = vld [vmem:[%s8] sm:$0xff]
        %v1178 = vld [vmem:[%s8 + $0x8] sm:$0xff]
        %v1179 = vld [vmem:[%s8 + $0x10] sm:$0xff]
        %v1180 = vld [vmem:[%s8 + $0x18] sm:$0xff]
        %v1181 = vld [vmem:[%s8 + $0x20] sm:$0xff]
        %v1182 = vld [vmem:[%s8 + $0x28] sm:$0xff]
        %v1183 = vld [vmem:[%s8 + $0x30] sm:$0xff]
        %v1184 = vld [vmem:[%s8 + $0x38] sm:$0xff]
        %v1185 = vld [vmem:[%s8 + $0x40] sm:$0xff]
        %v1186 = vld [vmem:[%s8 + $0x48] sm:$0xff]
        %v1187 = vld [vmem:[%s8 + $0x50] sm:$0xff]
        %v1188 = vld [vmem:[%s8 + $0x58] sm:$0xff]
        %v1189 = vld [vmem:[%s8 + $0x60] sm:$0xff]
        %v1190 = vld [vmem:[%s8 + $0x68] sm:$0xff]
        %v1191 = vld [vmem:[%s8 + $0x70] sm:$0xff]
        %v1192 = vld [vmem:[%s8 + $0x78] sm:$0xff]
        %v1193 = vld [vmem:[%s8 + $0x80] sm:$0xff]
        %v1194 = vld [vmem:[%s8 + $0x88] sm:$0xff]
        %v1195 = vld [vmem:[%s8 + $0x90] sm:$0xff]
        %v1196 = vld [vmem:[%s8 + $0x98] sm:$0xff]
        %v1197 = vld [vmem:[%s8 + $0xa0] sm:$0xff]
        %v1198 = vld [vmem:[%s8 + $0xa8] sm:$0xff]
        %v1199 = vld [vmem:[%s8 + $0xb0] sm:$0xff]
        %v1200 = vld [vmem:[%s8 + $0xb8] sm:$0xff]
        %v1201 = vld [vmem:[%s9] sm:$0x3]
        %v1203 = vlaneseq
        %v1204 = vshrl.u32 %v1203, 7
        %v1205 = vsub.s32 0, %v1204
        %v1206 = vrot.slane %v1201, %v1205
        %v1207 = vlaneseq
        %v1208 = vshrl.u32 %v1207, 7
        %v1209 = vsub.s32 1, %v1208
        %v1210 = vrot.slane %v1201, %v1209
        %v1215 = vunpack.c.l.b16 %v1175
        %v1216 = vunpack.c.h.b16 %v1175
        %v1217 = vunpack.c.l.b16 %v1176
        %v1218 = vunpack.c.h.b16 %v1176
        %v1219 = vpack.c.b16 %v1217, %v1215
        %v1220 = vpack.c.b16 %v1218, %v1216
        %v1246 = vunpack.c.l.b16 %v1177
        %v1247 = vunpack.c.h.b16 %v1177
        %v1248 = vunpack.c.l.b16 %v1178
        %v1249 = vunpack.c.h.b16 %v1178
        %v1250 = vunpack.c.l.b16 %v1179
        %v1251 = vunpack.c.h.b16 %v1179
        %v1252 = vunpack.c.l.b16 %v1180
        %v1253 = vunpack.c.h.b16 %v1180
        %v1254 = vunpack.c.l.b16 %v1181
        %v1255 = vunpack.c.h.b16 %v1181
        %v1256 = vunpack.c.l.b16 %v1182
        %v1257 = vunpack.c.h.b16 %v1182
        %v1258 = vunpack.c.l.b16 %v1183
        %v1259 = vunpack.c.h.b16 %v1183
        %v1260 = vunpack.c.l.b16 %v1184
        %v1261 = vunpack.c.h.b16 %v1184
        %v1262 = vunpack.c.l.b16 %v1185
        %v1263 = vunpack.c.h.b16 %v1185
        %v1264 = vunpack.c.l.b16 %v1186
        %v1265 = vunpack.c.h.b16 %v1186
        %v1266 = vunpack.c.l.b16 %v1187
        %v1267 = vunpack.c.h.b16 %v1187
        %v1268 = vunpack.c.l.b16 %v1188
        %v1269 = vunpack.c.h.b16 %v1188
        %v1270 = vunpack.c.l.b16 %v1189
        %v1271 = vunpack.c.h.b16 %v1189
        %v1272 = vunpack.c.l.b16 %v1190
        %v1273 = vunpack.c.h.b16 %v1190
        %v1274 = vunpack.c.l.b16 %v1191
        %v1275 = vunpack.c.h.b16 %v1191
        %v1276 = vunpack.c.l.b16 %v1192
        %v1277 = vunpack.c.h.b16 %v1192
        %v1278 = vunpack.c.l.b16 %v1193
        %v1279 = vunpack.c.h.b16 %v1193
        %v1280 = vunpack.c.l.b16 %v1194
        %v1281 = vunpack.c.h.b16 %v1194
        %v1282 = vunpack.c.l.b16 %v1195
        %v1283 = vunpack.c.h.b16 %v1195
        %v1284 = vunpack.c.l.b16 %v1196
        %v1285 = vunpack.c.h.b16 %v1196
        %v1286 = vunpack.c.l.b16 %v1197
        %v1287 = vunpack.c.h.b16 %v1197
        %v1288 = vunpack.c.l.b16 %v1198
        %v1289 = vunpack.c.h.b16 %v1198
        %v1290 = vunpack.c.l.b16 %v1199
        %v1291 = vunpack.c.h.b16 %v1199
        %v1292 = vunpack.c.l.b16 %v1200
        %v1293 = vunpack.c.h.b16 %v1200
        %v1294 = vpack.c.b16 %v1248, %v1246
        %v1295 = vpack.c.b16 %v1249, %v1247
        %v1296 = vpack.c.b16 %v1252, %v1250
        %v1297 = vpack.c.b16 %v1253, %v1251
        %v1298 = vpack.c.b16 %v1256, %v1254
        %v1299 = vpack.c.b16 %v1257, %v1255
        %v1300 = vpack.c.b16 %v1260, %v1258
        %v1301 = vpack.c.b16 %v1261, %v1259
        %v1302 = vpack.c.b16 %v1264, %v1262
        %v1303 = vpack.c.b16 %v1265, %v1263
        %v1304 = vpack.c.b16 %v1268, %v1266
        %v1305 = vpack.c.b16 %v1269, %v1267
        %v1306 = vpack.c.b16 %v1272, %v1270
        %v1307 = vpack.c.b16 %v1273, %v1271
        %v1308 = vpack.c.b16 %v1276, %v1274
        %v1309 = vpack.c.b16 %v1277, %v1275
        %v1310 = vpack.c.b16 %v1280, %v1278
        %v1311 = vpack.c.b16 %v1281, %v1279
        %v1312 = vpack.c.b16 %v1284, %v1282
        %v1313 = vpack.c.b16 %v1285, %v1283
        %v1314 = vpack.c.b16 %v1288, %v1286
        %v1315 = vpack.c.b16 %v1289, %v1287
        %v1316 = vpack.c.b16 %v1292, %v1290
        %v1317 = vpack.c.b16 %v1293, %v1291
        %v1343 = vsel %vm845, %v1220, 0
        %1345 = vmatprep.subr.bf16.mxu0 %v1309
        %1346 = vmatpush1.bf16.msra.mxu0 %v1308
        %1347 = vmatprep.subr.bf16.mxu0 %v1307
        %1348 = vmatpush1.bf16.msra.mxu0 %v1306
        %1349 = vmatprep.subr.bf16.mxu0 %v1305
        %1350 = vmatpush1.bf16.msra.mxu0 %v1304
        %1351 = vmatprep.subr.bf16.mxu0 %v1303
        %1352 = vmatpush1.bf16.msra.mxu0 %v1302
        %1353 = vmatprep.subr.bf16.mxu0 %v1301
        %1354 = vmatpush1.bf16.msra.mxu0 %v1300
        %1355 = vmatprep.subr.bf16.mxu0 %v1299
        %1356 = vmatpush1.bf16.msra.mxu0 %v1298
        %1357 = vmatprep.subr.bf16.mxu0 %v1297
        %1358 = vmatpush1.bf16.msra.mxu0 %v1296
        %1359 = vmatprep.subr.bf16.mxu0 %v1295
        %1360 = vmatpush1.bf16.msra.mxu0 %v1294
        %1361 = vmatprep.subr.bf16.mxu0 0
        %1362 = vmatpush2.bf16.msra.mxu0 0
        %1363 = vmatprep.subr.bf16.mxu0 0
        %1364 = vmatpush2.bf16.msra.mxu0 0
        %1365 = vmatprep.subr.bf16.mxu0 0
        %1366 = vmatpush2.bf16.msra.mxu0 0
        %1367 = vmatprep.subr.bf16.mxu0 0
        %1368 = vmatpush2.bf16.msra.mxu0 0
        %1369 = vmatprep.subr.bf16.mxu0 %v1317
        %1370 = vmatpush2.bf16.msra.mxu0 %v1316
        %1371 = vmatprep.subr.bf16.mxu0 %v1315
        %1372 = vmatpush2.bf16.msra.mxu0 %v1314
        %1373 = vmatprep.subr.bf16.mxu0 %v1313
        %1374 = vmatpush2.bf16.msra.mxu0 %v1312
        %1375 = vmatprep.subr.bf16.mxu0 %v1311
        %1376 = vmatpush2.bf16.msra.mxu0 %v1310
        %1377 = vmatprep.mubr.bf16.mxu0 %v1343
        %1378 = vmatmul.mubr.bf16.gmra.mxu0 %v1219
        %v1379 = vpop.f32.mrf.mxu0
        %v1380 = vadd.f32 %v1206, %v1379
        %v1381 = vpop.f32.mrf.mxu0
        %v1382 = vadd.f32 %v1210, %v1381
        %v1383 = vpop.f32.mrf.mxu0
        %v1384 = vadd.f32 %v1206, %v1383
        %v1385 = vpop.f32.mrf.mxu0
        %v1386 = vadd.f32 %v1210, %v1385
        %1387 = vdwg.mxu0
        %v1388 = vxor.u32 %v1380, 2147483648
        %v1389 = vxor.u32 %v1384, 2147483648
        %v1390 = vmul.f32 %v1388, 1.442695
        %v1391 = vpow.pop %v1390
        %v1392 = vmul.f32 %v1389, 1.442695
        %v1393 = vpow.pop %v1392
        %v1394 = vadd.f32 %v1391, 1.0
        %v1395 = vadd.f32 %v1393, 1.0
        %v1396 = vrcp.pop %v1394
        %v1397 = vmul.f32 1.0, %v1396
        %v1398 = vrcp.pop %v1395
        %v1399 = vmul.f32 1.0, %v1398
        %1402 = vrot.lane.b32.xlu0 %v1397, 64
        %v1403 = vpop.permute.xlu0 %1402
        %1404 = vrot.lane.b32.xlu0 %v1399, 64
        %v1405 = vpop.permute.xlu0 %1404
        %v1408 = vmul.f32 %v1380, %v1403
        %v1409 = vmul.f32 %v1384, %v1405
        %v1410 = vpack.c.bf16 %v1409, %v1408
        %v1412 = vsel %vm845, %v1410, 0
        %1414 = vmatprep.subr.bf16.mxu0 0
        %1415 = vmatpush1.bf16.msra.mxu0 0
        %1416 = vmatprep.subr.bf16.mxu0 0
        %1417 = vmatpush1.bf16.msra.mxu0 0
        %1418 = vmatprep.subr.bf16.mxu0 0
        %1419 = vmatpush1.bf16.msra.mxu0 0
        %1420 = vmatprep.subr.bf16.mxu0 0
        %1421 = vmatpush1.bf16.msra.mxu0 0
        %1422 = vmatprep.subr.bf16.mxu0 0
        %1423 = vmatpush1.bf16.msra.mxu0 %v840
        %1424 = vmatprep.subr.bf16.mxu0 0
        %1425 = vmatpush1.bf16.msra.mxu0 %v839
        %1426 = vmatprep.subr.bf16.mxu0 0
        %1427 = vmatpush1.bf16.msra.mxu0 %v838
        %1428 = vmatprep.subr.bf16.mxu0 0
        %1429 = vmatpush1.bf16.msra.mxu0 %v837
        %1430 = vmatprep.subr.bf16.mxu0 0
        %1431 = vmatpush2.bf16.msra.mxu0 0
        %1432 = vmatprep.subr.bf16.mxu0 0
        %1433 = vmatpush2.bf16.msra.mxu0 0
        %1434 = vmatprep.subr.bf16.mxu0 0
        %1435 = vmatpush2.bf16.msra.mxu0 0
        %1436 = vmatprep.subr.bf16.mxu0 0
        %1437 = vmatpush2.bf16.msra.mxu0 0
        %1438 = vmatprep.subr.bf16.mxu0 0
        %1439 = vmatpush2.bf16.msra.mxu0 0
        %1440 = vmatprep.subr.bf16.mxu0 0
        %1441 = vmatpush2.bf16.msra.mxu0 0
        %1442 = vmatprep.subr.bf16.mxu0 0
        %1443 = vmatpush2.bf16.msra.mxu0 0
        %1444 = vmatprep.subr.bf16.mxu0 0
        %1445 = vmatpush2.bf16.msra.mxu0 0
        %1446 = vmatprep.mubr.bf16.mxu0 0
        %1447 = vmatmul.mubr.bf16.gmra.mxu0 %v1412
        %v1448 = vpop.f32.mrf.mxu0
        %v1449 = vadd.f32 0.0, %v1448
        %v1450 = vpop.f32.mrf.mxu0
        %v1451 = vpop.f32.mrf.mxu0
        %v1452 = vadd.f32 0.0, %v1451
        %v1453 = vpop.f32.mrf.mxu0
        %1454 = vdwg.mxu0
        %v1455 = vsel %vm456, %v1382, -inf
        %1456 = vmax.xlane.f32.xlu0 %v1455
        %v1457 = vpop.xlane.xlu0 %1456
        %v1458 = vsel %vm456, %v1386, -inf
        %1459 = vmax.xlane.f32.xlu0 %v1458
        %v1460 = vpop.xlane.xlu0 %1459
        %v1461 = vsub.f32 %v1382, %v1457
        %v1462 = vsub.f32 %v1386, %v1460
        %v1463 = vmul.f32 %v1461, 1.442695
        %v1464 = vpow.pop %v1463
        %v1465 = vmul.f32 %v1462, 1.442695
        %v1466 = vpow.pop %v1465
        %v1467 = vsel %vm456, %v1464, 0.0
        %1468 = vadd.xlane.f32.xlu0 %v1467
        %v1469 = vpop.xlane.xlu0 %1468
        %v1470 = vsel %vm456, %v1466, 0.0
        %1471 = vadd.xlane.f32.xlu0 %v1470
        %v1472 = vpop.xlane.xlu0 %1471
        %v1473 = vlog2.pop %v1469
        %v1474 = vmul.f32 %v1473, 0.6931472
        %v1475 = vlog2.pop %v1472
        %v1476 = vmul.f32 %v1475, 0.6931472
        %v1477 = vadd.f32 %v1457, %v1474
        %v1478 = vadd.f32 %v1460, %v1476
        %v1479 = vmul.f32 %v1382, %v1035
        %v1480 = vmul.f32 %v1386, %v1036
        %v1481 = vsel %vm456, %v1479, 0.0
        %1482 = vadd.xlane.f32.xlu0 %v1481
        %v1483 = vpop.xlane.xlu0 %1482
        %v1484 = vsel %vm456, %v1480, 0.0
        %1485 = vadd.xlane.f32.xlu0 %v1484
        %v1486 = vpop.xlane.xlu0 %1485
        %v1487 = vsub.f32 %v1477, %v1483
        %v1488 = vsub.f32 %v1478, %v1486
        %v1489 = vadd.f32 %v1021, %v1487
        %v1490 = vadd.f32 %v1022, %v1488
        %v1491 = vsel %vm518, %v1449, -inf
        %1492 = vmax.xlane.f32.xlu0 %v1491
        %v1493 = vpop.xlane.xlu0 %1492
        %v1494 = vsel %vm518, %v1452, -inf
        %1495 = vmax.xlane.f32.xlu0 %v1494
        %v1496 = vpop.xlane.xlu0 %1495
        %v1497 = vsub.f32 %v1449, %v1493
        %v1498 = vsub.f32 %v1452, %v1496
        %v1499 = vmul.f32 %v1497, 1.442695
        %v1500 = vpow.pop %v1499
        %v1501 = vmul.f32 %v1498, 1.442695
        %v1502 = vpow.pop %v1501
        %v1503 = vsel %vm518, %v1500, 0.0
        %1504 = vadd.xlane.f32.xlu0 %v1503
        %v1505 = vpop.xlane.xlu0 %1504
        %v1506 = vsel %vm518, %v1502, 0.0
        %1507 = vadd.xlane.f32.xlu0 %v1506
        %v1508 = vpop.xlane.xlu0 %1507
        %v1509 = vlog2.pop %v1505
        %v1510 = vmul.f32 %v1509, 0.6931472
        %v1511 = vlog2.pop %v1508
        %v1512 = vmul.f32 %v1511, 0.6931472
        %v1513 = vadd.f32 %v1493, %v1510
        %v1514 = vadd.f32 %v1496, %v1512
        %v1515 = vmul.f32 %v1449, %v1047
        %v1516 = vmul.f32 %v1452, %v1048
        %v1517 = vsel %vm518, %v1515, 0.0
        %1518 = vadd.xlane.f32.xlu0 %v1517
        %v1519 = vpop.xlane.xlu0 %1518
        %v1520 = vsel %vm518, %v1516, 0.0
        %1521 = vadd.xlane.f32.xlu0 %v1520
        %v1522 = vpop.xlane.xlu0 %1521
        %v1523 = vsub.f32 %v1513, %v1519
        %v1524 = vsub.f32 %v1514, %v1522
        %v1525 = vadd.f32 %v1489, %v1523
        %v1526 = vadd.f32 %v1490, %v1524
        %v1527 = vsel %vm962, %v1449, -inf
        %1528 = vmax.xlane.f32.xlu0 %v1527
        %v1529 = vpop.xlane.xlu0 %1528
        %v1530 = vsel %vm962, %v1452, -inf
        %1531 = vmax.xlane.f32.xlu0 %v1530
        %v1532 = vpop.xlane.xlu0 %1531
        %v1533 = vsub.f32 %v1449, %v1529
        %v1534 = vsub.f32 %v1452, %v1532
        %v1535 = vmul.f32 %v1533, 1.442695
        %v1536 = vpow.pop %v1535
        %v1537 = vmul.f32 %v1534, 1.442695
        %v1538 = vpow.pop %v1537
        %1541 = vrot.lane.b32.xlu0 %v1536, 96
        %v1542 = vpop.permute.xlu0 %1541
        %1543 = vrot.lane.b32.xlu0 %v1538, 96
        %v1544 = vpop.permute.xlu0 %1543
        %v1547 = vsel %vm600, %v1542, 0.0
        %1548 = vadd.xlane.f32.xlu0 %v1547
        %v1549 = vpop.xlane.xlu0 %1548
        %v1550 = vsel %vm600, %v1544, 0.0
        %1551 = vadd.xlane.f32.xlu0 %v1550
        %v1552 = vpop.xlane.xlu0 %1551
        %v1553 = vlog2.pop %v1549
        %v1554 = vmul.f32 %v1553, 0.6931472
        %v1555 = vlog2.pop %v1552
        %v1556 = vmul.f32 %v1555, 0.6931472
        %v1557 = vadd.f32 %v1529, %v1554
        %v1558 = vadd.f32 %v1532, %v1556
        %1561 = vrot.lane.b32.xlu0 %v1059, 32
        %v1562 = vpop.permute.xlu0 %1561
        %1563 = vrot.lane.b32.xlu0 %v1060, 32
        %v1564 = vpop.permute.xlu0 %1563
        %v1567 = vmul.f32 %v1449, %v1562
        %v1568 = vmul.f32 %v1452, %v1564
        %1571 = vrot.lane.b32.xlu0 %v1567, 96
        %v1572 = vpop.permute.xlu0 %1571
        %1573 = vrot.lane.b32.xlu0 %v1568, 96
        %v1574 = vpop.permute.xlu0 %1573
        %v1577 = vsel %vm600, %v1572, 0.0
        %1578 = vadd.xlane.f32.xlu0 %v1577
        %v1579 = vpop.xlane.xlu0 %1578
        %v1580 = vsel %vm600, %v1574, 0.0
        %1581 = vadd.xlane.f32.xlu0 %v1580
        %v1582 = vpop.xlane.xlu0 %1581
        %v1583 = vsub.f32 %v1557, %v1579
        %v1584 = vsub.f32 %v1558, %v1582
        %v1585 = vadd.f32 %v1525, %v1583
        %v1586 = vadd.f32 %v1526, %v1584
        %v1587 = vmul.f32 %v1585, %v393
        %v1588 = vmul.f32 %v1586, %v394
        %vm1589 = vcmask 7168
        %v1590 = vsel %vm1589, %v1587, 0.0
        %v1591 = vsel %vm1589, %v1588, 0.0
        %v1592 = vadd.f32 %v1590, %v1591
        %1593 = vadd.xlane.f32.xlu0 %v1592
        %v1594 = vpop.xlane.xlu0 %1593
        %v1595 = vrot.slane %v1594, 4
        %v1596 = vadd.f32 %v1594, %v1595
        %v1597 = vrot.slane %v1596, 2
        %v1598 = vadd.f32 %v1596, %v1597
        %v1599 = vrot.slane %v1598, 1
        %v1600 = vadd.f32 %v1598, %v1599
        %s1601 = vtos %v1600
        %s1602 = smul.f32 %s1601, 0.055555556
        %v1603 = vstv %s1602
        %1604 = vst [vmem:[%s368] sm:$0x1] %v1603
        %s1605 = sand.u32 %s252, 1
        %s1606 = scalar_lea.sflag [#allocation4], %s1605
        %s1607 = sand.u32 %s252, 1
        %s1608 = scalar_lea.vmem [#allocation3], %s1607
        // Predicated region
        $region61: #{tpu_custom_call.1} parent=59 // pred_check
          %p1609 = pneg %p262
        $region62: #{tpu_custom_call.1} parent=59 // pred_check_branch
          %1611 = sbr.rel (%p1609) target = $region64
        $region63: #{tpu_custom_call.1} parent=59 // pred_region
          %s1613 = ssub.s32 16, 16
          %1614 = vsyncadd %s1606, %s1613
          %s1615 = smul.addr %s24, 16
          %s1616 = scalar_lea.hbm %s10, %s1615
          %s1618 = sshll.u32 %s1608, 4
          %s1619 = int_to_ptr.vmem [resolvable:$true] %s1618
          %1621 = dma.vmem_to_hbm [thread:$0]  %s1619, 16, %s1616, %s1606
        $region64: #{tpu_custom_call.1} parent=59 // pred_fallthru
          _
      $region60: #{tpu_custom_call.1} parent=5 // pred_fallthru
        _
      %p1622 = scmp.le.s32.totalorder 2, %s19
      // Predicated region
      $region65: #{tpu_custom_call.1} parent=5 // pred_check
        %p1623 = pneg %p1622
      $region66: #{tpu_custom_call.1} parent=5 // pred_check_branch
        %1625 = sbr.rel (%p1623) target = $region68
      $region67: #{tpu_custom_call.1} parent=5 // pred_region
        %s1626 = ssub.s32 %s19, 2
        // Predicated region
        $region69: #{tpu_custom_call.1} parent=67 // pred_check
          %p1627 = pneg %p268
        $region70: #{tpu_custom_call.1} parent=67 // pred_check_branch
          %1629 = sbr.rel (%p1627) target = $region72
        $region71: #{tpu_custom_call.1} parent=67 // pred_region
          %s1630 = sand.u32 %s253, 1
          %s1631 = scalar_lea.sflag [#allocation4], %s1630
          %s1632 = sand.u32 %s253, 1
          %s1633 = scalar_lea.vmem [#allocation3], %s1632
          %1634 = dma.done %s1631, 16
        $region72: #{tpu_custom_call.1} parent=67 // pred_fallthru
          _
      $region68: #{tpu_custom_call.1} parent=5 // pred_fallthru
        _
    $region6: #{tpu_custom_call.1} parent=1 // loop_footer
      %s23 = sadd.s32 1, %s19
    $region7: #{tpu_custom_call.1} parent=1 // loop_footer_branch
      %18 = sbr.rel target = $region3
    $region8: #{tpu_custom_call.1} parent=1 // loop_exit
      _
    %1635 = vsyncpa [#allocation4], 1
    %s1636 = scalar_lea.sflag [#allocation4], 1
    %1637 = vsyncpa %s1636, 1

</llo_original>
